<compile_context>
chip_gen: v7x
topology: tpu7x:2x2x1
jax: 0.10.0
libtpu: 0.0.40
codegen_flags: <defaults>
</compile_context>

<pallas_src>
import functools

import jax
import jax.numpy as jnp
from jax.experimental import pallas as pl
from jax.experimental.pallas import tpu as pltpu

TN = 1024     # strip width along the 4096-wide hidden axis -> grid = (4,)
LANES = 128   # lane padding for the num_classes output dim


# --------------------------------------------------------------------------
# Fused 3-layer MLP kernel
# --------------------------------------------------------------------------
def _fused_mlp_kernel(x_ref, w1_ref, b1_ref, w2_ref, b2_ref, w3_ref, b3_ref,
                      o_ref, acc_ref):
    """Grid step j over hidden strips:
         h1_j  = relu(x @ W1[:, strip j] + b1[strip j])
         acc  += h1_j @ W2[strip j, :]
       Last step:
         out   = relu(acc + b2) @ W3p + b3p         (W3/b3 lane-padded to 128)
    """
    j = pl.program_id(0)

    @pl.when(j == 0)
    def _():
        acc_ref[...] = jnp.zeros_like(acc_ref)

    # Layer-1 strip: bf16 MXU inputs, f32 accumulation, f32 bias/ReLU.
    h1 = jnp.dot(x_ref[...], w1_ref[...], preferred_element_type=jnp.float32)
    h1 = jnp.maximum(h1 + b1_ref[pl.ds(j, 1), :], 0.0)

    # Layer-2 partial sum over the hidden (4096) axis.
    acc_ref[...] += jnp.dot(h1.astype(w2_ref.dtype), w2_ref[...],
                            preferred_element_type=jnp.float32)

    @pl.when(j == pl.num_programs(0) - 1)
    def _():
        h2 = jnp.maximum(acc_ref[...] + b2_ref[...], 0.0)
        y = jnp.dot(h2.astype(w3_ref.dtype), w3_ref[...],
                    preferred_element_type=jnp.float32)
        o_ref[...] = (y + b3_ref[...]).astype(o_ref.dtype)


def fused_mlp(x, w1, b1r, w2, b2r, w3p, b3p):
    """x: (M, K) bf16; w1: (K, N1) bf16; b1r: (N1//tn, tn) f32;
    w2: (N1, N2) bf16; b2r: (1, N2) f32; w3p: (N2, Np) bf16; b3p: (1, Np) f32.
    Returns (M, Np) f32 (lane-padded class dim)."""
    M, K = x.shape
    K1, N1 = w1.shape
    N1b, N2 = w2.shape
    N2b, Np = w3p.shape
    assert K == K1 and N1 == N1b and N2 == N2b
    gn, tn = b1r.shape
    assert gn * tn == N1 and tn % LANES == 0
    assert b2r.shape == (1, N2) and b3p.shape == (1, Np) and Np % LANES == 0
    # TODO(synk): if M grows beyond a few hundred rows, add an M tile axis
    # (multiples of 8, ideally 128/256 per MXU pass) instead of full-M blocks.

    return pl.pallas_call(
        _fused_mlp_kernel,
        out_shape=jax.ShapeDtypeStruct((M, Np), jnp.float32),
        grid_spec=pltpu.PrefetchScalarGridSpec(
            num_scalar_prefetch=0,
            grid=(gn,),
            in_specs=[
                pl.BlockSpec((M, K), lambda j: (0, 0)),    # x: VMEM-resident
                pl.BlockSpec((K, tn), lambda j: (0, j)),   # W1 strip (streamed)
                pl.BlockSpec((gn, tn), lambda j: (0, 0)),  # b1 table (resident)
                pl.BlockSpec((tn, N2), lambda j: (j, 0)),  # W2 strip (streamed)
                pl.BlockSpec((1, N2), lambda j: (0, 0)),   # b2 (resident)
                pl.BlockSpec((N2, Np), lambda j: (0, 0)),  # W3 padded (resident)
                pl.BlockSpec((1, Np), lambda j: (0, 0)),   # b3 padded (resident)
            ],
            out_specs=pl.BlockSpec((M, Np), lambda j: (0, 0)),
            scratch_shapes=[pltpu.VMEM((M, N2), jnp.float32)],
        ),
        compiler_params=pltpu.CompilerParams(
            # Cross-strip accumulator + last-step epilogue -> "arbitrary".
            dimension_semantics=("arbitrary",),
            vmem_limit_bytes=32 << 20,
        ),
    )(x, w1, b1r, w2, b2r, w3p, b3p)


# --------------------------------------------------------------------------
# Params: init (matches PyTorch default Linear init shapes) + one-time packing
# --------------------------------------------------------------------------
def init_baseline_mlp_params(key, input_dim, num_classes, dtype=jnp.float32):
    """Weights stored as (in_dim, out_dim); biases as (out_dim,)."""
    dims = [(input_dim, 4096), (4096, 512), (512, num_classes)]
    params = []
    for din, dout in dims:
        kw, kb, key = jax.random.split(key, 3)
        bound = 1.0 / (din ** 0.5)
        w = jax.random.uniform(kw, (din, dout), dtype, -bound, bound)
        b = jax.random.uniform(kb, (dout,), dtype, -bound, bound)
        params.append((w, b))
    return params


def prepare_params(params, tn=TN):
    """One-time packing done at init (NOT per forward): bf16 weight storage,
    lane-padded W3/b3, biases pre-reshaped to 2-D, b1 laid out per strip."""
    (w1, b1), (w2, b2), (w3, b3) = params
    n1 = w1.shape[1]
    if n1 % tn != 0:
        tn = n1
    num_classes = w3.shape[1]
    np_pad = pl.cdiv(num_classes, LANES) * LANES
    return dict(
        w1=w1.astype(jnp.bfloat16),
        b1r=b1.astype(jnp.float32).reshape(n1 // tn, tn),
        w2=w2.astype(jnp.bfloat16),
        b2r=b2.astype(jnp.float32).reshape(1, -1),
        w3p=jnp.pad(w3, ((0, 0), (0, np_pad - num_classes))).astype(jnp.bfloat16),
        b3p=jnp.pad(b3.astype(jnp.float32), (0, np_pad - num_classes)).reshape(1, np_pad),
    )


# --------------------------------------------------------------------------
# Forward
# --------------------------------------------------------------------------
@functools.partial(jax.jit, static_argnames=("num_classes",))
def baseline_mlp_forward(x, prepared, *, num_classes):
    B = x.shape[0]
    h = x.reshape(B, -1).astype(jnp.bfloat16)   # NCHW flatten (plain-JAX glue)
    out = fused_mlp(h, prepared["w1"], prepared["b1r"], prepared["w2"],
                    prepared["b2r"], prepared["w3p"], prepared["b3p"])
    return out[:, :num_classes]


if __name__ == "__main__":
    key = jax.random.PRNGKey(0)
    kx, kp = jax.random.split(key)

    # Small NCHW input: batch=2, channels=4, spatial=16x16 -> input_dim=1024
    B, C, H, W = 2, 4, 16, 16
    input_dim = C * H * W
    num_classes = 10

    x = jax.random.normal(kx, (B, C, H, W), dtype=jnp.float32)
    params = init_baseline_mlp_params(kp, input_dim, num_classes)
    prepared = prepare_params(params)

    out = baseline_mlp_forward(x, prepared, num_classes=num_classes)
    jax.block_until_ready(out)

    # Pure-JAX f32 reference (HIGHEST precision so the reference is truly f32).
    h = x.reshape(B, -1)
    (w1, b1), (w2, b2), (w3, b3) = params
    dot = functools.partial(jnp.dot, precision=jax.lax.Precision.HIGHEST)
    ref = jnp.maximum(dot(h, w1) + b1, 0.0)
    ref = jnp.maximum(dot(ref, w2) + b2, 0.0)
    ref = dot(ref, w3) + b3

    assert out.shape == (B, num_classes)
    assert out.dtype == jnp.float32
    # bf16 weight/activation streaming -> expect ~1e-3 abs error vs f32 module.
    assert jnp.allclose(out, ref, atol=2e-2, rtol=2e-2), \
        f"max abs diff {float(jnp.max(jnp.abs(out - ref)))}"

    print("KERNEL_OK")
</pallas_src>

<mosaic_0001>
module attributes {stable_mosaic.version = 11 : i64} {
  func.func @_fused_mlp_kernel(%arg0: i32, %arg1: memref<2x1024xbf16, #tpu.memory_space<vmem>>, %arg2: memref<1024x1024xbf16, #tpu.memory_space<vmem>>, %arg3: memref<4x1024xf32, #tpu.memory_space<vmem>>, %arg4: memref<1024x512xbf16, #tpu.memory_space<vmem>>, %arg5: memref<1x512xf32, #tpu.memory_space<vmem>>, %arg6: memref<512x128xbf16, #tpu.memory_space<vmem>>, %arg7: memref<1x128xf32, #tpu.memory_space<vmem>>, %arg8: memref<2x128xf32, #tpu.memory_space<vmem>>, %arg9: memref<2x512xf32, #tpu.memory_space<vmem>>) attributes {dimension_semantics = [#tpu.dimension_semantics<arbitrary>], iteration_bounds = array<i64: 4>, scalar_prefetch = 0 : i64, scratch_operands = 1 : i64, tpu.core_type = #tpu.core_type<tc>, window_params = [{pipeline_mode = #tpu.pipeline_mode<synchronous>, transform_indices = @transform_0, window_bounds = array<i64: 2, 1024>}, {transform_indices = @transform_1, window_bounds = array<i64: 1024, 1024>}, {pipeline_mode = #tpu.pipeline_mode<synchronous>, transform_indices = @transform_2, window_bounds = array<i64: 4, 1024>}, {transform_indices = @transform_3, window_bounds = array<i64: 1024, 512>}, {pipeline_mode = #tpu.pipeline_mode<synchronous>, transform_indices = @transform_4, window_bounds = array<i64: 1, 512>}, {pipeline_mode = #tpu.pipeline_mode<synchronous>, transform_indices = @transform_5, window_bounds = array<i64: 512, 128>}, {pipeline_mode = #tpu.pipeline_mode<synchronous>, transform_indices = @transform_6, window_bounds = array<i64: 1, 128>}, {pipeline_mode = #tpu.pipeline_mode<synchronous>, transform_indices = @transform_7, window_bounds = array<i64: 2, 128>}]} {
    %c0_i32 = arith.constant 0 : i32
    %0 = arith.cmpi eq, %arg0, %c0_i32 : i32
    %1 = arith.extui %0 : i1 to i32
    %c0_i32_0 = arith.constant 0 : i32
    %2 = arith.cmpi ne, %1, %c0_i32_0 : i32
    scf.if %2 {
      %cst_14 = arith.constant 0.000000e+00 : f32
      %21 = vector.broadcast %cst_14 : f32 to vector<2x512xf32>
      %c0_15 = arith.constant 0 : index
      %c0_16 = arith.constant 0 : index
      %22 = vector.load %arg9[%c0_15, %c0_16] : memref<2x512xf32, #tpu.memory_space<vmem>>, vector<2x512xf32>
      tpu.vector_store %arg9[%c0_15, %c0_16], %21 {strides = array<i32>} : memref<2x512xf32, #tpu.memory_space<vmem>>, vector<2x512xf32>,
    } else {
    }
    %c0 = arith.constant 0 : index
    %c0_1 = arith.constant 0 : index
    %3 = vector.load %arg1[%c0, %c0_1] : memref<2x1024xbf16, #tpu.memory_space<vmem>>, vector<2x1024xbf16>
    %c0_2 = arith.constant 0 : index
    %c0_3 = arith.constant 0 : index
    %4 = vector.load %arg2[%c0_2, %c0_3] : memref<1024x1024xbf16, #tpu.memory_space<vmem>>, vector<1024x1024xbf16>
    %cst = arith.constant dense<0.000000e+00> : vector<2x1024xf32>
    %5 = tpu.matmul %3, %4, %cst {dimension_numbers = #tpu.dot_dimension_numbers<[1], [0], [0], [1], [0, 0, 1, 1], [], []>} : vector<2x1024xbf16>, vector<1024x1024xbf16>, vector<2x1024xf32> -> vector<2x1024xf32>
    %6 = arith.index_cast %arg0 : i32 to index
    %c0_4 = arith.constant 0 : index
    %7 = vector.load %arg3[%6, %c0_4] : memref<4x1024xf32, #tpu.memory_space<vmem>>, vector<1x1024xf32>
    %8 = vector.broadcast %7 : vector<1x1024xf32> to vector<2x1024xf32>
    %9 = arith.addf %5, %8 : vector<2x1024xf32>
    %cst_5 = arith.constant 0.000000e+00 : f32
    %10 = vector.broadcast %cst_5 : f32 to vector<2x1024xf32>
    %11 = arith.maximumf %9, %10 : vector<2x1024xf32>
    %c0_6 = arith.constant 0 : index
    %c0_7 = arith.constant 0 : index
    %12 = vector.load %arg9[%c0_6, %c0_7] : memref<2x512xf32, #tpu.memory_space<vmem>>, vector<2x512xf32>
    %13 = arith.truncf %11 : vector<2x1024xf32> to vector<2x1024xbf16>
    %c0_8 = arith.constant 0 : index
    %c0_9 = arith.constant 0 : index
    %14 = vector.load %arg4[%c0_8, %c0_9] : memref<1024x512xbf16, #tpu.memory_space<vmem>>, vector<1024x512xbf16>
    %cst_10 = arith.constant dense<0.000000e+00> : vector<2x512xf32>
    %15 = tpu.matmul %13, %14, %cst_10 {dimension_numbers = #tpu.dot_dimension_numbers<[1], [0], [0], [1], [0, 0, 1, 1], [], []>} : vector<2x1024xbf16>, vector<1024x512xbf16>, vector<2x512xf32> -> vector<2x512xf32>
    %16 = arith.addf %12, %15 : vector<2x512xf32>
    %c0_11 = arith.constant 0 : index
    %c0_12 = arith.constant 0 : index
    %17 = vector.load %arg9[%c0_11, %c0_12] : memref<2x512xf32, #tpu.memory_space<vmem>>, vector<2x512xf32>
    tpu.vector_store %arg9[%c0_11, %c0_12], %16 {strides = array<i32>} : memref<2x512xf32, #tpu.memory_space<vmem>>, vector<2x512xf32>,
    %c3_i32 = arith.constant 3 : i32
    %18 = arith.cmpi eq, %arg0, %c3_i32 : i32
    %19 = arith.extui %18 : i1 to i32
    %c0_i32_13 = arith.constant 0 : i32
    %20 = arith.cmpi ne, %19, %c0_i32_13 : i32
    scf.if %20 {
      %c0_14 = arith.constant 0 : index
      %c0_15 = arith.constant 0 : index
      %21 = vector.load %arg9[%c0_14, %c0_15] : memref<2x512xf32, #tpu.memory_space<vmem>>, vector<2x512xf32>
      %c0_16 = arith.constant 0 : index
      %c0_17 = arith.constant 0 : index
      %22 = vector.load %arg5[%c0_16, %c0_17] : memref<1x512xf32, #tpu.memory_space<vmem>>, vector<1x512xf32>
      %23 = vector.broadcast %22 : vector<1x512xf32> to vector<2x512xf32>
      %24 = arith.addf %21, %23 : vector<2x512xf32>
      %cst_18 = arith.constant 0.000000e+00 : f32
      %25 = vector.broadcast %cst_18 : f32 to vector<2x512xf32>
      %26 = arith.maximumf %24, %25 : vector<2x512xf32>
      %27 = arith.truncf %26 : vector<2x512xf32> to vector<2x512xbf16>
      %c0_19 = arith.constant 0 : index
      %c0_20 = arith.constant 0 : index
      %28 = vector.load %arg6[%c0_19, %c0_20] : memref<512x128xbf16, #tpu.memory_space<vmem>>, vector<512x128xbf16>
      %cst_21 = arith.constant dense<0.000000e+00> : vector<2x128xf32>
      %29 = tpu.matmul %27, %28, %cst_21 {dimension_numbers = #tpu.dot_dimension_numbers<[1], [0], [0], [1], [0, 0, 1, 1], [], []>} : vector<2x512xbf16>, vector<512x128xbf16>, vector<2x128xf32> -> vector<2x128xf32>
      %c0_22 = arith.constant 0 : index
      %c0_23 = arith.constant 0 : index
      %30 = vector.load %arg7[%c0_22, %c0_23] : memref<1x128xf32, #tpu.memory_space<vmem>>, vector<1x128xf32>
      %31 = vector.broadcast %30 : vector<1x128xf32> to vector<2x128xf32>
      %32 = arith.addf %29, %31 : vector<2x128xf32>
      %c0_24 = arith.constant 0 : index
      %c0_25 = arith.constant 0 : index
      %33 = vector.load %arg8[%c0_24, %c0_25] : memref<2x128xf32, #tpu.memory_space<vmem>>, vector<2x128xf32>
      tpu.vector_store %arg8[%c0_24, %c0_25], %32 {strides = array<i32>} : memref<2x128xf32, #tpu.memory_space<vmem>>, vector<2x128xf32>,
    } else {
    }
    return
  }
  func.func @transform_0(%arg0: i32) -> (i32, i32) {
    %c0_i32 = arith.constant 0 : i32
    %c0_i32_0 = arith.constant 0 : i32
    %c0_i32_1 = arith.constant 0 : i32
    return %c0_i32, %c0_i32_0 : i32, i32
  }
  func.func @transform_1(%arg0: i32) -> (i32, i32) {
    %c0_i32 = arith.constant 0 : i32
    %c0_i32_0 = arith.constant 0 : i32
    return %c0_i32, %arg0 : i32, i32
  }
  func.func @transform_2(%arg0: i32) -> (i32, i32) {
    %c0_i32 = arith.constant 0 : i32
    %c0_i32_0 = arith.constant 0 : i32
    %c0_i32_1 = arith.constant 0 : i32
    return %c0_i32, %c0_i32_0 : i32, i32
  }
  func.func @transform_3(%arg0: i32) -> (i32, i32) {
    %c0_i32 = arith.constant 0 : i32
    %c0_i32_0 = arith.constant 0 : i32
    return %arg0, %c0_i32 : i32, i32
  }
  func.func @transform_4(%arg0: i32) -> (i32, i32) {
    %c0_i32 = arith.constant 0 : i32
    %c0_i32_0 = arith.constant 0 : i32
    %c0_i32_1 = arith.constant 0 : i32
    return %c0_i32, %c0_i32_0 : i32, i32
  }
  func.func @transform_5(%arg0: i32) -> (i32, i32) {
    %c0_i32 = arith.constant 0 : i32
    %c0_i32_0 = arith.constant 0 : i32
    %c0_i32_1 = arith.constant 0 : i32
    return %c0_i32, %c0_i32_0 : i32, i32
  }
  func.func @transform_6(%arg0: i32) -> (i32, i32) {
    %c0_i32 = arith.constant 0 : i32
    %c0_i32_0 = arith.constant 0 : i32
    %c0_i32_1 = arith.constant 0 : i32
    return %c0_i32, %c0_i32_0 : i32, i32
  }
  func.func @transform_7(%arg0: i32) -> (i32, i32) {
    %c0_i32 = arith.constant 0 : i32
    %c0_i32_0 = arith.constant 0 : i32
    %c0_i32_1 = arith.constant 0 : i32
    return %c0_i32, %c0_i32_0 : i32, i32
  }
}

</mosaic_0001>

<llo_original>
// kernel: baseline_mlp_forward.1
$region0: #{baseline_mlp_forward.1}
  #allocation0 [shape = 'u32[]', space=smem, size = 0x4, offset = 0x4, fixed_abs, tag = 'smem constant byte address 0x4 - core index']
  #allocation1 [shape = 'u32[144,128]{1,0:T(1,128)}', space=vmem, size = 0x12000, scoped, tag = 'internal scratch']
  #allocation2 [shape = 'f32[2,512]{1,0:T(2,128)}', space=vmem, size = 0x1000, scoped, tag = 'scratch operand']
  %s0 = inlined_call_operand.vmem [shape: bf16[2,1024], index: 0, kind: input, shape index: {}]
  %s1 = inlined_call_operand.hbm [shape: bf16[1024,4096], index: 1, kind: input, shape index: {}]
  %s2 = inlined_call_operand.hbm [shape: f32[4,1024], index: 2, kind: input, shape index: {}]
  %s3 = inlined_call_operand.hbm [shape: bf16[4096,512], index: 3, kind: input, shape index: {}]
  %s4 = inlined_call_operand.hbm [shape: f32[1,512], index: 4, kind: input, shape index: {}]
  %s5 = inlined_call_operand.hbm [shape: bf16[512,128], index: 5, kind: input, shape index: {}]
  %s6 = inlined_call_operand.hbm [shape: f32[1,128], index: 6, kind: input, shape index: {}]
  %s7 = inlined_call_operand.hbm [shape: f32[2,128], index: 7, kind: output, shape index: {}]
  %s8 = sld [smem:[#allocation0]]
  $region93: #{baseline_mlp_forward.1} parent=0
    _
  %s10 = ssub.s32 1, %s8
  %s11 = scalar_select 0, %s10, %s8
  $region1: #{baseline_mlp_forward.1} parent=0
    #allocation3 [shape = 'u8[4194304]{0}', space=vmem, size = 0x400000, scoped, tag = 'input window, operand 1']
    #allocation4 [shape = 's32[2]{0}', space=sflag, size = 0x8, scoped, tag = 'scoped memory for baseline_mlp_forward.1']
    #allocation5 [shape = 's32[2]{0}', space=sflag, size = 0x8, scoped, tag = 'scoped memory for baseline_mlp_forward.1']
    #allocation6 [shape = 'u8[16384]{0}', space=vmem, size = 0x4000, scoped, tag = 'input window, operand 2, single buffered']
    #allocation7 [shape = 's32[1]{0}', space=sflag, size = 0x4, scoped, tag = 'scoped memory for baseline_mlp_forward.1']
    #allocation8 [shape = 'u8[2097152]{0}', space=vmem, size = 0x200000, scoped, tag = 'input window, operand 3']
    #allocation9 [shape = 'u8[2048]{0}', space=vmem, size = 0x800, scoped, tag = 'input window, operand 4, single buffered']
    #allocation10 [shape = 'u8[131072]{0}', space=vmem, size = 0x20000, scoped, tag = 'input window, operand 5, single buffered']
    #allocation11 [shape = 's32[1]{0}', space=sflag, size = 0x4, scoped, tag = 'scoped memory for baseline_mlp_forward.1']
    #allocation12 [shape = 'u8[512]{0}', space=vmem, size = 0x400, scoped, tag = 'input window, operand 6, single buffered']
    #allocation13 [shape = 'u8[1024]{0}', space=vmem, size = 0x400, scoped, tag = 'output window, operand 0, single buffered']
    %12 = vsyncpa [#allocation4], 0
    %s13 = scalar_lea.sflag [#allocation4], 1
    %14 = vsyncpa %s13, 0
    %15 = vsyncpa [#allocation7], 0
    %16 = vsyncpa [#allocation11], 0
    %17 = vsyncpa [#allocation5], 0
    loop: start=0, step=1, limit=6
    $region2: #{baseline_mlp_forward.1} parent=1 // loop_pre_header
      _
    $region3: #{baseline_mlp_forward.1} parent=1 // loop_header
      %s19 = sphi 0, %s23
      %p20 = scmp.ge.s32.totalorder %s19, 6
      %s27 = sphi 0, %s27
      %s29 = sphi 0, %s27
      %s30 = sphi 0, %s29
      %s44 = sphi 0, %s30
      %s50 = sphi 0, %s52
      %s53 = sphi 0, %s50
      %s54 = sphi 0, %s53
      %s70 = sphi 0, %s54
      %s74 = sphi 0, %s74
      %s76 = sphi 0, %s74
      %s77 = sphi 0, %s76
      %s91 = sphi 0, %s77
      %s97 = sphi 0, %s99
      %s100 = sphi 0, %s97
      %s101 = sphi 0, %s100
      %s117 = sphi 0, %s101
      %s121 = sphi 0, %s121
      %s123 = sphi 0, %s121
      %s124 = sphi 0, %s123
      %s138 = sphi 0, %s124
      %s142 = sphi 0, %s142
      %s144 = sphi 0, %s142
      %s145 = sphi 0, %s144
      %s159 = sphi 0, %s145
      %s163 = sphi 0, %s163
      %s165 = sphi 0, %s163
      %s166 = sphi 0, %s165
      %s180 = sphi 0, %s166
      %s184 = sphi 0, %s184
      %s186 = sphi 0, %s184
      %s187 = sphi 0, %s186
      %s201 = sphi 0, %s187
    $region4: #{baseline_mlp_forward.1} parent=1 // loop_header_branch
      %22 = sbr.rel (%p20) target = $region8
    $region5: #{baseline_mlp_forward.1} parent=1 // loop_body
      %s24 = ssub.s32 %s19, 1
      %s25 = ssub.s32 %s19, 2
      %s26 = sadd.s32 %s19, 1
      %s28 = sadd.s32 %s27, 1
      %p31 = scmp.eq.s32.totalorder %s19, 3
      %p32 = scmp.ne.s32.totalorder %s27, %s29
      %p33 = scmp.eq.s32.totalorder %s19, 0
      %p34 = por %p32, %p33
      %p35 = scmp.ne.s32.totalorder %s27, %s29
      %p36 = scmp.eq.s32.totalorder %s24, 3
      %p37 = por %p35, %p36
      %p38 = scmp.ne.s32.totalorder %s29, %s30
      %p39 = scmp.eq.s32.totalorder %s24, 0
      %p40 = por %p38, %p39
      %p41 = scmp.ne.s32.totalorder %s29, %s30
      %p42 = scmp.eq.s32.totalorder %s25, 3
      %p43 = por %p41, %p42
      %p45 = scmp.ne.s32.totalorder %s30, %s44
      %p46 = scmp.eq.s32.totalorder %s25, 0
      %p47 = por %p45, %p46
      %s48 = ssub.s32 %s19, %s26
      %p49 = scmp.eq.s32.totalorder %s48, 0
      %s51 = sadd.s32 %s50, 1
      %s52 = scalar_select %p49, %s50, %s51
      %p55 = pneg %p49
      %p56 = scmp.eq.s32.totalorder %s19, 3
      %p57 = por %p55, %p56
      %p58 = scmp.ne.s32.totalorder %s50, %s53
      %p59 = scmp.eq.s32.totalorder %s19, 0
      %p60 = por %p58, %p59
      %p61 = scmp.ne.s32.totalorder %s50, %s53
      %p62 = scmp.eq.s32.totalorder %s24, 3
      %p63 = por %p61, %p62
      %p64 = scmp.ne.s32.totalorder %s53, %s54
      %p65 = scmp.eq.s32.totalorder %s24, 0
      %p66 = por %p64, %p65
      %p67 = scmp.ne.s32.totalorder %s53, %s54
      %p68 = scmp.eq.s32.totalorder %s25, 3
      %p69 = por %p67, %p68
      %p71 = scmp.ne.s32.totalorder %s54, %s70
      %p72 = scmp.eq.s32.totalorder %s25, 0
      %p73 = por %p71, %p72
      %s75 = sadd.s32 %s74, 1
      %p78 = scmp.eq.s32.totalorder %s19, 3
      %p79 = scmp.ne.s32.totalorder %s74, %s76
      %p80 = scmp.eq.s32.totalorder %s19, 0
      %p81 = por %p79, %p80
      %p82 = scmp.ne.s32.totalorder %s74, %s76
      %p83 = scmp.eq.s32.totalorder %s24, 3
      %p84 = por %p82, %p83
      %p85 = scmp.ne.s32.totalorder %s76, %s77
      %p86 = scmp.eq.s32.totalorder %s24, 0
      %p87 = por %p85, %p86
      %p88 = scmp.ne.s32.totalorder %s76, %s77
      %p89 = scmp.eq.s32.totalorder %s25, 3
      %p90 = por %p88, %p89
      %p92 = scmp.ne.s32.totalorder %s77, %s91
      %p93 = scmp.eq.s32.totalorder %s25, 0
      %p94 = por %p92, %p93
      %s95 = ssub.s32 %s19, %s26
      %p96 = scmp.eq.s32.totalorder %s95, 0
      %s98 = sadd.s32 %s97, 1
      %s99 = scalar_select %p96, %s97, %s98
      %p102 = pneg %p96
      %p103 = scmp.eq.s32.totalorder %s19, 3
      %p104 = por %p102, %p103
      %p105 = scmp.ne.s32.totalorder %s97, %s100
      %p106 = scmp.eq.s32.totalorder %s19, 0
      %p107 = por %p105, %p106
      %p108 = scmp.ne.s32.totalorder %s97, %s100
      %p109 = scmp.eq.s32.totalorder %s24, 3
      %p110 = por %p108, %p109
      %p111 = scmp.ne.s32.totalorder %s100, %s101
      %p112 = scmp.eq.s32.totalorder %s24, 0
      %p113 = por %p111, %p112
      %p114 = scmp.ne.s32.totalorder %s100, %s101
      %p115 = scmp.eq.s32.totalorder %s25, 3
      %p116 = por %p114, %p115
      %p118 = scmp.ne.s32.totalorder %s101, %s117
      %p119 = scmp.eq.s32.totalorder %s25, 0
      %p120 = por %p118, %p119
      %s122 = sadd.s32 %s121, 1
      %p125 = scmp.eq.s32.totalorder %s19, 3
      %p126 = scmp.ne.s32.totalorder %s121, %s123
      %p127 = scmp.eq.s32.totalorder %s19, 0
      %p128 = por %p126, %p127
      %p129 = scmp.ne.s32.totalorder %s121, %s123
      %p130 = scmp.eq.s32.totalorder %s24, 3
      %p131 = por %p129, %p130
      %p132 = scmp.ne.s32.totalorder %s123, %s124
      %p133 = scmp.eq.s32.totalorder %s24, 0
      %p134 = por %p132, %p133
      %p135 = scmp.ne.s32.totalorder %s123, %s124
      %p136 = scmp.eq.s32.totalorder %s25, 3
      %p137 = por %p135, %p136
      %p139 = scmp.ne.s32.totalorder %s124, %s138
      %p140 = scmp.eq.s32.totalorder %s25, 0
      %p141 = por %p139, %p140
      %s143 = sadd.s32 %s142, 1
      %p146 = scmp.eq.s32.totalorder %s19, 3
      %p147 = scmp.ne.s32.totalorder %s142, %s144
      %p148 = scmp.eq.s32.totalorder %s19, 0
      %p149 = por %p147, %p148
      %p150 = scmp.ne.s32.totalorder %s142, %s144
      %p151 = scmp.eq.s32.totalorder %s24, 3
      %p152 = por %p150, %p151
      %p153 = scmp.ne.s32.totalorder %s144, %s145
      %p154 = scmp.eq.s32.totalorder %s24, 0
      %p155 = por %p153, %p154
      %p156 = scmp.ne.s32.totalorder %s144, %s145
      %p157 = scmp.eq.s32.totalorder %s25, 3
      %p158 = por %p156, %p157
      %p160 = scmp.ne.s32.totalorder %s145, %s159
      %p161 = scmp.eq.s32.totalorder %s25, 0
      %p162 = por %p160, %p161
      %s164 = sadd.s32 %s163, 1
      %p167 = scmp.eq.s32.totalorder %s19, 3
      %p168 = scmp.ne.s32.totalorder %s163, %s165
      %p169 = scmp.eq.s32.totalorder %s19, 0
      %p170 = por %p168, %p169
      %p171 = scmp.ne.s32.totalorder %s163, %s165
      %p172 = scmp.eq.s32.totalorder %s24, 3
      %p173 = por %p171, %p172
      %p174 = scmp.ne.s32.totalorder %s165, %s166
      %p175 = scmp.eq.s32.totalorder %s24, 0
      %p176 = por %p174, %p175
      %p177 = scmp.ne.s32.totalorder %s165, %s166
      %p178 = scmp.eq.s32.totalorder %s25, 3
      %p179 = por %p177, %p178
      %p181 = scmp.ne.s32.totalorder %s166, %s180
      %p182 = scmp.eq.s32.totalorder %s25, 0
      %p183 = por %p181, %p182
      %s185 = sadd.s32 %s184, 1
      %p188 = scmp.eq.s32.totalorder %s19, 3
      %p189 = scmp.ne.s32.totalorder %s184, %s186
      %p190 = scmp.eq.s32.totalorder %s19, 0
      %p191 = por %p189, %p190
      %p192 = scmp.ne.s32.totalorder %s184, %s186
      %p193 = scmp.eq.s32.totalorder %s24, 3
      %p194 = por %p192, %p193
      %p195 = scmp.ne.s32.totalorder %s186, %s187
      %p196 = scmp.eq.s32.totalorder %s24, 0
      %p197 = por %p195, %p196
      %p198 = scmp.ne.s32.totalorder %s186, %s187
      %p199 = scmp.eq.s32.totalorder %s25, 3
      %p200 = por %p198, %p199
      %p202 = scmp.ne.s32.totalorder %s187, %s201
      %p203 = scmp.eq.s32.totalorder %s25, 0
      %p204 = por %p202, %p203
      %p205 = scmp.le.s32.totalorder 1, %s19
      %p206 = scmp.lt.s32.totalorder %s19, 5
      %p207 = pnand %p205, %p206
      %p208 = pneg %p207
      // Predicated region
      $region9: #{baseline_mlp_forward.1} parent=5 // pred_check
        _
      $region10: #{baseline_mlp_forward.1} parent=5 // pred_check_branch
        %210 = sbr.rel (%p207) target = $region12
      $region11: #{baseline_mlp_forward.1} parent=5 // pred_region
        %s211 = ssub.s32 %s19, 1
        // Predicated region
        $region13: #{baseline_mlp_forward.1} parent=11 // pred_check
          %p212 = pneg %p40
        $region14: #{baseline_mlp_forward.1} parent=11 // pred_check_branch
          %214 = sbr.rel (%p212) target = $region16
        $region15: #{baseline_mlp_forward.1} parent=11 // pred_region
          _
        $region16: #{baseline_mlp_forward.1} parent=11 // pred_fallthru
          _
        // Predicated region
        $region17: #{baseline_mlp_forward.1} parent=11 // pred_check
          %p215 = pneg %p87
        $region18: #{baseline_mlp_forward.1} parent=11 // pred_check_branch
          %217 = sbr.rel (%p215) target = $region20
        $region19: #{baseline_mlp_forward.1} parent=11 // pred_region
          %s219 = ssub.s32 512, 512
          %220 = vsyncadd [#allocation7], %s219
          %s222 = sshll.u32 [#allocation6], 4
          %s223 = int_to_ptr.vmem [resolvable:$true] %s222
          %225 = dma.hbm_to_vmem [thread:$0]  %s2, 512, %s223, [#allocation7]
        $region20: #{baseline_mlp_forward.1} parent=11 // pred_fallthru
          _
        // Predicated region
        $region21: #{baseline_mlp_forward.1} parent=11 // pred_check
          %p226 = pneg %p134
        $region22: #{baseline_mlp_forward.1} parent=11 // pred_check_branch
          %228 = sbr.rel (%p226) target = $region24
        $region23: #{baseline_mlp_forward.1} parent=11 // pred_region
          %s230 = ssub.s32 64, 64
          %231 = vsyncadd [#allocation7], %s230
          %s233 = sshll.u32 [#allocation9], 4
          %s234 = int_to_ptr.vmem [resolvable:$true] %s233
          %236 = dma.hbm_to_vmem [thread:$0]  %s4, 64, %s234, [#allocation7]
        $region24: #{baseline_mlp_forward.1} parent=11 // pred_fallthru
          _
        // Predicated region
        $region25: #{baseline_mlp_forward.1} parent=11 // pred_check
          %p237 = pneg %p155
        $region26: #{baseline_mlp_forward.1} parent=11 // pred_check_branch
          %239 = sbr.rel (%p237) target = $region28
        $region27: #{baseline_mlp_forward.1} parent=11 // pred_region
          %s241 = ssub.s32 4096, 4096
          %242 = vsyncadd [#allocation11], %s241
          %s243 = sshll.u32 [#allocation10], 4
          %s244 = int_to_ptr.vmem [resolvable:$true] %s243
          %249 = dma.hbm_to_vmem [thread:$0]  %s5, 4096, %s244, [#allocation11], 64, 64, 4
        $region28: #{baseline_mlp_forward.1} parent=11 // pred_fallthru
          _
        // Predicated region
        $region29: #{baseline_mlp_forward.1} parent=11 // pred_check
          %p250 = pneg %p176
        $region30: #{baseline_mlp_forward.1} parent=11 // pred_check_branch
          %252 = sbr.rel (%p250) target = $region32
        $region31: #{baseline_mlp_forward.1} parent=11 // pred_region
          %s254 = ssub.s32 16, 16
          %255 = vsyncadd [#allocation11], %s254
          %s257 = sshll.u32 [#allocation12], 4
          %s258 = int_to_ptr.vmem [resolvable:$true] %s257
          %260 = dma.hbm_to_vmem [thread:$0]  %s6, 16, %s258, [#allocation11]
        $region32: #{baseline_mlp_forward.1} parent=11 // pred_fallthru
          _
      $region12: #{baseline_mlp_forward.1} parent=5 // pred_fallthru
        _
      %p261 = scmp.lt.s32.totalorder %s19, 4
      // Predicated region
      $region33: #{baseline_mlp_forward.1} parent=5 // pred_check
        %p262 = pneg %p261
      $region34: #{baseline_mlp_forward.1} parent=5 // pred_check_branch
        %264 = sbr.rel (%p262) target = $region36
      $region35: #{baseline_mlp_forward.1} parent=5 // pred_region
        // Predicated region
        $region37: #{baseline_mlp_forward.1} parent=35 // pred_check
          %p265 = pneg %p60
        $region38: #{baseline_mlp_forward.1} parent=35 // pred_check_branch
          %267 = sbr.rel (%p265) target = $region40
        $region39: #{baseline_mlp_forward.1} parent=35 // pred_region
          %s268 = sand.u32 %s19, 1
          %s269 = scalar_lea.sflag [#allocation4], %s268
          %s270 = sand.u32 %s50, 1
          %s271 = smul.addr %s270, 4096
          %s272 = scalar_lea.vmem [#allocation3], %s271
          %s273 = smul.u32 8, %s19
          %s275 = ssub.s32 65536, 65536
          %276 = vsyncadd %s269, %s275
          %s277 = smul.addr %s273, 64
          %s278 = scalar_lea.hbm %s1, %s277
          %s279 = sshll.u32 %s272, 4
          %s280 = int_to_ptr.vmem [resolvable:$true] %s279
          %285 = dma.hbm_to_vmem [thread:$0]  %s278, 65536, %s280, %s269, 2048, 512, 32
        $region40: #{baseline_mlp_forward.1} parent=35 // pred_fallthru
          _
        // Predicated region
        $region41: #{baseline_mlp_forward.1} parent=35 // pred_check
          %p286 = pneg %p107
        $region42: #{baseline_mlp_forward.1} parent=35 // pred_check_branch
          %288 = sbr.rel (%p286) target = $region44
        $region43: #{baseline_mlp_forward.1} parent=35 // pred_region
          %s289 = sand.u32 %s19, 1
          %s290 = scalar_lea.sflag [#allocation4], %s289
          %s291 = sand.u32 %s97, 1
          %s292 = smul.addr %s291, 2048
          %s293 = scalar_lea.vmem [#allocation8], %s292
          %s294 = smul.u32 128, %s19
          %s296 = ssub.s32 32768, 32768
          %297 = vsyncadd %s290, %s296
          %s298 = smul.addr %s294, 4
          %s299 = smul.addr %s298, 64
          %s300 = scalar_lea.hbm %s3, %s299
          %s301 = sshll.u32 %s293, 4
          %s302 = int_to_ptr.vmem [resolvable:$true] %s301
          %307 = dma.hbm_to_vmem [thread:$0]  %s300, 32768, %s302, %s290, 256, 256, 16
        $region44: #{baseline_mlp_forward.1} parent=35 // pred_fallthru
          _
      $region36: #{baseline_mlp_forward.1} parent=5 // pred_fallthru
        _
      %p308 = scmp.le.s32.totalorder 1, %s19
      %p309 = scmp.lt.s32.totalorder %s19, 5
      %p310 = pnand %p308, %p309
      %p311 = pneg %p310
      // Predicated region
      $region45: #{baseline_mlp_forward.1} parent=5 // pred_check
        _
      $region46: #{baseline_mlp_forward.1} parent=5 // pred_check_branch
        %313 = sbr.rel (%p310) target = $region48
      $region47: #{baseline_mlp_forward.1} parent=5 // pred_region
        %s314 = ssub.s32 %s19, 1
        %s315 = sand.u32 %s24, 1
        %s316 = scalar_lea.sflag [#allocation4], %s315
        %s317 = sand.u32 %s53, 1
        %s318 = smul.addr %s317, 4096
        %s319 = scalar_lea.vmem [#allocation3], %s318
        // Predicated region
        $region49: #{baseline_mlp_forward.1} parent=47 // pred_check
          %p320 = pneg %p66
        $region50: #{baseline_mlp_forward.1} parent=47 // pred_check_branch
          %322 = sbr.rel (%p320) target = $region52
        $region51: #{baseline_mlp_forward.1} parent=47 // pred_region
          %323 = dma.done %s316, 65536
        $region52: #{baseline_mlp_forward.1} parent=47 // pred_fallthru
          _
        // Predicated region
        $region53: #{baseline_mlp_forward.1} parent=47 // pred_check
          %p324 = pneg %p87
        $region54: #{baseline_mlp_forward.1} parent=47 // pred_check_branch
          %326 = sbr.rel (%p324) target = $region56
        $region55: #{baseline_mlp_forward.1} parent=47 // pred_region
          %327 = dma.done [#allocation7], 512
        $region56: #{baseline_mlp_forward.1} parent=47 // pred_fallthru
          _
        %s328 = sand.u32 %s24, 1
        %s329 = scalar_lea.sflag [#allocation4], %s328
        %s330 = sand.u32 %s100, 1
        %s331 = smul.addr %s330, 2048
        %s332 = scalar_lea.vmem [#allocation8], %s331
        // Predicated region
        $region57: #{baseline_mlp_forward.1} parent=47 // pred_check
          %p333 = pneg %p113
        $region58: #{baseline_mlp_forward.1} parent=47 // pred_check_branch
          %335 = sbr.rel (%p333) target = $region60
        $region59: #{baseline_mlp_forward.1} parent=47 // pred_region
          %336 = dma.done %s329, 32768
        $region60: #{baseline_mlp_forward.1} parent=47 // pred_fallthru
          _
        // Predicated region
        $region61: #{baseline_mlp_forward.1} parent=47 // pred_check
          %p337 = pneg %p134
        $region62: #{baseline_mlp_forward.1} parent=47 // pred_check_branch
          %339 = sbr.rel (%p337) target = $region64
        $region63: #{baseline_mlp_forward.1} parent=47 // pred_region
          %340 = dma.done [#allocation7], 64
        $region64: #{baseline_mlp_forward.1} parent=47 // pred_fallthru
          _
        // Predicated region
        $region65: #{baseline_mlp_forward.1} parent=47 // pred_check
          %p341 = pneg %p155
        $region66: #{baseline_mlp_forward.1} parent=47 // pred_check_branch
          %343 = sbr.rel (%p341) target = $region68
        $region67: #{baseline_mlp_forward.1} parent=47 // pred_region
          %344 = dma.done [#allocation11], 4096
        $region68: #{baseline_mlp_forward.1} parent=47 // pred_fallthru
          _
        // Predicated region
        $region69: #{baseline_mlp_forward.1} parent=47 // pred_check
          %p345 = pneg %p176
        $region70: #{baseline_mlp_forward.1} parent=47 // pred_check_branch
          %347 = sbr.rel (%p345) target = $region72
        $region71: #{baseline_mlp_forward.1} parent=47 // pred_region
          %348 = dma.done [#allocation11], 16
        $region72: #{baseline_mlp_forward.1} parent=47 // pred_fallthru
          _
        %p349 = pneg %p40
        %p350 = pneg %p37
        %s351 = sand.u32 %s24, 1
        %s352 = scalar_lea.sflag [#allocation4], %s351
        %s353 = sand.u32 %s53, 1
        %s354 = smul.addr %s353, 4096
        %s355 = scalar_lea.vmem [#allocation3], %s354
        %p356 = pneg %p66
        %p357 = pneg %p63
        %p358 = pneg %p87
        %p359 = pneg %p84
        %s360 = sand.u32 %s24, 1
        %s361 = scalar_lea.sflag [#allocation4], %s360
        %s362 = sand.u32 %s100, 1
        %s363 = smul.addr %s362, 2048
        %s364 = scalar_lea.vmem [#allocation8], %s363
        %p365 = pneg %p113
        %p366 = pneg %p110
        %p367 = pneg %p134
        %p368 = pneg %p131
        %p369 = pneg %p155
        %p370 = pneg %p152
        %p371 = pneg %p176
        %p372 = pneg %p173
        %p373 = pneg %p197
        %p374 = pneg %p194
        %s375 = smul.u32 8, %s24
        %s376 = smul.u32 128, %s24
        %p378 = scmp.eq.s32.totalorder %s24, 0
        // Predicated region
        $region73: #{baseline_mlp_forward.1} parent=47 // pred_check
          %p379 = pneg %p378
        $region74: #{baseline_mlp_forward.1} parent=47 // pred_check_branch
          %381 = sbr.rel (%p379) target = $region76
        $region75: #{baseline_mlp_forward.1} parent=47 // pred_region
          %382 = vst [vmem:[#allocation2] sm:$0xff] 0.0
        $region76: #{baseline_mlp_forward.1} parent=47 // pred_fallthru
          _
        %v383 = vld [vmem:[%s0] sm:$0xff]
        %v384 = vld [vmem:[%s319] sm:$0xff]
        %v385 = vld [vmem:[%s319 + $0x8] sm:$0xff]
        %v386 = vld [vmem:[%s319 + $0x10] sm:$0xff]
        %v387 = vld [vmem:[%s319 + $0x18] sm:$0xff]
        %v388 = vld [vmem:[%s319 + $0x20] sm:$0xff]
        %v389 = vld [vmem:[%s319 + $0x28] sm:$0xff]
        %v390 = vld [vmem:[%s319 + $0x30] sm:$0xff]
        %v391 = vld [vmem:[%s319 + $0x38] sm:$0xff]
        %v392 = vld [vmem:[%s319 + $0x40] sm:$0xff]
        %v393 = vld [vmem:[%s319 + $0x48] sm:$0xff]
        %v394 = vld [vmem:[%s319 + $0x50] sm:$0xff]
        %v395 = vld [vmem:[%s319 + $0x58] sm:$0xff]
        %v396 = vld [vmem:[%s319 + $0x60] sm:$0xff]
        %v397 = vld [vmem:[%s319 + $0x68] sm:$0xff]
        %v398 = vld [vmem:[%s319 + $0x70] sm:$0xff]
        %v399 = vld [vmem:[%s319 + $0x78] sm:$0xff]
        %v400 = vld [vmem:[%s319 + $0x80] sm:$0xff]
        %v401 = vld [vmem:[%s319 + $0x88] sm:$0xff]
        %v402 = vld [vmem:[%s319 + $0x90] sm:$0xff]
        %v403 = vld [vmem:[%s319 + $0x98] sm:$0xff]
        %v404 = vld [vmem:[%s319 + $0xa0] sm:$0xff]
        %v405 = vld [vmem:[%s319 + $0xa8] sm:$0xff]
        %v406 = vld [vmem:[%s319 + $0xb0] sm:$0xff]
        %v407 = vld [vmem:[%s319 + $0xb8] sm:$0xff]
        %v408 = vld [vmem:[%s319 + $0xc0] sm:$0xff]
        %v409 = vld [vmem:[%s319 + $0xc8] sm:$0xff]
        %v410 = vld [vmem:[%s319 + $0xd0] sm:$0xff]
        %v411 = vld [vmem:[%s319 + $0xd8] sm:$0xff]
        %v412 = vld [vmem:[%s319 + $0xe0] sm:$0xff]
        %v413 = vld [vmem:[%s319 + $0xe8] sm:$0xff]
        %v414 = vld [vmem:[%s319 + $0xf0] sm:$0xff]
        %v415 = vld [vmem:[%s319 + $0xf8] sm:$0xff]
        %v416 = vld [vmem:[%s319 + $0x100] sm:$0xff]
        %v417 = vld [vmem:[%s319 + $0x108] sm:$0xff]
        %v418 = vld [vmem:[%s319 + $0x110] sm:$0xff]
        %v419 = vld [vmem:[%s319 + $0x118] sm:$0xff]
        %v420 = vld [vmem:[%s319 + $0x120] sm:$0xff]
        %v421 = vld [vmem:[%s319 + $0x128] sm:$0xff]
        %v422 = vld [vmem:[%s319 + $0x130] sm:$0xff]
        %v423 = vld [vmem:[%s319 + $0x138] sm:$0xff]
        %v424 = vld [vmem:[%s319 + $0x140] sm:$0xff]
        %v425 = vld [vmem:[%s319 + $0x148] sm:$0xff]
        %v426 = vld [vmem:[%s319 + $0x150] sm:$0xff]
        %v427 = vld [vmem:[%s319 + $0x158] sm:$0xff]
        %v428 = vld [vmem:[%s319 + $0x160] sm:$0xff]
        %v429 = vld [vmem:[%s319 + $0x168] sm:$0xff]
        %v430 = vld [vmem:[%s319 + $0x170] sm:$0xff]
        %v431 = vld [vmem:[%s319 + $0x178] sm:$0xff]
        %v432 = vld [vmem:[%s319 + $0x180] sm:$0xff]
        %v433 = vld [vmem:[%s319 + $0x188] sm:$0xff]
        %v434 = vld [vmem:[%s319 + $0x190] sm:$0xff]
        %v435 = vld [vmem:[%s319 + $0x198] sm:$0xff]
        %v436 = vld [vmem:[%s319 + $0x1a0] sm:$0xff]
        %v437 = vld [vmem:[%s319 + $0x1a8] sm:$0xff]
        %v438 = vld [vmem:[%s319 + $0x1b0] sm:$0xff]
        %v439 = vld [vmem:[%s319 + $0x1b8] sm:$0xff]
        %v440 = vld [vmem:[%s319 + $0x1c0] sm:$0xff]
        %v441 = vld [vmem:[%s319 + $0x1c8] sm:$0xff]
        %v442 = vld [vmem:[%s319 + $0x1d0] sm:$0xff]
        %v443 = vld [vmem:[%s319 + $0x1d8] sm:$0xff]
        %v444 = vld [vmem:[%s319 + $0x1e0] sm:$0xff]
        %v445 = vld [vmem:[%s319 + $0x1e8] sm:$0xff]
        %v446 = vld [vmem:[%s319 + $0x1f0] sm:$0xff]
        %v447 = vld [vmem:[%s319 + $0x1f8] sm:$0xff]
        %v448 = vld [vmem:[%s319 + $0x200] sm:$0xff]
        %v449 = vld [vmem:[%s319 + $0x208] sm:$0xff]
        %v450 = vld [vmem:[%s319 + $0x210] sm:$0xff]
        %v451 = vld [vmem:[%s319 + $0x218] sm:$0xff]
        %v452 = vld [vmem:[%s319 + $0x220] sm:$0xff]
        %v453 = vld [vmem:[%s319 + $0x228] sm:$0xff]
        %v454 = vld [vmem:[%s319 + $0x230] sm:$0xff]
        %v455 = vld [vmem:[%s319 + $0x238] sm:$0xff]
        %v456 = vld [vmem:[%s319 + $0x240] sm:$0xff]
        %v457 = vld [vmem:[%s319 + $0x248] sm:$0xff]
        %v458 = vld [vmem:[%s319 + $0x250] sm:$0xff]
        %v459 = vld [vmem:[%s319 + $0x258] sm:$0xff]
        %v460 = vld [vmem:[%s319 + $0x260] sm:$0xff]
        %v461 = vld [vmem:[%s319 + $0x268] sm:$0xff]
        %v462 = vld [vmem:[%s319 + $0x270] sm:$0xff]
        %v463 = vld [vmem:[%s319 + $0x278] sm:$0xff]
        %v464 = vld [vmem:[%s319 + $0x280] sm:$0xff]
        %v465 = vld [vmem:[%s319 + $0x288] sm:$0xff]
        %v466 = vld [vmem:[%s319 + $0x290] sm:$0xff]
        %v467 = vld [vmem:[%s319 + $0x298] sm:$0xff]
        %v468 = vld [vmem:[%s319 + $0x2a0] sm:$0xff]
        %v469 = vld [vmem:[%s319 + $0x2a8] sm:$0xff]
        %v470 = vld [vmem:[%s319 + $0x2b0] sm:$0xff]
        %v471 = vld [vmem:[%s319 + $0x2b8] sm:$0xff]
        %v472 = vld [vmem:[%s319 + $0x2c0] sm:$0xff]
        %v473 = vld [vmem:[%s319 + $0x2c8] sm:$0xff]
        %v474 = vld [vmem:[%s319 + $0x2d0] sm:$0xff]
        %v475 = vld [vmem:[%s319 + $0x2d8] sm:$0xff]
        %v476 = vld [vmem:[%s319 + $0x2e0] sm:$0xff]
        %v477 = vld [vmem:[%s319 + $0x2e8] sm:$0xff]
        %v478 = vld [vmem:[%s319 + $0x2f0] sm:$0xff]
        %v479 = vld [vmem:[%s319 + $0x2f8] sm:$0xff]
        %v480 = vld [vmem:[%s319 + $0x300] sm:$0xff]
        %v481 = vld [vmem:[%s319 + $0x308] sm:$0xff]
        %v482 = vld [vmem:[%s319 + $0x310] sm:$0xff]
        %v483 = vld [vmem:[%s319 + $0x318] sm:$0xff]
        %v484 = vld [vmem:[%s319 + $0x320] sm:$0xff]
        %v485 = vld [vmem:[%s319 + $0x328] sm:$0xff]
        %v486 = vld [vmem:[%s319 + $0x330] sm:$0xff]
        %v487 = vld [vmem:[%s319 + $0x338] sm:$0xff]
        %v488 = vld [vmem:[%s319 + $0x340] sm:$0xff]
        %v489 = vld [vmem:[%s319 + $0x348] sm:$0xff]
        %v490 = vld [vmem:[%s319 + $0x350] sm:$0xff]
        %v491 = vld [vmem:[%s319 + $0x358] sm:$0xff]
        %v492 = vld [vmem:[%s319 + $0x360] sm:$0xff]
        %v493 = vld [vmem:[%s319 + $0x368] sm:$0xff]
        %v494 = vld [vmem:[%s319 + $0x370] sm:$0xff]
        %v495 = vld [vmem:[%s319 + $0x378] sm:$0xff]
        %v496 = vld [vmem:[%s319 + $0x380] sm:$0xff]
        %v497 = vld [vmem:[%s319 + $0x388] sm:$0xff]
        %v498 = vld [vmem:[%s319 + $0x390] sm:$0xff]
        %v499 = vld [vmem:[%s319 + $0x398] sm:$0xff]
        %v500 = vld [vmem:[%s319 + $0x3a0] sm:$0xff]
        %v501 = vld [vmem:[%s319 + $0x3a8] sm:$0xff]
        %v502 = vld [vmem:[%s319 + $0x3b0] sm:$0xff]
        %v503 = vld [vmem:[%s319 + $0x3b8] sm:$0xff]
        %v504 = vld [vmem:[%s319 + $0x3c0] sm:$0xff]
        %v505 = vld [vmem:[%s319 + $0x3c8] sm:$0xff]
        %v506 = vld [vmem:[%s319 + $0x3d0] sm:$0xff]
        %v507 = vld [vmem:[%s319 + $0x3d8] sm:$0xff]
        %v508 = vld [vmem:[%s319 + $0x3e0] sm:$0xff]
        %v509 = vld [vmem:[%s319 + $0x3e8] sm:$0xff]
        %v510 = vld [vmem:[%s319 + $0x3f0] sm:$0xff]
        %v511 = vld [vmem:[%s319 + $0x3f8] sm:$0xff]
        %v512 = vld [vmem:[%s319 + $0x400] sm:$0xff]
        %v513 = vld [vmem:[%s319 + $0x408] sm:$0xff]
        %v514 = vld [vmem:[%s319 + $0x410] sm:$0xff]
        %v515 = vld [vmem:[%s319 + $0x418] sm:$0xff]
        %v516 = vld [vmem:[%s319 + $0x420] sm:$0xff]
        %v517 = vld [vmem:[%s319 + $0x428] sm:$0xff]
        %v518 = vld [vmem:[%s319 + $0x430] sm:$0xff]
        %v519 = vld [vmem:[%s319 + $0x438] sm:$0xff]
        %v520 = vld [vmem:[%s319 + $0x440] sm:$0xff]
        %v521 = vld [vmem:[%s319 + $0x448] sm:$0xff]
        %v522 = vld [vmem:[%s319 + $0x450] sm:$0xff]
        %v523 = vld [vmem:[%s319 + $0x458] sm:$0xff]
        %v524 = vld [vmem:[%s319 + $0x460] sm:$0xff]
        %v525 = vld [vmem:[%s319 + $0x468] sm:$0xff]
        %v526 = vld [vmem:[%s319 + $0x470] sm:$0xff]
        %v527 = vld [vmem:[%s319 + $0x478] sm:$0xff]
        %v528 = vld [vmem:[%s319 + $0x480] sm:$0xff]
        %v529 = vld [vmem:[%s319 + $0x488] sm:$0xff]
        %v530 = vld [vmem:[%s319 + $0x490] sm:$0xff]
        %v531 = vld [vmem:[%s319 + $0x498] sm:$0xff]
        %v532 = vld [vmem:[%s319 + $0x4a0] sm:$0xff]
        %v533 = vld [vmem:[%s319 + $0x4a8] sm:$0xff]
        %v534 = vld [vmem:[%s319 + $0x4b0] sm:$0xff]
        %v535 = vld [vmem:[%s319 + $0x4b8] sm:$0xff]
        %v536 = vld [vmem:[%s319 + $0x4c0] sm:$0xff]
        %v537 = vld [vmem:[%s319 + $0x4c8] sm:$0xff]
        %v538 = vld [vmem:[%s319 + $0x4d0] sm:$0xff]
        %v539 = vld [vmem:[%s319 + $0x4d8] sm:$0xff]
        %v540 = vld [vmem:[%s319 + $0x4e0] sm:$0xff]
        %v541 = vld [vmem:[%s319 + $0x4e8] sm:$0xff]
        %v542 = vld [vmem:[%s319 + $0x4f0] sm:$0xff]
        %v543 = vld [vmem:[%s319 + $0x4f8] sm:$0xff]
        %v544 = vld [vmem:[%s319 + $0x500] sm:$0xff]
        %v545 = vld [vmem:[%s319 + $0x508] sm:$0xff]
        %v546 = vld [vmem:[%s319 + $0x510] sm:$0xff]
        %v547 = vld [vmem:[%s319 + $0x518] sm:$0xff]
        %v548 = vld [vmem:[%s319 + $0x520] sm:$0xff]
        %v549 = vld [vmem:[%s319 + $0x528] sm:$0xff]
        %v550 = vld [vmem:[%s319 + $0x530] sm:$0xff]
        %v551 = vld [vmem:[%s319 + $0x538] sm:$0xff]
        %v552 = vld [vmem:[%s319 + $0x540] sm:$0xff]
        %v553 = vld [vmem:[%s319 + $0x548] sm:$0xff]
        %v554 = vld [vmem:[%s319 + $0x550] sm:$0xff]
        %v555 = vld [vmem:[%s319 + $0x558] sm:$0xff]
        %v556 = vld [vmem:[%s319 + $0x560] sm:$0xff]
        %v557 = vld [vmem:[%s319 + $0x568] sm:$0xff]
        %v558 = vld [vmem:[%s319 + $0x570] sm:$0xff]
        %v559 = vld [vmem:[%s319 + $0x578] sm:$0xff]
        %v560 = vld [vmem:[%s319 + $0x580] sm:$0xff]
        %v561 = vld [vmem:[%s319 + $0x588] sm:$0xff]
        %v562 = vld [vmem:[%s319 + $0x590] sm:$0xff]
        %v563 = vld [vmem:[%s319 + $0x598] sm:$0xff]
        %v564 = vld [vmem:[%s319 + $0x5a0] sm:$0xff]
        %v565 = vld [vmem:[%s319 + $0x5a8] sm:$0xff]
        %v566 = vld [vmem:[%s319 + $0x5b0] sm:$0xff]
        %v567 = vld [vmem:[%s319 + $0x5b8] sm:$0xff]
        %v568 = vld [vmem:[%s319 + $0x5c0] sm:$0xff]
        %v569 = vld [vmem:[%s319 + $0x5c8] sm:$0xff]
        %v570 = vld [vmem:[%s319 + $0x5d0] sm:$0xff]
        %v571 = vld [vmem:[%s319 + $0x5d8] sm:$0xff]
        %v572 = vld [vmem:[%s319 + $0x5e0] sm:$0xff]
        %v573 = vld [vmem:[%s319 + $0x5e8] sm:$0xff]
        %v574 = vld [vmem:[%s319 + $0x5f0] sm:$0xff]
        %v575 = vld [vmem:[%s319 + $0x5f8] sm:$0xff]
        %v576 = vld [vmem:[%s319 + $0x600] sm:$0xff]
        %v577 = vld [vmem:[%s319 + $0x608] sm:$0xff]
        %v578 = vld [vmem:[%s319 + $0x610] sm:$0xff]
        %v579 = vld [vmem:[%s319 + $0x618] sm:$0xff]
        %v580 = vld [vmem:[%s319 + $0x620] sm:$0xff]
        %v581 = vld [vmem:[%s319 + $0x628] sm:$0xff]
        %v582 = vld [vmem:[%s319 + $0x630] sm:$0xff]
        %v583 = vld [vmem:[%s319 + $0x638] sm:$0xff]
        %v584 = vld [vmem:[%s319 + $0x640] sm:$0xff]
        %v585 = vld [vmem:[%s319 + $0x648] sm:$0xff]
        %v586 = vld [vmem:[%s319 + $0x650] sm:$0xff]
        %v587 = vld [vmem:[%s319 + $0x658] sm:$0xff]
        %v588 = vld [vmem:[%s319 + $0x660] sm:$0xff]
        %v589 = vld [vmem:[%s319 + $0x668] sm:$0xff]
        %v590 = vld [vmem:[%s319 + $0x670] sm:$0xff]
        %v591 = vld [vmem:[%s319 + $0x678] sm:$0xff]
        %v592 = vld [vmem:[%s319 + $0x680] sm:$0xff]
        %v593 = vld [vmem:[%s319 + $0x688] sm:$0xff]
        %v594 = vld [vmem:[%s319 + $0x690] sm:$0xff]
        %v595 = vld [vmem:[%s319 + $0x698] sm:$0xff]
        %v596 = vld [vmem:[%s319 + $0x6a0] sm:$0xff]
        %v597 = vld [vmem:[%s319 + $0x6a8] sm:$0xff]
        %v598 = vld [vmem:[%s319 + $0x6b0] sm:$0xff]
        %v599 = vld [vmem:[%s319 + $0x6b8] sm:$0xff]
        %v600 = vld [vmem:[%s319 + $0x6c0] sm:$0xff]
        %v601 = vld [vmem:[%s319 + $0x6c8] sm:$0xff]
        %v602 = vld [vmem:[%s319 + $0x6d0] sm:$0xff]
        %v603 = vld [vmem:[%s319 + $0x6d8] sm:$0xff]
        %v604 = vld [vmem:[%s319 + $0x6e0] sm:$0xff]
        %v605 = vld [vmem:[%s319 + $0x6e8] sm:$0xff]
        %v606 = vld [vmem:[%s319 + $0x6f0] sm:$0xff]
        %v607 = vld [vmem:[%s319 + $0x6f8] sm:$0xff]
        %v608 = vld [vmem:[%s319 + $0x700] sm:$0xff]
        %v609 = vld [vmem:[%s319 + $0x708] sm:$0xff]
        %v610 = vld [vmem:[%s319 + $0x710] sm:$0xff]
        %v611 = vld [vmem:[%s319 + $0x718] sm:$0xff]
        %v612 = vld [vmem:[%s319 + $0x720] sm:$0xff]
        %v613 = vld [vmem:[%s319 + $0x728] sm:$0xff]
        %v614 = vld [vmem:[%s319 + $0x730] sm:$0xff]
        %v615 = vld [vmem:[%s319 + $0x738] sm:$0xff]
        %v616 = vld [vmem:[%s319 + $0x740] sm:$0xff]
        %v617 = vld [vmem:[%s319 + $0x748] sm:$0xff]
        %v618 = vld [vmem:[%s319 + $0x750] sm:$0xff]
        %v619 = vld [vmem:[%s319 + $0x758] sm:$0xff]
        %v620 = vld [vmem:[%s319 + $0x760] sm:$0xff]
        %v621 = vld [vmem:[%s319 + $0x768] sm:$0xff]
        %v622 = vld [vmem:[%s319 + $0x770] sm:$0xff]
        %v623 = vld [vmem:[%s319 + $0x778] sm:$0xff]
        %v624 = vld [vmem:[%s319 + $0x780] sm:$0xff]
        %v625 = vld [vmem:[%s319 + $0x788] sm:$0xff]
        %v626 = vld [vmem:[%s319 + $0x790] sm:$0xff]
        %v627 = vld [vmem:[%s319 + $0x798] sm:$0xff]
        %v628 = vld [vmem:[%s319 + $0x7a0] sm:$0xff]
        %v629 = vld [vmem:[%s319 + $0x7a8] sm:$0xff]
        %v630 = vld [vmem:[%s319 + $0x7b0] sm:$0xff]
        %v631 = vld [vmem:[%s319 + $0x7b8] sm:$0xff]
        %v632 = vld [vmem:[%s319 + $0x7c0] sm:$0xff]
        %v633 = vld [vmem:[%s319 + $0x7c8] sm:$0xff]
        %v634 = vld [vmem:[%s319 + $0x7d0] sm:$0xff]
        %v635 = vld [vmem:[%s319 + $0x7d8] sm:$0xff]
        %v636 = vld [vmem:[%s319 + $0x7e0] sm:$0xff]
        %v637 = vld [vmem:[%s319 + $0x7e8] sm:$0xff]
        %v638 = vld [vmem:[%s319 + $0x7f0] sm:$0xff]
        %v639 = vld [vmem:[%s319 + $0x7f8] sm:$0xff]
        %v640 = vld [vmem:[%s319 + $0x800] sm:$0xff]
        %v641 = vld [vmem:[%s319 + $0x808] sm:$0xff]
        %v642 = vld [vmem:[%s319 + $0x810] sm:$0xff]
        %v643 = vld [vmem:[%s319 + $0x818] sm:$0xff]
        %v644 = vld [vmem:[%s319 + $0x820] sm:$0xff]
        %v645 = vld [vmem:[%s319 + $0x828] sm:$0xff]
        %v646 = vld [vmem:[%s319 + $0x830] sm:$0xff]
        %v647 = vld [vmem:[%s319 + $0x838] sm:$0xff]
        %v648 = vld [vmem:[%s319 + $0x840] sm:$0xff]
        %v649 = vld [vmem:[%s319 + $0x848] sm:$0xff]
        %v650 = vld [vmem:[%s319 + $0x850] sm:$0xff]
        %v651 = vld [vmem:[%s319 + $0x858] sm:$0xff]
        %v652 = vld [vmem:[%s319 + $0x860] sm:$0xff]
        %v653 = vld [vmem:[%s319 + $0x868] sm:$0xff]
        %v654 = vld [vmem:[%s319 + $0x870] sm:$0xff]
        %v655 = vld [vmem:[%s319 + $0x878] sm:$0xff]
        %v656 = vld [vmem:[%s319 + $0x880] sm:$0xff]
        %v657 = vld [vmem:[%s319 + $0x888] sm:$0xff]
        %v658 = vld [vmem:[%s319 + $0x890] sm:$0xff]
        %v659 = vld [vmem:[%s319 + $0x898] sm:$0xff]
        %v660 = vld [vmem:[%s319 + $0x8a0] sm:$0xff]
        %v661 = vld [vmem:[%s319 + $0x8a8] sm:$0xff]
        %v662 = vld [vmem:[%s319 + $0x8b0] sm:$0xff]
        %v663 = vld [vmem:[%s319 + $0x8b8] sm:$0xff]
        %v664 = vld [vmem:[%s319 + $0x8c0] sm:$0xff]
        %v665 = vld [vmem:[%s319 + $0x8c8] sm:$0xff]
        %v666 = vld [vmem:[%s319 + $0x8d0] sm:$0xff]
        %v667 = vld [vmem:[%s319 + $0x8d8] sm:$0xff]
        %v668 = vld [vmem:[%s319 + $0x8e0] sm:$0xff]
        %v669 = vld [vmem:[%s319 + $0x8e8] sm:$0xff]
        %v670 = vld [vmem:[%s319 + $0x8f0] sm:$0xff]
        %v671 = vld [vmem:[%s319 + $0x8f8] sm:$0xff]
        %v672 = vld [vmem:[%s319 + $0x900] sm:$0xff]
        %v673 = vld [vmem:[%s319 + $0x908] sm:$0xff]
        %v674 = vld [vmem:[%s319 + $0x910] sm:$0xff]
        %v675 = vld [vmem:[%s319 + $0x918] sm:$0xff]
        %v676 = vld [vmem:[%s319 + $0x920] sm:$0xff]
        %v677 = vld [vmem:[%s319 + $0x928] sm:$0xff]
        %v678 = vld [vmem:[%s319 + $0x930] sm:$0xff]
        %v679 = vld [vmem:[%s319 + $0x938] sm:$0xff]
        %v680 = vld [vmem:[%s319 + $0x940] sm:$0xff]
        %v681 = vld [vmem:[%s319 + $0x948] sm:$0xff]
        %v682 = vld [vmem:[%s319 + $0x950] sm:$0xff]
        %v683 = vld [vmem:[%s319 + $0x958] sm:$0xff]
        %v684 = vld [vmem:[%s319 + $0x960] sm:$0xff]
        %v685 = vld [vmem:[%s319 + $0x968] sm:$0xff]
        %v686 = vld [vmem:[%s319 + $0x970] sm:$0xff]
        %v687 = vld [vmem:[%s319 + $0x978] sm:$0xff]
        %v688 = vld [vmem:[%s319 + $0x980] sm:$0xff]
        %v689 = vld [vmem:[%s319 + $0x988] sm:$0xff]
        %v690 = vld [vmem:[%s319 + $0x990] sm:$0xff]
        %v691 = vld [vmem:[%s319 + $0x998] sm:$0xff]
        %v692 = vld [vmem:[%s319 + $0x9a0] sm:$0xff]
        %v693 = vld [vmem:[%s319 + $0x9a8] sm:$0xff]
        %v694 = vld [vmem:[%s319 + $0x9b0] sm:$0xff]
        %v695 = vld [vmem:[%s319 + $0x9b8] sm:$0xff]
        %v696 = vld [vmem:[%s319 + $0x9c0] sm:$0xff]
        %v697 = vld [vmem:[%s319 + $0x9c8] sm:$0xff]
        %v698 = vld [vmem:[%s319 + $0x9d0] sm:$0xff]
        %v699 = vld [vmem:[%s319 + $0x9d8] sm:$0xff]
        %v700 = vld [vmem:[%s319 + $0x9e0] sm:$0xff]
        %v701 = vld [vmem:[%s319 + $0x9e8] sm:$0xff]
        %v702 = vld [vmem:[%s319 + $0x9f0] sm:$0xff]
        %v703 = vld [vmem:[%s319 + $0x9f8] sm:$0xff]
        %v704 = vld [vmem:[%s319 + $0xa00] sm:$0xff]
        %v705 = vld [vmem:[%s319 + $0xa08] sm:$0xff]
        %v706 = vld [vmem:[%s319 + $0xa10] sm:$0xff]
        %v707 = vld [vmem:[%s319 + $0xa18] sm:$0xff]
        %v708 = vld [vmem:[%s319 + $0xa20] sm:$0xff]
        %v709 = vld [vmem:[%s319 + $0xa28] sm:$0xff]
        %v710 = vld [vmem:[%s319 + $0xa30] sm:$0xff]
        %v711 = vld [vmem:[%s319 + $0xa38] sm:$0xff]
        %v712 = vld [vmem:[%s319 + $0xa40] sm:$0xff]
        %v713 = vld [vmem:[%s319 + $0xa48] sm:$0xff]
        %v714 = vld [vmem:[%s319 + $0xa50] sm:$0xff]
        %v715 = vld [vmem:[%s319 + $0xa58] sm:$0xff]
        %v716 = vld [vmem:[%s319 + $0xa60] sm:$0xff]
        %v717 = vld [vmem:[%s319 + $0xa68] sm:$0xff]
        %v718 = vld [vmem:[%s319 + $0xa70] sm:$0xff]
        %v719 = vld [vmem:[%s319 + $0xa78] sm:$0xff]
        %v720 = vld [vmem:[%s319 + $0xa80] sm:$0xff]
        %v721 = vld [vmem:[%s319 + $0xa88] sm:$0xff]
        %v722 = vld [vmem:[%s319 + $0xa90] sm:$0xff]
        %v723 = vld [vmem:[%s319 + $0xa98] sm:$0xff]
        %v724 = vld [vmem:[%s319 + $0xaa0] sm:$0xff]
        %v725 = vld [vmem:[%s319 + $0xaa8] sm:$0xff]
        %v726 = vld [vmem:[%s319 + $0xab0] sm:$0xff]
        %v727 = vld [vmem:[%s319 + $0xab8] sm:$0xff]
        %v728 = vld [vmem:[%s319 + $0xac0] sm:$0xff]
        %v729 = vld [vmem:[%s319 + $0xac8] sm:$0xff]
        %v730 = vld [vmem:[%s319 + $0xad0] sm:$0xff]
        %v731 = vld [vmem:[%s319 + $0xad8] sm:$0xff]
        %v732 = vld [vmem:[%s319 + $0xae0] sm:$0xff]
        %v733 = vld [vmem:[%s319 + $0xae8] sm:$0xff]
        %v734 = vld [vmem:[%s319 + $0xaf0] sm:$0xff]
        %v735 = vld [vmem:[%s319 + $0xaf8] sm:$0xff]
        %v736 = vld [vmem:[%s319 + $0xb00] sm:$0xff]
        %v737 = vld [vmem:[%s319 + $0xb08] sm:$0xff]
        %v738 = vld [vmem:[%s319 + $0xb10] sm:$0xff]
        %v739 = vld [vmem:[%s319 + $0xb18] sm:$0xff]
        %v740 = vld [vmem:[%s319 + $0xb20] sm:$0xff]
        %v741 = vld [vmem:[%s319 + $0xb28] sm:$0xff]
        %v742 = vld [vmem:[%s319 + $0xb30] sm:$0xff]
        %v743 = vld [vmem:[%s319 + $0xb38] sm:$0xff]
        %v744 = vld [vmem:[%s319 + $0xb40] sm:$0xff]
        %v745 = vld [vmem:[%s319 + $0xb48] sm:$0xff]
        %v746 = vld [vmem:[%s319 + $0xb50] sm:$0xff]
        %v747 = vld [vmem:[%s319 + $0xb58] sm:$0xff]
        %v748 = vld [vmem:[%s319 + $0xb60] sm:$0xff]
        %v749 = vld [vmem:[%s319 + $0xb68] sm:$0xff]
        %v750 = vld [vmem:[%s319 + $0xb70] sm:$0xff]
        %v751 = vld [vmem:[%s319 + $0xb78] sm:$0xff]
        %v752 = vld [vmem:[%s319 + $0xb80] sm:$0xff]
        %v753 = vld [vmem:[%s319 + $0xb88] sm:$0xff]
        %v754 = vld [vmem:[%s319 + $0xb90] sm:$0xff]
        %v755 = vld [vmem:[%s319 + $0xb98] sm:$0xff]
        %v756 = vld [vmem:[%s319 + $0xba0] sm:$0xff]
        %v757 = vld [vmem:[%s319 + $0xba8] sm:$0xff]
        %v758 = vld [vmem:[%s319 + $0xbb0] sm:$0xff]
        %v759 = vld [vmem:[%s319 + $0xbb8] sm:$0xff]
        %v760 = vld [vmem:[%s319 + $0xbc0] sm:$0xff]
        %v761 = vld [vmem:[%s319 + $0xbc8] sm:$0xff]
        %v762 = vld [vmem:[%s319 + $0xbd0] sm:$0xff]
        %v763 = vld [vmem:[%s319 + $0xbd8] sm:$0xff]
        %v764 = vld [vmem:[%s319 + $0xbe0] sm:$0xff]
        %v765 = vld [vmem:[%s319 + $0xbe8] sm:$0xff]
        %v766 = vld [vmem:[%s319 + $0xbf0] sm:$0xff]
        %v767 = vld [vmem:[%s319 + $0xbf8] sm:$0xff]
        %v768 = vld [vmem:[%s319 + $0xc00] sm:$0xff]
        %v769 = vld [vmem:[%s319 + $0xc08] sm:$0xff]
        %v770 = vld [vmem:[%s319 + $0xc10] sm:$0xff]
        %v771 = vld [vmem:[%s319 + $0xc18] sm:$0xff]
        %v772 = vld [vmem:[%s319 + $0xc20] sm:$0xff]
        %v773 = vld [vmem:[%s319 + $0xc28] sm:$0xff]
        %v774 = vld [vmem:[%s319 + $0xc30] sm:$0xff]
        %v775 = vld [vmem:[%s319 + $0xc38] sm:$0xff]
        %v776 = vld [vmem:[%s319 + $0xc40] sm:$0xff]
        %v777 = vld [vmem:[%s319 + $0xc48] sm:$0xff]
        %v778 = vld [vmem:[%s319 + $0xc50] sm:$0xff]
        %v779 = vld [vmem:[%s319 + $0xc58] sm:$0xff]
        %v780 = vld [vmem:[%s319 + $0xc60] sm:$0xff]
        %v781 = vld [vmem:[%s319 + $0xc68] sm:$0xff]
        %v782 = vld [vmem:[%s319 + $0xc70] sm:$0xff]
        %v783 = vld [vmem:[%s319 + $0xc78] sm:$0xff]
        %v784 = vld [vmem:[%s319 + $0xc80] sm:$0xff]
        %v785 = vld [vmem:[%s319 + $0xc88] sm:$0xff]
        %v786 = vld [vmem:[%s319 + $0xc90] sm:$0xff]
        %v787 = vld [vmem:[%s319 + $0xc98] sm:$0xff]
        %v788 = vld [vmem:[%s319 + $0xca0] sm:$0xff]
        %v789 = vld [vmem:[%s319 + $0xca8] sm:$0xff]
        %v790 = vld [vmem:[%s319 + $0xcb0] sm:$0xff]
        %v791 = vld [vmem:[%s319 + $0xcb8] sm:$0xff]
        %v792 = vld [vmem:[%s319 + $0xcc0] sm:$0xff]
        %v793 = vld [vmem:[%s319 + $0xcc8] sm:$0xff]
        %v794 = vld [vmem:[%s319 + $0xcd0] sm:$0xff]
        %v795 = vld [vmem:[%s319 + $0xcd8] sm:$0xff]
        %v796 = vld [vmem:[%s319 + $0xce0] sm:$0xff]
        %v797 = vld [vmem:[%s319 + $0xce8] sm:$0xff]
        %v798 = vld [vmem:[%s319 + $0xcf0] sm:$0xff]
        %v799 = vld [vmem:[%s319 + $0xcf8] sm:$0xff]
        %v800 = vld [vmem:[%s319 + $0xd00] sm:$0xff]
        %v801 = vld [vmem:[%s319 + $0xd08] sm:$0xff]
        %v802 = vld [vmem:[%s319 + $0xd10] sm:$0xff]
        %v803 = vld [vmem:[%s319 + $0xd18] sm:$0xff]
        %v804 = vld [vmem:[%s319 + $0xd20] sm:$0xff]
        %v805 = vld [vmem:[%s319 + $0xd28] sm:$0xff]
        %v806 = vld [vmem:[%s319 + $0xd30] sm:$0xff]
        %v807 = vld [vmem:[%s319 + $0xd38] sm:$0xff]
        %v808 = vld [vmem:[%s319 + $0xd40] sm:$0xff]
        %v809 = vld [vmem:[%s319 + $0xd48] sm:$0xff]
        %v810 = vld [vmem:[%s319 + $0xd50] sm:$0xff]
        %v811 = vld [vmem:[%s319 + $0xd58] sm:$0xff]
        %v812 = vld [vmem:[%s319 + $0xd60] sm:$0xff]
        %v813 = vld [vmem:[%s319 + $0xd68] sm:$0xff]
        %v814 = vld [vmem:[%s319 + $0xd70] sm:$0xff]
        %v815 = vld [vmem:[%s319 + $0xd78] sm:$0xff]
        %v816 = vld [vmem:[%s319 + $0xd80] sm:$0xff]
        %v817 = vld [vmem:[%s319 + $0xd88] sm:$0xff]
        %v818 = vld [vmem:[%s319 + $0xd90] sm:$0xff]
        %v819 = vld [vmem:[%s319 + $0xd98] sm:$0xff]
        %v820 = vld [vmem:[%s319 + $0xda0] sm:$0xff]
        %v821 = vld [vmem:[%s319 + $0xda8] sm:$0xff]
        %v822 = vld [vmem:[%s319 + $0xdb0] sm:$0xff]
        %v823 = vld [vmem:[%s319 + $0xdb8] sm:$0xff]
        %v824 = vld [vmem:[%s319 + $0xdc0] sm:$0xff]
        %v825 = vld [vmem:[%s319 + $0xdc8] sm:$0xff]
        %v826 = vld [vmem:[%s319 + $0xdd0] sm:$0xff]
        %v827 = vld [vmem:[%s319 + $0xdd8] sm:$0xff]
        %v828 = vld [vmem:[%s319 + $0xde0] sm:$0xff]
        %v829 = vld [vmem:[%s319 + $0xde8] sm:$0xff]
        %v830 = vld [vmem:[%s319 + $0xdf0] sm:$0xff]
        %v831 = vld [vmem:[%s319 + $0xdf8] sm:$0xff]
        %v832 = vld [vmem:[%s319 + $0xe00] sm:$0xff]
        %v833 = vld [vmem:[%s319 + $0xe08] sm:$0xff]
        %v834 = vld [vmem:[%s319 + $0xe10] sm:$0xff]
        %v835 = vld [vmem:[%s319 + $0xe18] sm:$0xff]
        %v836 = vld [vmem:[%s319 + $0xe20] sm:$0xff]
        %v837 = vld [vmem:[%s319 + $0xe28] sm:$0xff]
        %v838 = vld [vmem:[%s319 + $0xe30] sm:$0xff]
        %v839 = vld [vmem:[%s319 + $0xe38] sm:$0xff]
        %v840 = vld [vmem:[%s319 + $0xe40] sm:$0xff]
        %v841 = vld [vmem:[%s319 + $0xe48] sm:$0xff]
        %v842 = vld [vmem:[%s319 + $0xe50] sm:$0xff]
        %v843 = vld [vmem:[%s319 + $0xe58] sm:$0xff]
        %v844 = vld [vmem:[%s319 + $0xe60] sm:$0xff]
        %v845 = vld [vmem:[%s319 + $0xe68] sm:$0xff]
        %v846 = vld [vmem:[%s319 + $0xe70] sm:$0xff]
        %v847 = vld [vmem:[%s319 + $0xe78] sm:$0xff]
        %v848 = vld [vmem:[%s319 + $0xe80] sm:$0xff]
        %v849 = vld [vmem:[%s319 + $0xe88] sm:$0xff]
        %v850 = vld [vmem:[%s319 + $0xe90] sm:$0xff]
        %v851 = vld [vmem:[%s319 + $0xe98] sm:$0xff]
        %v852 = vld [vmem:[%s319 + $0xea0] sm:$0xff]
        %v853 = vld [vmem:[%s319 + $0xea8] sm:$0xff]
        %v854 = vld [vmem:[%s319 + $0xeb0] sm:$0xff]
        %v855 = vld [vmem:[%s319 + $0xeb8] sm:$0xff]
        %v856 = vld [vmem:[%s319 + $0xec0] sm:$0xff]
        %v857 = vld [vmem:[%s319 + $0xec8] sm:$0xff]
        %v858 = vld [vmem:[%s319 + $0xed0] sm:$0xff]
        %v859 = vld [vmem:[%s319 + $0xed8] sm:$0xff]
        %v860 = vld [vmem:[%s319 + $0xee0] sm:$0xff]
        %v861 = vld [vmem:[%s319 + $0xee8] sm:$0xff]
        %v862 = vld [vmem:[%s319 + $0xef0] sm:$0xff]
        %v863 = vld [vmem:[%s319 + $0xef8] sm:$0xff]
        %v864 = vld [vmem:[%s319 + $0xf00] sm:$0xff]
        %v865 = vld [vmem:[%s319 + $0xf08] sm:$0xff]
        %v866 = vld [vmem:[%s319 + $0xf10] sm:$0xff]
        %v867 = vld [vmem:[%s319 + $0xf18] sm:$0xff]
        %v868 = vld [vmem:[%s319 + $0xf20] sm:$0xff]
        %v869 = vld [vmem:[%s319 + $0xf28] sm:$0xff]
        %v870 = vld [vmem:[%s319 + $0xf30] sm:$0xff]
        %v871 = vld [vmem:[%s319 + $0xf38] sm:$0xff]
        %v872 = vld [vmem:[%s319 + $0xf40] sm:$0xff]
        %v873 = vld [vmem:[%s319 + $0xf48] sm:$0xff]
        %v874 = vld [vmem:[%s319 + $0xf50] sm:$0xff]
        %v875 = vld [vmem:[%s319 + $0xf58] sm:$0xff]
        %v876 = vld [vmem:[%s319 + $0xf60] sm:$0xff]
        %v877 = vld [vmem:[%s319 + $0xf68] sm:$0xff]
        %v878 = vld [vmem:[%s319 + $0xf70] sm:$0xff]
        %v879 = vld [vmem:[%s319 + $0xf78] sm:$0xff]
        %v880 = vld [vmem:[%s319 + $0xf80] sm:$0xff]
        %v881 = vld [vmem:[%s319 + $0xf88] sm:$0xff]
        %v882 = vld [vmem:[%s319 + $0xf90] sm:$0xff]
        %v883 = vld [vmem:[%s319 + $0xf98] sm:$0xff]
        %v884 = vld [vmem:[%s319 + $0xfa0] sm:$0xff]
        %v885 = vld [vmem:[%s319 + $0xfa8] sm:$0xff]
        %v886 = vld [vmem:[%s319 + $0xfb0] sm:$0xff]
        %v887 = vld [vmem:[%s319 + $0xfb8] sm:$0xff]
        %v888 = vld [vmem:[%s319 + $0xfc0] sm:$0xff]
        %v889 = vld [vmem:[%s319 + $0xfc8] sm:$0xff]
        %v890 = vld [vmem:[%s319 + $0xfd0] sm:$0xff]
        %v891 = vld [vmem:[%s319 + $0xfd8] sm:$0xff]
        %v892 = vld [vmem:[%s319 + $0xfe0] sm:$0xff]
        %v893 = vld [vmem:[%s319 + $0xfe8] sm:$0xff]
        %v894 = vld [vmem:[%s319 + $0xff0] sm:$0xff]
        %v895 = vld [vmem:[%s319 + $0xff8] sm:$0xff]
        %s896 = sshra.s32 %s24, 2
        %s897 = sand.u32 %s24, 3
        %s898 = sshra.s32 %s24, 2
        %s899 = sand.u32 %s24, 3
        %s900 = smul.u32 %s896, 8
        %s901 = smul.u32 %s900, 4
        %s902 = sadd.s32 %s901, %s899
        %s903 = scalar_lea.vmem [#allocation6], %s902
        %v904 = vld [vmem:[%s903] ss:$4 sm:$0xff]
        %v906 = vlaneseq
        %v907 = vshrl.u32 %v906, 7
        %v908 = vsub.s32 0, %v907
        %v909 = vrot.slane %v904, %v908
        %v910 = vlaneseq
        %v911 = vshrl.u32 %v910, 7
        %v912 = vsub.s32 1, %v911
        %v913 = vrot.slane %v904, %v912
        %v914 = vlaneseq
        %v915 = vshrl.u32 %v914, 7
        %v916 = vsub.s32 2, %v915
        %v917 = vrot.slane %v904, %v916
        %v918 = vlaneseq
        %v919 = vshrl.u32 %v918, 7
        %v920 = vsub.s32 3, %v919
        %v921 = vrot.slane %v904, %v920
        %v922 = vlaneseq
        %v923 = vshrl.u32 %v922, 7
        %v924 = vsub.s32 4, %v923
        %v925 = vrot.slane %v904, %v924
        %v926 = vlaneseq
        %v927 = vshrl.u32 %v926, 7
        %v928 = vsub.s32 5, %v927
        %v929 = vrot.slane %v904, %v928
        %v930 = vlaneseq
        %v931 = vshrl.u32 %v930, 7
        %v932 = vsub.s32 6, %v931
        %v933 = vrot.slane %v904, %v932
        %v934 = vlaneseq
        %v935 = vshrl.u32 %v934, 7
        %v936 = vsub.s32 7, %v935
        %v937 = vrot.slane %v904, %v936
        %v947 = vcombine.high %v383, %v383
        %v949 = vunpack.c.l.s4 1966171168
        %v950 = vunpack.c.0.s8 %v949
        %v951 = vlaneseq
        %v952 = vshrl.u32 %v951, 7
        %v953 = vsub.s32 %v950, %v952
        %v954 = vrot.slane %v383, %v953
        %v956 = vunpack.c.l.s4 1966171168
        %v957 = vunpack.c.0.s8 %v956
        %v958 = vlaneseq
        %v959 = vshrl.u32 %v958, 7
        %v960 = vsub.s32 %v957, %v959
        %v961 = vrot.slane %v947, %v960
        %v962 = vcombine.high %v954, %v954
        %v963 = vcombine.high %v961, %v961
        %v965 = vunpack.c.l.s4 1966171168
        %v966 = vunpack.c.0.s8 %v965
        %v967 = vlaneseq
        %v968 = vshrl.u32 %v967, 7
        %v969 = vsub.s32 %v966, %v968
        %v970 = vrot.slane %v954, %v969
        %v972 = vunpack.c.l.s4 1966171168
        %v973 = vunpack.c.0.s8 %v972
        %v974 = vlaneseq
        %v975 = vshrl.u32 %v974, 7
        %v976 = vsub.s32 %v973, %v975
        %v977 = vrot.slane %v961, %v976
        %v979 = vunpack.c.l.s4 1966171168
        %v980 = vunpack.c.0.s8 %v979
        %v981 = vlaneseq
        %v982 = vshrl.u32 %v981, 7
        %v983 = vsub.s32 %v980, %v982
        %v984 = vrot.slane %v962, %v983
        %v986 = vunpack.c.l.s4 1966171168
        %v987 = vunpack.c.0.s8 %v986
        %v988 = vlaneseq
        %v989 = vshrl.u32 %v988, 7
        %v990 = vsub.s32 %v987, %v989
        %v991 = vrot.slane %v963, %v990
        %v992 = vcombine.high %v970, %v970
        %v993 = vcombine.high %v977, %v977
        %v994 = vcombine.high %v984, %v984
        %v995 = vcombine.high %v991, %v991
        %v1516 = vunpack.c.l.b16 %v384
        %v1517 = vunpack.c.h.b16 %v384
        %v1518 = vunpack.c.l.b16 %v385
        %v1519 = vunpack.c.h.b16 %v385
        %v1520 = vunpack.c.l.b16 %v386
        %v1521 = vunpack.c.h.b16 %v386
        %v1522 = vunpack.c.l.b16 %v387
        %v1523 = vunpack.c.h.b16 %v387
        %v1524 = vunpack.c.l.b16 %v388
        %v1525 = vunpack.c.h.b16 %v388
        %v1526 = vunpack.c.l.b16 %v389
        %v1527 = vunpack.c.h.b16 %v389
        %v1528 = vunpack.c.l.b16 %v390
        %v1529 = vunpack.c.h.b16 %v390
        %v1530 = vunpack.c.l.b16 %v391
        %v1531 = vunpack.c.h.b16 %v391
        %v1532 = vunpack.c.l.b16 %v392
        %v1533 = vunpack.c.h.b16 %v392
        %v1534 = vunpack.c.l.b16 %v393
        %v1535 = vunpack.c.h.b16 %v393
        %v1536 = vunpack.c.l.b16 %v394
        %v1537 = vunpack.c.h.b16 %v394
        %v1538 = vunpack.c.l.b16 %v395
        %v1539 = vunpack.c.h.b16 %v395
        %v1540 = vunpack.c.l.b16 %v396
        %v1541 = vunpack.c.h.b16 %v396
        %v1542 = vunpack.c.l.b16 %v397
        %v1543 = vunpack.c.h.b16 %v397
        %v1544 = vunpack.c.l.b16 %v398
        %v1545 = vunpack.c.h.b16 %v398
        %v1546 = vunpack.c.l.b16 %v399
        %v1547 = vunpack.c.h.b16 %v399
        %v1548 = vunpack.c.l.b16 %v400
        %v1549 = vunpack.c.h.b16 %v400
        %v1550 = vunpack.c.l.b16 %v401
        %v1551 = vunpack.c.h.b16 %v401
        %v1552 = vunpack.c.l.b16 %v402
        %v1553 = vunpack.c.h.b16 %v402
        %v1554 = vunpack.c.l.b16 %v403
        %v1555 = vunpack.c.h.b16 %v403
        %v1556 = vunpack.c.l.b16 %v404
        %v1557 = vunpack.c.h.b16 %v404
        %v1558 = vunpack.c.l.b16 %v405
        %v1559 = vunpack.c.h.b16 %v405
        %v1560 = vunpack.c.l.b16 %v406
        %v1561 = vunpack.c.h.b16 %v406
        %v1562 = vunpack.c.l.b16 %v407
        %v1563 = vunpack.c.h.b16 %v407
        %v1564 = vunpack.c.l.b16 %v408
        %v1565 = vunpack.c.h.b16 %v408
        %v1566 = vunpack.c.l.b16 %v409
        %v1567 = vunpack.c.h.b16 %v409
        %v1568 = vunpack.c.l.b16 %v410
        %v1569 = vunpack.c.h.b16 %v410
        %v1570 = vunpack.c.l.b16 %v411
        %v1571 = vunpack.c.h.b16 %v411
        %v1572 = vunpack.c.l.b16 %v412
        %v1573 = vunpack.c.h.b16 %v412
        %v1574 = vunpack.c.l.b16 %v413
        %v1575 = vunpack.c.h.b16 %v413
        %v1576 = vunpack.c.l.b16 %v414
        %v1577 = vunpack.c.h.b16 %v414
        %v1578 = vunpack.c.l.b16 %v415
        %v1579 = vunpack.c.h.b16 %v415
        %v1580 = vunpack.c.l.b16 %v416
        %v1581 = vunpack.c.h.b16 %v416
        %v1582 = vunpack.c.l.b16 %v417
        %v1583 = vunpack.c.h.b16 %v417
        %v1584 = vunpack.c.l.b16 %v418
        %v1585 = vunpack.c.h.b16 %v418
        %v1586 = vunpack.c.l.b16 %v419
        %v1587 = vunpack.c.h.b16 %v419
        %v1588 = vunpack.c.l.b16 %v420
        %v1589 = vunpack.c.h.b16 %v420
        %v1590 = vunpack.c.l.b16 %v421
        %v1591 = vunpack.c.h.b16 %v421
        %v1592 = vunpack.c.l.b16 %v422
        %v1593 = vunpack.c.h.b16 %v422
        %v1594 = vunpack.c.l.b16 %v423
        %v1595 = vunpack.c.h.b16 %v423
        %v1596 = vunpack.c.l.b16 %v424
        %v1597 = vunpack.c.h.b16 %v424
        %v1598 = vunpack.c.l.b16 %v425
        %v1599 = vunpack.c.h.b16 %v425
        %v1600 = vunpack.c.l.b16 %v426
        %v1601 = vunpack.c.h.b16 %v426
        %v1602 = vunpack.c.l.b16 %v427
        %v1603 = vunpack.c.h.b16 %v427
        %v1604 = vunpack.c.l.b16 %v428
        %v1605 = vunpack.c.h.b16 %v428
        %v1606 = vunpack.c.l.b16 %v429
        %v1607 = vunpack.c.h.b16 %v429
        %v1608 = vunpack.c.l.b16 %v430
        %v1609 = vunpack.c.h.b16 %v430
        %v1610 = vunpack.c.l.b16 %v431
        %v1611 = vunpack.c.h.b16 %v431
        %v1612 = vunpack.c.l.b16 %v432
        %v1613 = vunpack.c.h.b16 %v432
        %v1614 = vunpack.c.l.b16 %v433
        %v1615 = vunpack.c.h.b16 %v433
        %v1616 = vunpack.c.l.b16 %v434
        %v1617 = vunpack.c.h.b16 %v434
        %v1618 = vunpack.c.l.b16 %v435
        %v1619 = vunpack.c.h.b16 %v435
        %v1620 = vunpack.c.l.b16 %v436
        %v1621 = vunpack.c.h.b16 %v436
        %v1622 = vunpack.c.l.b16 %v437
        %v1623 = vunpack.c.h.b16 %v437
        %v1624 = vunpack.c.l.b16 %v438
        %v1625 = vunpack.c.h.b16 %v438
        %v1626 = vunpack.c.l.b16 %v439
        %v1627 = vunpack.c.h.b16 %v439
        %v1628 = vunpack.c.l.b16 %v440
        %v1629 = vunpack.c.h.b16 %v440
        %v1630 = vunpack.c.l.b16 %v441
        %v1631 = vunpack.c.h.b16 %v441
        %v1632 = vunpack.c.l.b16 %v442
        %v1633 = vunpack.c.h.b16 %v442
        %v1634 = vunpack.c.l.b16 %v443
        %v1635 = vunpack.c.h.b16 %v443
        %v1636 = vunpack.c.l.b16 %v444
        %v1637 = vunpack.c.h.b16 %v444
        %v1638 = vunpack.c.l.b16 %v445
        %v1639 = vunpack.c.h.b16 %v445
        %v1640 = vunpack.c.l.b16 %v446
        %v1641 = vunpack.c.h.b16 %v446
        %v1642 = vunpack.c.l.b16 %v447
        %v1643 = vunpack.c.h.b16 %v447
        %v1644 = vunpack.c.l.b16 %v448
        %v1645 = vunpack.c.h.b16 %v448
        %v1646 = vunpack.c.l.b16 %v449
        %v1647 = vunpack.c.h.b16 %v449
        %v1648 = vunpack.c.l.b16 %v450
        %v1649 = vunpack.c.h.b16 %v450
        %v1650 = vunpack.c.l.b16 %v451
        %v1651 = vunpack.c.h.b16 %v451
        %v1652 = vunpack.c.l.b16 %v452
        %v1653 = vunpack.c.h.b16 %v452
        %v1654 = vunpack.c.l.b16 %v453
        %v1655 = vunpack.c.h.b16 %v453
        %v1656 = vunpack.c.l.b16 %v454
        %v1657 = vunpack.c.h.b16 %v454
        %v1658 = vunpack.c.l.b16 %v455
        %v1659 = vunpack.c.h.b16 %v455
        %v1660 = vunpack.c.l.b16 %v456
        %v1661 = vunpack.c.h.b16 %v456
        %v1662 = vunpack.c.l.b16 %v457
        %v1663 = vunpack.c.h.b16 %v457
        %v1664 = vunpack.c.l.b16 %v458
        %v1665 = vunpack.c.h.b16 %v458
        %v1666 = vunpack.c.l.b16 %v459
        %v1667 = vunpack.c.h.b16 %v459
        %v1668 = vunpack.c.l.b16 %v460
        %v1669 = vunpack.c.h.b16 %v460
        %v1670 = vunpack.c.l.b16 %v461
        %v1671 = vunpack.c.h.b16 %v461
        %v1672 = vunpack.c.l.b16 %v462
        %v1673 = vunpack.c.h.b16 %v462
        %v1674 = vunpack.c.l.b16 %v463
        %v1675 = vunpack.c.h.b16 %v463
        %v1676 = vunpack.c.l.b16 %v464
        %v1677 = vunpack.c.h.b16 %v464
        %v1678 = vunpack.c.l.b16 %v465
        %v1679 = vunpack.c.h.b16 %v465
        %v1680 = vunpack.c.l.b16 %v466
        %v1681 = vunpack.c.h.b16 %v466
        %v1682 = vunpack.c.l.b16 %v467
        %v1683 = vunpack.c.h.b16 %v467
        %v1684 = vunpack.c.l.b16 %v468
        %v1685 = vunpack.c.h.b16 %v468
        %v1686 = vunpack.c.l.b16 %v469
        %v1687 = vunpack.c.h.b16 %v469
        %v1688 = vunpack.c.l.b16 %v470
        %v1689 = vunpack.c.h.b16 %v470
        %v1690 = vunpack.c.l.b16 %v471
        %v1691 = vunpack.c.h.b16 %v471
        %v1692 = vunpack.c.l.b16 %v472
        %v1693 = vunpack.c.h.b16 %v472
        %v1694 = vunpack.c.l.b16 %v473
        %v1695 = vunpack.c.h.b16 %v473
        %v1696 = vunpack.c.l.b16 %v474
        %v1697 = vunpack.c.h.b16 %v474
        %v1698 = vunpack.c.l.b16 %v475
        %v1699 = vunpack.c.h.b16 %v475
        %v1700 = vunpack.c.l.b16 %v476
        %v1701 = vunpack.c.h.b16 %v476
        %v1702 = vunpack.c.l.b16 %v477
        %v1703 = vunpack.c.h.b16 %v477
        %v1704 = vunpack.c.l.b16 %v478
        %v1705 = vunpack.c.h.b16 %v478
        %v1706 = vunpack.c.l.b16 %v479
        %v1707 = vunpack.c.h.b16 %v479
        %v1708 = vunpack.c.l.b16 %v480
        %v1709 = vunpack.c.h.b16 %v480
        %v1710 = vunpack.c.l.b16 %v481
        %v1711 = vunpack.c.h.b16 %v481
        %v1712 = vunpack.c.l.b16 %v482
        %v1713 = vunpack.c.h.b16 %v482
        %v1714 = vunpack.c.l.b16 %v483
        %v1715 = vunpack.c.h.b16 %v483
        %v1716 = vunpack.c.l.b16 %v484
        %v1717 = vunpack.c.h.b16 %v484
        %v1718 = vunpack.c.l.b16 %v485
        %v1719 = vunpack.c.h.b16 %v485
        %v1720 = vunpack.c.l.b16 %v486
        %v1721 = vunpack.c.h.b16 %v486
        %v1722 = vunpack.c.l.b16 %v487
        %v1723 = vunpack.c.h.b16 %v487
        %v1724 = vunpack.c.l.b16 %v488
        %v1725 = vunpack.c.h.b16 %v488
        %v1726 = vunpack.c.l.b16 %v489
        %v1727 = vunpack.c.h.b16 %v489
        %v1728 = vunpack.c.l.b16 %v490
        %v1729 = vunpack.c.h.b16 %v490
        %v1730 = vunpack.c.l.b16 %v491
        %v1731 = vunpack.c.h.b16 %v491
        %v1732 = vunpack.c.l.b16 %v492
        %v1733 = vunpack.c.h.b16 %v492
        %v1734 = vunpack.c.l.b16 %v493
        %v1735 = vunpack.c.h.b16 %v493
        %v1736 = vunpack.c.l.b16 %v494
        %v1737 = vunpack.c.h.b16 %v494
        %v1738 = vunpack.c.l.b16 %v495
        %v1739 = vunpack.c.h.b16 %v495
        %v1740 = vunpack.c.l.b16 %v496
        %v1741 = vunpack.c.h.b16 %v496
        %v1742 = vunpack.c.l.b16 %v497
        %v1743 = vunpack.c.h.b16 %v497
        %v1744 = vunpack.c.l.b16 %v498
        %v1745 = vunpack.c.h.b16 %v498
        %v1746 = vunpack.c.l.b16 %v499
        %v1747 = vunpack.c.h.b16 %v499
        %v1748 = vunpack.c.l.b16 %v500
        %v1749 = vunpack.c.h.b16 %v500
        %v1750 = vunpack.c.l.b16 %v501
        %v1751 = vunpack.c.h.b16 %v501
        %v1752 = vunpack.c.l.b16 %v502
        %v1753 = vunpack.c.h.b16 %v502
        %v1754 = vunpack.c.l.b16 %v503
        %v1755 = vunpack.c.h.b16 %v503
        %v1756 = vunpack.c.l.b16 %v504
        %v1757 = vunpack.c.h.b16 %v504
        %v1758 = vunpack.c.l.b16 %v505
        %v1759 = vunpack.c.h.b16 %v505
        %v1760 = vunpack.c.l.b16 %v506
        %v1761 = vunpack.c.h.b16 %v506
        %v1762 = vunpack.c.l.b16 %v507
        %v1763 = vunpack.c.h.b16 %v507
        %v1764 = vunpack.c.l.b16 %v508
        %v1765 = vunpack.c.h.b16 %v508
        %v1766 = vunpack.c.l.b16 %v509
        %v1767 = vunpack.c.h.b16 %v509
        %v1768 = vunpack.c.l.b16 %v510
        %v1769 = vunpack.c.h.b16 %v510
        %v1770 = vunpack.c.l.b16 %v511
        %v1771 = vunpack.c.h.b16 %v511
        %v1772 = vunpack.c.l.b16 %v512
        %v1773 = vunpack.c.h.b16 %v512
        %v1774 = vunpack.c.l.b16 %v513
        %v1775 = vunpack.c.h.b16 %v513
        %v1776 = vunpack.c.l.b16 %v514
        %v1777 = vunpack.c.h.b16 %v514
        %v1778 = vunpack.c.l.b16 %v515
        %v1779 = vunpack.c.h.b16 %v515
        %v1780 = vunpack.c.l.b16 %v516
        %v1781 = vunpack.c.h.b16 %v516
        %v1782 = vunpack.c.l.b16 %v517
        %v1783 = vunpack.c.h.b16 %v517
        %v1784 = vunpack.c.l.b16 %v518
        %v1785 = vunpack.c.h.b16 %v518
        %v1786 = vunpack.c.l.b16 %v519
        %v1787 = vunpack.c.h.b16 %v519
        %v1788 = vunpack.c.l.b16 %v520
        %v1789 = vunpack.c.h.b16 %v520
        %v1790 = vunpack.c.l.b16 %v521
        %v1791 = vunpack.c.h.b16 %v521
        %v1792 = vunpack.c.l.b16 %v522
        %v1793 = vunpack.c.h.b16 %v522
        %v1794 = vunpack.c.l.b16 %v523
        %v1795 = vunpack.c.h.b16 %v523
        %v1796 = vunpack.c.l.b16 %v524
        %v1797 = vunpack.c.h.b16 %v524
        %v1798 = vunpack.c.l.b16 %v525
        %v1799 = vunpack.c.h.b16 %v525
        %v1800 = vunpack.c.l.b16 %v526
        %v1801 = vunpack.c.h.b16 %v526
        %v1802 = vunpack.c.l.b16 %v527
        %v1803 = vunpack.c.h.b16 %v527
        %v1804 = vunpack.c.l.b16 %v528
        %v1805 = vunpack.c.h.b16 %v528
        %v1806 = vunpack.c.l.b16 %v529
        %v1807 = vunpack.c.h.b16 %v529
        %v1808 = vunpack.c.l.b16 %v530
        %v1809 = vunpack.c.h.b16 %v530
        %v1810 = vunpack.c.l.b16 %v531
        %v1811 = vunpack.c.h.b16 %v531
        %v1812 = vunpack.c.l.b16 %v532
        %v1813 = vunpack.c.h.b16 %v532
        %v1814 = vunpack.c.l.b16 %v533
        %v1815 = vunpack.c.h.b16 %v533
        %v1816 = vunpack.c.l.b16 %v534
        %v1817 = vunpack.c.h.b16 %v534
        %v1818 = vunpack.c.l.b16 %v535
        %v1819 = vunpack.c.h.b16 %v535
        %v1820 = vunpack.c.l.b16 %v536
        %v1821 = vunpack.c.h.b16 %v536
        %v1822 = vunpack.c.l.b16 %v537
        %v1823 = vunpack.c.h.b16 %v537
        %v1824 = vunpack.c.l.b16 %v538
        %v1825 = vunpack.c.h.b16 %v538
        %v1826 = vunpack.c.l.b16 %v539
        %v1827 = vunpack.c.h.b16 %v539
        %v1828 = vunpack.c.l.b16 %v540
        %v1829 = vunpack.c.h.b16 %v540
        %v1830 = vunpack.c.l.b16 %v541
        %v1831 = vunpack.c.h.b16 %v541
        %v1832 = vunpack.c.l.b16 %v542
        %v1833 = vunpack.c.h.b16 %v542
        %v1834 = vunpack.c.l.b16 %v543
        %v1835 = vunpack.c.h.b16 %v543
        %v1836 = vunpack.c.l.b16 %v544
        %v1837 = vunpack.c.h.b16 %v544
        %v1838 = vunpack.c.l.b16 %v545
        %v1839 = vunpack.c.h.b16 %v545
        %v1840 = vunpack.c.l.b16 %v546
        %v1841 = vunpack.c.h.b16 %v546
        %v1842 = vunpack.c.l.b16 %v547
        %v1843 = vunpack.c.h.b16 %v547
        %v1844 = vunpack.c.l.b16 %v548
        %v1845 = vunpack.c.h.b16 %v548
        %v1846 = vunpack.c.l.b16 %v549
        %v1847 = vunpack.c.h.b16 %v549
        %v1848 = vunpack.c.l.b16 %v550
        %v1849 = vunpack.c.h.b16 %v550
        %v1850 = vunpack.c.l.b16 %v551
        %v1851 = vunpack.c.h.b16 %v551
        %v1852 = vunpack.c.l.b16 %v552
        %v1853 = vunpack.c.h.b16 %v552
        %v1854 = vunpack.c.l.b16 %v553
        %v1855 = vunpack.c.h.b16 %v553
        %v1856 = vunpack.c.l.b16 %v554
        %v1857 = vunpack.c.h.b16 %v554
        %v1858 = vunpack.c.l.b16 %v555
        %v1859 = vunpack.c.h.b16 %v555
        %v1860 = vunpack.c.l.b16 %v556
        %v1861 = vunpack.c.h.b16 %v556
        %v1862 = vunpack.c.l.b16 %v557
        %v1863 = vunpack.c.h.b16 %v557
        %v1864 = vunpack.c.l.b16 %v558
        %v1865 = vunpack.c.h.b16 %v558
        %v1866 = vunpack.c.l.b16 %v559
        %v1867 = vunpack.c.h.b16 %v559
        %v1868 = vunpack.c.l.b16 %v560
        %v1869 = vunpack.c.h.b16 %v560
        %v1870 = vunpack.c.l.b16 %v561
        %v1871 = vunpack.c.h.b16 %v561
        %v1872 = vunpack.c.l.b16 %v562
        %v1873 = vunpack.c.h.b16 %v562
        %v1874 = vunpack.c.l.b16 %v563
        %v1875 = vunpack.c.h.b16 %v563
        %v1876 = vunpack.c.l.b16 %v564
        %v1877 = vunpack.c.h.b16 %v564
        %v1878 = vunpack.c.l.b16 %v565
        %v1879 = vunpack.c.h.b16 %v565
        %v1880 = vunpack.c.l.b16 %v566
        %v1881 = vunpack.c.h.b16 %v566
        %v1882 = vunpack.c.l.b16 %v567
        %v1883 = vunpack.c.h.b16 %v567
        %v1884 = vunpack.c.l.b16 %v568
        %v1885 = vunpack.c.h.b16 %v568
        %v1886 = vunpack.c.l.b16 %v569
        %v1887 = vunpack.c.h.b16 %v569
        %v1888 = vunpack.c.l.b16 %v570
        %v1889 = vunpack.c.h.b16 %v570
        %v1890 = vunpack.c.l.b16 %v571
        %v1891 = vunpack.c.h.b16 %v571
        %v1892 = vunpack.c.l.b16 %v572
        %v1893 = vunpack.c.h.b16 %v572
        %v1894 = vunpack.c.l.b16 %v573
        %v1895 = vunpack.c.h.b16 %v573
        %v1896 = vunpack.c.l.b16 %v574
        %v1897 = vunpack.c.h.b16 %v574
        %v1898 = vunpack.c.l.b16 %v575
        %v1899 = vunpack.c.h.b16 %v575
        %v1900 = vunpack.c.l.b16 %v576
        %v1901 = vunpack.c.h.b16 %v576
        %v1902 = vunpack.c.l.b16 %v577
        %v1903 = vunpack.c.h.b16 %v577
        %v1904 = vunpack.c.l.b16 %v578
        %v1905 = vunpack.c.h.b16 %v578
        %v1906 = vunpack.c.l.b16 %v579
        %v1907 = vunpack.c.h.b16 %v579
        %v1908 = vunpack.c.l.b16 %v580
        %v1909 = vunpack.c.h.b16 %v580
        %v1910 = vunpack.c.l.b16 %v581
        %v1911 = vunpack.c.h.b16 %v581
        %v1912 = vunpack.c.l.b16 %v582
        %v1913 = vunpack.c.h.b16 %v582
        %v1914 = vunpack.c.l.b16 %v583
        %v1915 = vunpack.c.h.b16 %v583
        %v1916 = vunpack.c.l.b16 %v584
        %v1917 = vunpack.c.h.b16 %v584
        %v1918 = vunpack.c.l.b16 %v585
        %v1919 = vunpack.c.h.b16 %v585
        %v1920 = vunpack.c.l.b16 %v586
        %v1921 = vunpack.c.h.b16 %v586
        %v1922 = vunpack.c.l.b16 %v587
        %v1923 = vunpack.c.h.b16 %v587
        %v1924 = vunpack.c.l.b16 %v588
        %v1925 = vunpack.c.h.b16 %v588
        %v1926 = vunpack.c.l.b16 %v589
        %v1927 = vunpack.c.h.b16 %v589
        %v1928 = vunpack.c.l.b16 %v590
        %v1929 = vunpack.c.h.b16 %v590
        %v1930 = vunpack.c.l.b16 %v591
        %v1931 = vunpack.c.h.b16 %v591
        %v1932 = vunpack.c.l.b16 %v592
        %v1933 = vunpack.c.h.b16 %v592
        %v1934 = vunpack.c.l.b16 %v593
        %v1935 = vunpack.c.h.b16 %v593
        %v1936 = vunpack.c.l.b16 %v594
        %v1937 = vunpack.c.h.b16 %v594
        %v1938 = vunpack.c.l.b16 %v595
        %v1939 = vunpack.c.h.b16 %v595
        %v1940 = vunpack.c.l.b16 %v596
        %v1941 = vunpack.c.h.b16 %v596
        %v1942 = vunpack.c.l.b16 %v597
        %v1943 = vunpack.c.h.b16 %v597
        %v1944 = vunpack.c.l.b16 %v598
        %v1945 = vunpack.c.h.b16 %v598
        %v1946 = vunpack.c.l.b16 %v599
        %v1947 = vunpack.c.h.b16 %v599
        %v1948 = vunpack.c.l.b16 %v600
        %v1949 = vunpack.c.h.b16 %v600
        %v1950 = vunpack.c.l.b16 %v601
        %v1951 = vunpack.c.h.b16 %v601
        %v1952 = vunpack.c.l.b16 %v602
        %v1953 = vunpack.c.h.b16 %v602
        %v1954 = vunpack.c.l.b16 %v603
        %v1955 = vunpack.c.h.b16 %v603
        %v1956 = vunpack.c.l.b16 %v604
        %v1957 = vunpack.c.h.b16 %v604
        %v1958 = vunpack.c.l.b16 %v605
        %v1959 = vunpack.c.h.b16 %v605
        %v1960 = vunpack.c.l.b16 %v606
        %v1961 = vunpack.c.h.b16 %v606
        %v1962 = vunpack.c.l.b16 %v607
        %v1963 = vunpack.c.h.b16 %v607
        %v1964 = vunpack.c.l.b16 %v608
        %v1965 = vunpack.c.h.b16 %v608
        %v1966 = vunpack.c.l.b16 %v609
        %v1967 = vunpack.c.h.b16 %v609
        %v1968 = vunpack.c.l.b16 %v610
        %v1969 = vunpack.c.h.b16 %v610
        %v1970 = vunpack.c.l.b16 %v611
        %v1971 = vunpack.c.h.b16 %v611
        %v1972 = vunpack.c.l.b16 %v612
        %v1973 = vunpack.c.h.b16 %v612
        %v1974 = vunpack.c.l.b16 %v613
        %v1975 = vunpack.c.h.b16 %v613
        %v1976 = vunpack.c.l.b16 %v614
        %v1977 = vunpack.c.h.b16 %v614
        %v1978 = vunpack.c.l.b16 %v615
        %v1979 = vunpack.c.h.b16 %v615
        %v1980 = vunpack.c.l.b16 %v616
        %v1981 = vunpack.c.h.b16 %v616
        %v1982 = vunpack.c.l.b16 %v617
        %v1983 = vunpack.c.h.b16 %v617
        %v1984 = vunpack.c.l.b16 %v618
        %v1985 = vunpack.c.h.b16 %v618
        %v1986 = vunpack.c.l.b16 %v619
        %v1987 = vunpack.c.h.b16 %v619
        %v1988 = vunpack.c.l.b16 %v620
        %v1989 = vunpack.c.h.b16 %v620
        %v1990 = vunpack.c.l.b16 %v621
        %v1991 = vunpack.c.h.b16 %v621
        %v1992 = vunpack.c.l.b16 %v622
        %v1993 = vunpack.c.h.b16 %v622
        %v1994 = vunpack.c.l.b16 %v623
        %v1995 = vunpack.c.h.b16 %v623
        %v1996 = vunpack.c.l.b16 %v624
        %v1997 = vunpack.c.h.b16 %v624
        %v1998 = vunpack.c.l.b16 %v625
        %v1999 = vunpack.c.h.b16 %v625
        %v2000 = vunpack.c.l.b16 %v626
        %v2001 = vunpack.c.h.b16 %v626
        %v2002 = vunpack.c.l.b16 %v627
        %v2003 = vunpack.c.h.b16 %v627
        %v2004 = vunpack.c.l.b16 %v628
        %v2005 = vunpack.c.h.b16 %v628
        %v2006 = vunpack.c.l.b16 %v629
        %v2007 = vunpack.c.h.b16 %v629
        %v2008 = vunpack.c.l.b16 %v630
        %v2009 = vunpack.c.h.b16 %v630
        %v2010 = vunpack.c.l.b16 %v631
        %v2011 = vunpack.c.h.b16 %v631
        %v2012 = vunpack.c.l.b16 %v632
        %v2013 = vunpack.c.h.b16 %v632
        %v2014 = vunpack.c.l.b16 %v633
        %v2015 = vunpack.c.h.b16 %v633
        %v2016 = vunpack.c.l.b16 %v634
        %v2017 = vunpack.c.h.b16 %v634
        %v2018 = vunpack.c.l.b16 %v635
        %v2019 = vunpack.c.h.b16 %v635
        %v2020 = vunpack.c.l.b16 %v636
        %v2021 = vunpack.c.h.b16 %v636
        %v2022 = vunpack.c.l.b16 %v637
        %v2023 = vunpack.c.h.b16 %v637
        %v2024 = vunpack.c.l.b16 %v638
        %v2025 = vunpack.c.h.b16 %v638
        %v2026 = vunpack.c.l.b16 %v639
        %v2027 = vunpack.c.h.b16 %v639
        %v2028 = vunpack.c.l.b16 %v640
        %v2029 = vunpack.c.h.b16 %v640
        %v2030 = vunpack.c.l.b16 %v641
        %v2031 = vunpack.c.h.b16 %v641
        %v2032 = vunpack.c.l.b16 %v642
        %v2033 = vunpack.c.h.b16 %v642
        %v2034 = vunpack.c.l.b16 %v643
        %v2035 = vunpack.c.h.b16 %v643
        %v2036 = vunpack.c.l.b16 %v644
        %v2037 = vunpack.c.h.b16 %v644
        %v2038 = vunpack.c.l.b16 %v645
        %v2039 = vunpack.c.h.b16 %v645
        %v2040 = vunpack.c.l.b16 %v646
        %v2041 = vunpack.c.h.b16 %v646
        %v2042 = vunpack.c.l.b16 %v647
        %v2043 = vunpack.c.h.b16 %v647
        %v2044 = vunpack.c.l.b16 %v648
        %v2045 = vunpack.c.h.b16 %v648
        %v2046 = vunpack.c.l.b16 %v649
        %v2047 = vunpack.c.h.b16 %v649
        %v2048 = vunpack.c.l.b16 %v650
        %v2049 = vunpack.c.h.b16 %v650
        %v2050 = vunpack.c.l.b16 %v651
        %v2051 = vunpack.c.h.b16 %v651
        %v2052 = vunpack.c.l.b16 %v652
        %v2053 = vunpack.c.h.b16 %v652
        %v2054 = vunpack.c.l.b16 %v653
        %v2055 = vunpack.c.h.b16 %v653
        %v2056 = vunpack.c.l.b16 %v654
        %v2057 = vunpack.c.h.b16 %v654
        %v2058 = vunpack.c.l.b16 %v655
        %v2059 = vunpack.c.h.b16 %v655
        %v2060 = vunpack.c.l.b16 %v656
        %v2061 = vunpack.c.h.b16 %v656
        %v2062 = vunpack.c.l.b16 %v657
        %v2063 = vunpack.c.h.b16 %v657
        %v2064 = vunpack.c.l.b16 %v658
        %v2065 = vunpack.c.h.b16 %v658
        %v2066 = vunpack.c.l.b16 %v659
        %v2067 = vunpack.c.h.b16 %v659
        %v2068 = vunpack.c.l.b16 %v660
        %v2069 = vunpack.c.h.b16 %v660
        %v2070 = vunpack.c.l.b16 %v661
        %v2071 = vunpack.c.h.b16 %v661
        %v2072 = vunpack.c.l.b16 %v662
        %v2073 = vunpack.c.h.b16 %v662
        %v2074 = vunpack.c.l.b16 %v663
        %v2075 = vunpack.c.h.b16 %v663
        %v2076 = vunpack.c.l.b16 %v664
        %v2077 = vunpack.c.h.b16 %v664
        %v2078 = vunpack.c.l.b16 %v665
        %v2079 = vunpack.c.h.b16 %v665
        %v2080 = vunpack.c.l.b16 %v666
        %v2081 = vunpack.c.h.b16 %v666
        %v2082 = vunpack.c.l.b16 %v667
        %v2083 = vunpack.c.h.b16 %v667
        %v2084 = vunpack.c.l.b16 %v668
        %v2085 = vunpack.c.h.b16 %v668
        %v2086 = vunpack.c.l.b16 %v669
        %v2087 = vunpack.c.h.b16 %v669
        %v2088 = vunpack.c.l.b16 %v670
        %v2089 = vunpack.c.h.b16 %v670
        %v2090 = vunpack.c.l.b16 %v671
        %v2091 = vunpack.c.h.b16 %v671
        %v2092 = vunpack.c.l.b16 %v672
        %v2093 = vunpack.c.h.b16 %v672
        %v2094 = vunpack.c.l.b16 %v673
        %v2095 = vunpack.c.h.b16 %v673
        %v2096 = vunpack.c.l.b16 %v674
        %v2097 = vunpack.c.h.b16 %v674
        %v2098 = vunpack.c.l.b16 %v675
        %v2099 = vunpack.c.h.b16 %v675
        %v2100 = vunpack.c.l.b16 %v676
        %v2101 = vunpack.c.h.b16 %v676
        %v2102 = vunpack.c.l.b16 %v677
        %v2103 = vunpack.c.h.b16 %v677
        %v2104 = vunpack.c.l.b16 %v678
        %v2105 = vunpack.c.h.b16 %v678
        %v2106 = vunpack.c.l.b16 %v679
        %v2107 = vunpack.c.h.b16 %v679
        %v2108 = vunpack.c.l.b16 %v680
        %v2109 = vunpack.c.h.b16 %v680
        %v2110 = vunpack.c.l.b16 %v681
        %v2111 = vunpack.c.h.b16 %v681
        %v2112 = vunpack.c.l.b16 %v682
        %v2113 = vunpack.c.h.b16 %v682
        %v2114 = vunpack.c.l.b16 %v683
        %v2115 = vunpack.c.h.b16 %v683
        %v2116 = vunpack.c.l.b16 %v684
        %v2117 = vunpack.c.h.b16 %v684
        %v2118 = vunpack.c.l.b16 %v685
        %v2119 = vunpack.c.h.b16 %v685
        %v2120 = vunpack.c.l.b16 %v686
        %v2121 = vunpack.c.h.b16 %v686
        %v2122 = vunpack.c.l.b16 %v687
        %v2123 = vunpack.c.h.b16 %v687
        %v2124 = vunpack.c.l.b16 %v688
        %v2125 = vunpack.c.h.b16 %v688
        %v2126 = vunpack.c.l.b16 %v689
        %v2127 = vunpack.c.h.b16 %v689
        %v2128 = vunpack.c.l.b16 %v690
        %v2129 = vunpack.c.h.b16 %v690
        %v2130 = vunpack.c.l.b16 %v691
        %v2131 = vunpack.c.h.b16 %v691
        %v2132 = vunpack.c.l.b16 %v692
        %v2133 = vunpack.c.h.b16 %v692
        %v2134 = vunpack.c.l.b16 %v693
        %v2135 = vunpack.c.h.b16 %v693
        %v2136 = vunpack.c.l.b16 %v694
        %v2137 = vunpack.c.h.b16 %v694
        %v2138 = vunpack.c.l.b16 %v695
        %v2139 = vunpack.c.h.b16 %v695
        %v2140 = vunpack.c.l.b16 %v696
        %v2141 = vunpack.c.h.b16 %v696
        %v2142 = vunpack.c.l.b16 %v697
        %v2143 = vunpack.c.h.b16 %v697
        %v2144 = vunpack.c.l.b16 %v698
        %v2145 = vunpack.c.h.b16 %v698
        %v2146 = vunpack.c.l.b16 %v699
        %v2147 = vunpack.c.h.b16 %v699
        %v2148 = vunpack.c.l.b16 %v700
        %v2149 = vunpack.c.h.b16 %v700
        %v2150 = vunpack.c.l.b16 %v701
        %v2151 = vunpack.c.h.b16 %v701
        %v2152 = vunpack.c.l.b16 %v702
        %v2153 = vunpack.c.h.b16 %v702
        %v2154 = vunpack.c.l.b16 %v703
        %v2155 = vunpack.c.h.b16 %v703
        %v2156 = vunpack.c.l.b16 %v704
        %v2157 = vunpack.c.h.b16 %v704
        %v2158 = vunpack.c.l.b16 %v705
        %v2159 = vunpack.c.h.b16 %v705
        %v2160 = vunpack.c.l.b16 %v706
        %v2161 = vunpack.c.h.b16 %v706
        %v2162 = vunpack.c.l.b16 %v707
        %v2163 = vunpack.c.h.b16 %v707
        %v2164 = vunpack.c.l.b16 %v708
        %v2165 = vunpack.c.h.b16 %v708
        %v2166 = vunpack.c.l.b16 %v709
        %v2167 = vunpack.c.h.b16 %v709
        %v2168 = vunpack.c.l.b16 %v710
        %v2169 = vunpack.c.h.b16 %v710
        %v2170 = vunpack.c.l.b16 %v711
        %v2171 = vunpack.c.h.b16 %v711
        %v2172 = vunpack.c.l.b16 %v712
        %v2173 = vunpack.c.h.b16 %v712
        %v2174 = vunpack.c.l.b16 %v713
        %v2175 = vunpack.c.h.b16 %v713
        %v2176 = vunpack.c.l.b16 %v714
        %v2177 = vunpack.c.h.b16 %v714
        %v2178 = vunpack.c.l.b16 %v715
        %v2179 = vunpack.c.h.b16 %v715
        %v2180 = vunpack.c.l.b16 %v716
        %v2181 = vunpack.c.h.b16 %v716
        %v2182 = vunpack.c.l.b16 %v717
        %v2183 = vunpack.c.h.b16 %v717
        %v2184 = vunpack.c.l.b16 %v718
        %v2185 = vunpack.c.h.b16 %v718
        %v2186 = vunpack.c.l.b16 %v719
        %v2187 = vunpack.c.h.b16 %v719
        %v2188 = vunpack.c.l.b16 %v720
        %v2189 = vunpack.c.h.b16 %v720
        %v2190 = vunpack.c.l.b16 %v721
        %v2191 = vunpack.c.h.b16 %v721
        %v2192 = vunpack.c.l.b16 %v722
        %v2193 = vunpack.c.h.b16 %v722
        %v2194 = vunpack.c.l.b16 %v723
        %v2195 = vunpack.c.h.b16 %v723
        %v2196 = vunpack.c.l.b16 %v724
        %v2197 = vunpack.c.h.b16 %v724
        %v2198 = vunpack.c.l.b16 %v725
        %v2199 = vunpack.c.h.b16 %v725
        %v2200 = vunpack.c.l.b16 %v726
        %v2201 = vunpack.c.h.b16 %v726
        %v2202 = vunpack.c.l.b16 %v727
        %v2203 = vunpack.c.h.b16 %v727
        %v2204 = vunpack.c.l.b16 %v728
        %v2205 = vunpack.c.h.b16 %v728
        %v2206 = vunpack.c.l.b16 %v729
        %v2207 = vunpack.c.h.b16 %v729
        %v2208 = vunpack.c.l.b16 %v730
        %v2209 = vunpack.c.h.b16 %v730
        %v2210 = vunpack.c.l.b16 %v731
        %v2211 = vunpack.c.h.b16 %v731
        %v2212 = vunpack.c.l.b16 %v732
        %v2213 = vunpack.c.h.b16 %v732
        %v2214 = vunpack.c.l.b16 %v733
        %v2215 = vunpack.c.h.b16 %v733
        %v2216 = vunpack.c.l.b16 %v734
        %v2217 = vunpack.c.h.b16 %v734
        %v2218 = vunpack.c.l.b16 %v735
        %v2219 = vunpack.c.h.b16 %v735
        %v2220 = vunpack.c.l.b16 %v736
        %v2221 = vunpack.c.h.b16 %v736
        %v2222 = vunpack.c.l.b16 %v737
        %v2223 = vunpack.c.h.b16 %v737
        %v2224 = vunpack.c.l.b16 %v738
        %v2225 = vunpack.c.h.b16 %v738
        %v2226 = vunpack.c.l.b16 %v739
        %v2227 = vunpack.c.h.b16 %v739
        %v2228 = vunpack.c.l.b16 %v740
        %v2229 = vunpack.c.h.b16 %v740
        %v2230 = vunpack.c.l.b16 %v741
        %v2231 = vunpack.c.h.b16 %v741
        %v2232 = vunpack.c.l.b16 %v742
        %v2233 = vunpack.c.h.b16 %v742
        %v2234 = vunpack.c.l.b16 %v743
        %v2235 = vunpack.c.h.b16 %v743
        %v2236 = vunpack.c.l.b16 %v744
        %v2237 = vunpack.c.h.b16 %v744
        %v2238 = vunpack.c.l.b16 %v745
        %v2239 = vunpack.c.h.b16 %v745
        %v2240 = vunpack.c.l.b16 %v746
        %v2241 = vunpack.c.h.b16 %v746
        %v2242 = vunpack.c.l.b16 %v747
        %v2243 = vunpack.c.h.b16 %v747
        %v2244 = vunpack.c.l.b16 %v748
        %v2245 = vunpack.c.h.b16 %v748
        %v2246 = vunpack.c.l.b16 %v749
        %v2247 = vunpack.c.h.b16 %v749
        %v2248 = vunpack.c.l.b16 %v750
        %v2249 = vunpack.c.h.b16 %v750
        %v2250 = vunpack.c.l.b16 %v751
        %v2251 = vunpack.c.h.b16 %v751
        %v2252 = vunpack.c.l.b16 %v752
        %v2253 = vunpack.c.h.b16 %v752
        %v2254 = vunpack.c.l.b16 %v753
        %v2255 = vunpack.c.h.b16 %v753
        %v2256 = vunpack.c.l.b16 %v754
        %v2257 = vunpack.c.h.b16 %v754
        %v2258 = vunpack.c.l.b16 %v755
        %v2259 = vunpack.c.h.b16 %v755
        %v2260 = vunpack.c.l.b16 %v756
        %v2261 = vunpack.c.h.b16 %v756
        %v2262 = vunpack.c.l.b16 %v757
        %v2263 = vunpack.c.h.b16 %v757
        %v2264 = vunpack.c.l.b16 %v758
        %v2265 = vunpack.c.h.b16 %v758
        %v2266 = vunpack.c.l.b16 %v759
        %v2267 = vunpack.c.h.b16 %v759
        %v2268 = vunpack.c.l.b16 %v760
        %v2269 = vunpack.c.h.b16 %v760
        %v2270 = vunpack.c.l.b16 %v761
        %v2271 = vunpack.c.h.b16 %v761
        %v2272 = vunpack.c.l.b16 %v762
        %v2273 = vunpack.c.h.b16 %v762
        %v2274 = vunpack.c.l.b16 %v763
        %v2275 = vunpack.c.h.b16 %v763
        %v2276 = vunpack.c.l.b16 %v764
        %v2277 = vunpack.c.h.b16 %v764
        %v2278 = vunpack.c.l.b16 %v765
        %v2279 = vunpack.c.h.b16 %v765
        %v2280 = vunpack.c.l.b16 %v766
        %v2281 = vunpack.c.h.b16 %v766
        %v2282 = vunpack.c.l.b16 %v767
        %v2283 = vunpack.c.h.b16 %v767
        %v2284 = vunpack.c.l.b16 %v768
        %v2285 = vunpack.c.h.b16 %v768
        %v2286 = vunpack.c.l.b16 %v769
        %v2287 = vunpack.c.h.b16 %v769
        %v2288 = vunpack.c.l.b16 %v770
        %v2289 = vunpack.c.h.b16 %v770
        %v2290 = vunpack.c.l.b16 %v771
        %v2291 = vunpack.c.h.b16 %v771
        %v2292 = vunpack.c.l.b16 %v772
        %v2293 = vunpack.c.h.b16 %v772
        %v2294 = vunpack.c.l.b16 %v773
        %v2295 = vunpack.c.h.b16 %v773
        %v2296 = vunpack.c.l.b16 %v774
        %v2297 = vunpack.c.h.b16 %v774
        %v2298 = vunpack.c.l.b16 %v775
        %v2299 = vunpack.c.h.b16 %v775
        %v2300 = vunpack.c.l.b16 %v776
        %v2301 = vunpack.c.h.b16 %v776
        %v2302 = vunpack.c.l.b16 %v777
        %v2303 = vunpack.c.h.b16 %v777
        %v2304 = vunpack.c.l.b16 %v778
        %v2305 = vunpack.c.h.b16 %v778
        %v2306 = vunpack.c.l.b16 %v779
        %v2307 = vunpack.c.h.b16 %v779
        %v2308 = vunpack.c.l.b16 %v780
        %v2309 = vunpack.c.h.b16 %v780
        %v2310 = vunpack.c.l.b16 %v781
        %v2311 = vunpack.c.h.b16 %v781
        %v2312 = vunpack.c.l.b16 %v782
        %v2313 = vunpack.c.h.b16 %v782
        %v2314 = vunpack.c.l.b16 %v783
        %v2315 = vunpack.c.h.b16 %v783
        %v2316 = vunpack.c.l.b16 %v784
        %v2317 = vunpack.c.h.b16 %v784
        %v2318 = vunpack.c.l.b16 %v785
        %v2319 = vunpack.c.h.b16 %v785
        %v2320 = vunpack.c.l.b16 %v786
        %v2321 = vunpack.c.h.b16 %v786
        %v2322 = vunpack.c.l.b16 %v787
        %v2323 = vunpack.c.h.b16 %v787
        %v2324 = vunpack.c.l.b16 %v788
        %v2325 = vunpack.c.h.b16 %v788
        %v2326 = vunpack.c.l.b16 %v789
        %v2327 = vunpack.c.h.b16 %v789
        %v2328 = vunpack.c.l.b16 %v790
        %v2329 = vunpack.c.h.b16 %v790
        %v2330 = vunpack.c.l.b16 %v791
        %v2331 = vunpack.c.h.b16 %v791
        %v2332 = vunpack.c.l.b16 %v792
        %v2333 = vunpack.c.h.b16 %v792
        %v2334 = vunpack.c.l.b16 %v793
        %v2335 = vunpack.c.h.b16 %v793
        %v2336 = vunpack.c.l.b16 %v794
        %v2337 = vunpack.c.h.b16 %v794
        %v2338 = vunpack.c.l.b16 %v795
        %v2339 = vunpack.c.h.b16 %v795
        %v2340 = vunpack.c.l.b16 %v796
        %v2341 = vunpack.c.h.b16 %v796
        %v2342 = vunpack.c.l.b16 %v797
        %v2343 = vunpack.c.h.b16 %v797
        %v2344 = vunpack.c.l.b16 %v798
        %v2345 = vunpack.c.h.b16 %v798
        %v2346 = vunpack.c.l.b16 %v799
        %v2347 = vunpack.c.h.b16 %v799
        %v2348 = vunpack.c.l.b16 %v800
        %v2349 = vunpack.c.h.b16 %v800
        %v2350 = vunpack.c.l.b16 %v801
        %v2351 = vunpack.c.h.b16 %v801
        %v2352 = vunpack.c.l.b16 %v802
        %v2353 = vunpack.c.h.b16 %v802
        %v2354 = vunpack.c.l.b16 %v803
        %v2355 = vunpack.c.h.b16 %v803
        %v2356 = vunpack.c.l.b16 %v804
        %v2357 = vunpack.c.h.b16 %v804
        %v2358 = vunpack.c.l.b16 %v805
        %v2359 = vunpack.c.h.b16 %v805
        %v2360 = vunpack.c.l.b16 %v806
        %v2361 = vunpack.c.h.b16 %v806
        %v2362 = vunpack.c.l.b16 %v807
        %v2363 = vunpack.c.h.b16 %v807
        %v2364 = vunpack.c.l.b16 %v808
        %v2365 = vunpack.c.h.b16 %v808
        %v2366 = vunpack.c.l.b16 %v809
        %v2367 = vunpack.c.h.b16 %v809
        %v2368 = vunpack.c.l.b16 %v810
        %v2369 = vunpack.c.h.b16 %v810
        %v2370 = vunpack.c.l.b16 %v811
        %v2371 = vunpack.c.h.b16 %v811
        %v2372 = vunpack.c.l.b16 %v812
        %v2373 = vunpack.c.h.b16 %v812
        %v2374 = vunpack.c.l.b16 %v813
        %v2375 = vunpack.c.h.b16 %v813
        %v2376 = vunpack.c.l.b16 %v814
        %v2377 = vunpack.c.h.b16 %v814
        %v2378 = vunpack.c.l.b16 %v815
        %v2379 = vunpack.c.h.b16 %v815
        %v2380 = vunpack.c.l.b16 %v816
        %v2381 = vunpack.c.h.b16 %v816
        %v2382 = vunpack.c.l.b16 %v817
        %v2383 = vunpack.c.h.b16 %v817
        %v2384 = vunpack.c.l.b16 %v818
        %v2385 = vunpack.c.h.b16 %v818
        %v2386 = vunpack.c.l.b16 %v819
        %v2387 = vunpack.c.h.b16 %v819
        %v2388 = vunpack.c.l.b16 %v820
        %v2389 = vunpack.c.h.b16 %v820
        %v2390 = vunpack.c.l.b16 %v821
        %v2391 = vunpack.c.h.b16 %v821
        %v2392 = vunpack.c.l.b16 %v822
        %v2393 = vunpack.c.h.b16 %v822
        %v2394 = vunpack.c.l.b16 %v823
        %v2395 = vunpack.c.h.b16 %v823
        %v2396 = vunpack.c.l.b16 %v824
        %v2397 = vunpack.c.h.b16 %v824
        %v2398 = vunpack.c.l.b16 %v825
        %v2399 = vunpack.c.h.b16 %v825
        %v2400 = vunpack.c.l.b16 %v826
        %v2401 = vunpack.c.h.b16 %v826
        %v2402 = vunpack.c.l.b16 %v827
        %v2403 = vunpack.c.h.b16 %v827
        %v2404 = vunpack.c.l.b16 %v828
        %v2405 = vunpack.c.h.b16 %v828
        %v2406 = vunpack.c.l.b16 %v829
        %v2407 = vunpack.c.h.b16 %v829
        %v2408 = vunpack.c.l.b16 %v830
        %v2409 = vunpack.c.h.b16 %v830
        %v2410 = vunpack.c.l.b16 %v831
        %v2411 = vunpack.c.h.b16 %v831
        %v2412 = vunpack.c.l.b16 %v832
        %v2413 = vunpack.c.h.b16 %v832
        %v2414 = vunpack.c.l.b16 %v833
        %v2415 = vunpack.c.h.b16 %v833
        %v2416 = vunpack.c.l.b16 %v834
        %v2417 = vunpack.c.h.b16 %v834
        %v2418 = vunpack.c.l.b16 %v835
        %v2419 = vunpack.c.h.b16 %v835
        %v2420 = vunpack.c.l.b16 %v836
        %v2421 = vunpack.c.h.b16 %v836
        %v2422 = vunpack.c.l.b16 %v837
        %v2423 = vunpack.c.h.b16 %v837
        %v2424 = vunpack.c.l.b16 %v838
        %v2425 = vunpack.c.h.b16 %v838
        %v2426 = vunpack.c.l.b16 %v839
        %v2427 = vunpack.c.h.b16 %v839
        %v2428 = vunpack.c.l.b16 %v840
        %v2429 = vunpack.c.h.b16 %v840
        %v2430 = vunpack.c.l.b16 %v841
        %v2431 = vunpack.c.h.b16 %v841
        %v2432 = vunpack.c.l.b16 %v842
        %v2433 = vunpack.c.h.b16 %v842
        %v2434 = vunpack.c.l.b16 %v843
        %v2435 = vunpack.c.h.b16 %v843
        %v2436 = vunpack.c.l.b16 %v844
        %v2437 = vunpack.c.h.b16 %v844
        %v2438 = vunpack.c.l.b16 %v845
        %v2439 = vunpack.c.h.b16 %v845
        %v2440 = vunpack.c.l.b16 %v846
        %v2441 = vunpack.c.h.b16 %v846
        %v2442 = vunpack.c.l.b16 %v847
        %v2443 = vunpack.c.h.b16 %v847
        %v2444 = vunpack.c.l.b16 %v848
        %v2445 = vunpack.c.h.b16 %v848
        %v2446 = vunpack.c.l.b16 %v849
        %v2447 = vunpack.c.h.b16 %v849
        %v2448 = vunpack.c.l.b16 %v850
        %v2449 = vunpack.c.h.b16 %v850
        %v2450 = vunpack.c.l.b16 %v851
        %v2451 = vunpack.c.h.b16 %v851
        %v2452 = vunpack.c.l.b16 %v852
        %v2453 = vunpack.c.h.b16 %v852
        %v2454 = vunpack.c.l.b16 %v853
        %v2455 = vunpack.c.h.b16 %v853
        %v2456 = vunpack.c.l.b16 %v854
        %v2457 = vunpack.c.h.b16 %v854
        %v2458 = vunpack.c.l.b16 %v855
        %v2459 = vunpack.c.h.b16 %v855
        %v2460 = vunpack.c.l.b16 %v856
        %v2461 = vunpack.c.h.b16 %v856
        %v2462 = vunpack.c.l.b16 %v857
        %v2463 = vunpack.c.h.b16 %v857
        %v2464 = vunpack.c.l.b16 %v858
        %v2465 = vunpack.c.h.b16 %v858
        %v2466 = vunpack.c.l.b16 %v859
        %v2467 = vunpack.c.h.b16 %v859
        %v2468 = vunpack.c.l.b16 %v860
        %v2469 = vunpack.c.h.b16 %v860
        %v2470 = vunpack.c.l.b16 %v861
        %v2471 = vunpack.c.h.b16 %v861
        %v2472 = vunpack.c.l.b16 %v862
        %v2473 = vunpack.c.h.b16 %v862
        %v2474 = vunpack.c.l.b16 %v863
        %v2475 = vunpack.c.h.b16 %v863
        %v2476 = vunpack.c.l.b16 %v864
        %v2477 = vunpack.c.h.b16 %v864
        %v2478 = vunpack.c.l.b16 %v865
        %v2479 = vunpack.c.h.b16 %v865
        %v2480 = vunpack.c.l.b16 %v866
        %v2481 = vunpack.c.h.b16 %v866
        %v2482 = vunpack.c.l.b16 %v867
        %v2483 = vunpack.c.h.b16 %v867
        %v2484 = vunpack.c.l.b16 %v868
        %v2485 = vunpack.c.h.b16 %v868
        %v2486 = vunpack.c.l.b16 %v869
        %v2487 = vunpack.c.h.b16 %v869
        %v2488 = vunpack.c.l.b16 %v870
        %v2489 = vunpack.c.h.b16 %v870
        %v2490 = vunpack.c.l.b16 %v871
        %v2491 = vunpack.c.h.b16 %v871
        %v2492 = vunpack.c.l.b16 %v872
        %v2493 = vunpack.c.h.b16 %v872
        %v2494 = vunpack.c.l.b16 %v873
        %v2495 = vunpack.c.h.b16 %v873
        %v2496 = vunpack.c.l.b16 %v874
        %v2497 = vunpack.c.h.b16 %v874
        %v2498 = vunpack.c.l.b16 %v875
        %v2499 = vunpack.c.h.b16 %v875
        %v2500 = vunpack.c.l.b16 %v876
        %v2501 = vunpack.c.h.b16 %v876
        %v2502 = vunpack.c.l.b16 %v877
        %v2503 = vunpack.c.h.b16 %v877
        %v2504 = vunpack.c.l.b16 %v878
        %v2505 = vunpack.c.h.b16 %v878
        %v2506 = vunpack.c.l.b16 %v879
        %v2507 = vunpack.c.h.b16 %v879
        %v2508 = vunpack.c.l.b16 %v880
        %v2509 = vunpack.c.h.b16 %v880
        %v2510 = vunpack.c.l.b16 %v881
        %v2511 = vunpack.c.h.b16 %v881
        %v2512 = vunpack.c.l.b16 %v882
        %v2513 = vunpack.c.h.b16 %v882
        %v2514 = vunpack.c.l.b16 %v883
        %v2515 = vunpack.c.h.b16 %v883
        %v2516 = vunpack.c.l.b16 %v884
        %v2517 = vunpack.c.h.b16 %v884
        %v2518 = vunpack.c.l.b16 %v885
        %v2519 = vunpack.c.h.b16 %v885
        %v2520 = vunpack.c.l.b16 %v886
        %v2521 = vunpack.c.h.b16 %v886
        %v2522 = vunpack.c.l.b16 %v887
        %v2523 = vunpack.c.h.b16 %v887
        %v2524 = vunpack.c.l.b16 %v888
        %v2525 = vunpack.c.h.b16 %v888
        %v2526 = vunpack.c.l.b16 %v889
        %v2527 = vunpack.c.h.b16 %v889
        %v2528 = vunpack.c.l.b16 %v890
        %v2529 = vunpack.c.h.b16 %v890
        %v2530 = vunpack.c.l.b16 %v891
        %v2531 = vunpack.c.h.b16 %v891
        %v2532 = vunpack.c.l.b16 %v892
        %v2533 = vunpack.c.h.b16 %v892
        %v2534 = vunpack.c.l.b16 %v893
        %v2535 = vunpack.c.h.b16 %v893
        %v2536 = vunpack.c.l.b16 %v894
        %v2537 = vunpack.c.h.b16 %v894
        %v2538 = vunpack.c.l.b16 %v895
        %v2539 = vunpack.c.h.b16 %v895
        %v2540 = vpack.c.b16 %v1524, %v1516
        %v2541 = vpack.c.b16 %v1525, %v1517
        %v2542 = vpack.c.b16 %v1526, %v1518
        %v2543 = vpack.c.b16 %v1527, %v1519
        %v2544 = vpack.c.b16 %v1528, %v1520
        %v2545 = vpack.c.b16 %v1529, %v1521
        %v2546 = vpack.c.b16 %v1530, %v1522
        %v2547 = vpack.c.b16 %v1531, %v1523
        %v2548 = vpack.c.b16 %v1540, %v1532
        %v2549 = vpack.c.b16 %v1541, %v1533
        %v2550 = vpack.c.b16 %v1542, %v1534
        %v2551 = vpack.c.b16 %v1543, %v1535
        %v2552 = vpack.c.b16 %v1544, %v1536
        %v2553 = vpack.c.b16 %v1545, %v1537
        %v2554 = vpack.c.b16 %v1546, %v1538
        %v2555 = vpack.c.b16 %v1547, %v1539
        %v2556 = vpack.c.b16 %v1556, %v1548
        %v2557 = vpack.c.b16 %v1557, %v1549
        %v2558 = vpack.c.b16 %v1558, %v1550
        %v2559 = vpack.c.b16 %v1559, %v1551
        %v2560 = vpack.c.b16 %v1560, %v1552
        %v2561 = vpack.c.b16 %v1561, %v1553
        %v2562 = vpack.c.b16 %v1562, %v1554
        %v2563 = vpack.c.b16 %v1563, %v1555
        %v2564 = vpack.c.b16 %v1572, %v1564
        %v2565 = vpack.c.b16 %v1573, %v1565
        %v2566 = vpack.c.b16 %v1574, %v1566
        %v2567 = vpack.c.b16 %v1575, %v1567
        %v2568 = vpack.c.b16 %v1576, %v1568
        %v2569 = vpack.c.b16 %v1577, %v1569
        %v2570 = vpack.c.b16 %v1578, %v1570
        %v2571 = vpack.c.b16 %v1579, %v1571
        %v2572 = vpack.c.b16 %v1588, %v1580
        %v2573 = vpack.c.b16 %v1589, %v1581
        %v2574 = vpack.c.b16 %v1590, %v1582
        %v2575 = vpack.c.b16 %v1591, %v1583
        %v2576 = vpack.c.b16 %v1592, %v1584
        %v2577 = vpack.c.b16 %v1593, %v1585
        %v2578 = vpack.c.b16 %v1594, %v1586
        %v2579 = vpack.c.b16 %v1595, %v1587
        %v2580 = vpack.c.b16 %v1604, %v1596
        %v2581 = vpack.c.b16 %v1605, %v1597
        %v2582 = vpack.c.b16 %v1606, %v1598
        %v2583 = vpack.c.b16 %v1607, %v1599
        %v2584 = vpack.c.b16 %v1608, %v1600
        %v2585 = vpack.c.b16 %v1609, %v1601
        %v2586 = vpack.c.b16 %v1610, %v1602
        %v2587 = vpack.c.b16 %v1611, %v1603
        %v2588 = vpack.c.b16 %v1620, %v1612
        %v2589 = vpack.c.b16 %v1621, %v1613
        %v2590 = vpack.c.b16 %v1622, %v1614
        %v2591 = vpack.c.b16 %v1623, %v1615
        %v2592 = vpack.c.b16 %v1624, %v1616
        %v2593 = vpack.c.b16 %v1625, %v1617
        %v2594 = vpack.c.b16 %v1626, %v1618
        %v2595 = vpack.c.b16 %v1627, %v1619
        %v2596 = vpack.c.b16 %v1636, %v1628
        %v2597 = vpack.c.b16 %v1637, %v1629
        %v2598 = vpack.c.b16 %v1638, %v1630
        %v2599 = vpack.c.b16 %v1639, %v1631
        %v2600 = vpack.c.b16 %v1640, %v1632
        %v2601 = vpack.c.b16 %v1641, %v1633
        %v2602 = vpack.c.b16 %v1642, %v1634
        %v2603 = vpack.c.b16 %v1643, %v1635
        %v2604 = vpack.c.b16 %v1652, %v1644
        %v2605 = vpack.c.b16 %v1653, %v1645
        %v2606 = vpack.c.b16 %v1654, %v1646
        %v2607 = vpack.c.b16 %v1655, %v1647
        %v2608 = vpack.c.b16 %v1656, %v1648
        %v2609 = vpack.c.b16 %v1657, %v1649
        %v2610 = vpack.c.b16 %v1658, %v1650
        %v2611 = vpack.c.b16 %v1659, %v1651
        %v2612 = vpack.c.b16 %v1668, %v1660
        %v2613 = vpack.c.b16 %v1669, %v1661
        %v2614 = vpack.c.b16 %v1670, %v1662
        %v2615 = vpack.c.b16 %v1671, %v1663
        %v2616 = vpack.c.b16 %v1672, %v1664
        %v2617 = vpack.c.b16 %v1673, %v1665
        %v2618 = vpack.c.b16 %v1674, %v1666
        %v2619 = vpack.c.b16 %v1675, %v1667
        %v2620 = vpack.c.b16 %v1684, %v1676
        %v2621 = vpack.c.b16 %v1685, %v1677
        %v2622 = vpack.c.b16 %v1686, %v1678
        %v2623 = vpack.c.b16 %v1687, %v1679
        %v2624 = vpack.c.b16 %v1688, %v1680
        %v2625 = vpack.c.b16 %v1689, %v1681
        %v2626 = vpack.c.b16 %v1690, %v1682
        %v2627 = vpack.c.b16 %v1691, %v1683
        %v2628 = vpack.c.b16 %v1700, %v1692
        %v2629 = vpack.c.b16 %v1701, %v1693
        %v2630 = vpack.c.b16 %v1702, %v1694
        %v2631 = vpack.c.b16 %v1703, %v1695
        %v2632 = vpack.c.b16 %v1704, %v1696
        %v2633 = vpack.c.b16 %v1705, %v1697
        %v2634 = vpack.c.b16 %v1706, %v1698
        %v2635 = vpack.c.b16 %v1707, %v1699
        %v2636 = vpack.c.b16 %v1716, %v1708
        %v2637 = vpack.c.b16 %v1717, %v1709
        %v2638 = vpack.c.b16 %v1718, %v1710
        %v2639 = vpack.c.b16 %v1719, %v1711
        %v2640 = vpack.c.b16 %v1720, %v1712
        %v2641 = vpack.c.b16 %v1721, %v1713
        %v2642 = vpack.c.b16 %v1722, %v1714
        %v2643 = vpack.c.b16 %v1723, %v1715
        %v2644 = vpack.c.b16 %v1732, %v1724
        %v2645 = vpack.c.b16 %v1733, %v1725
        %v2646 = vpack.c.b16 %v1734, %v1726
        %v2647 = vpack.c.b16 %v1735, %v1727
        %v2648 = vpack.c.b16 %v1736, %v1728
        %v2649 = vpack.c.b16 %v1737, %v1729
        %v2650 = vpack.c.b16 %v1738, %v1730
        %v2651 = vpack.c.b16 %v1739, %v1731
        %v2652 = vpack.c.b16 %v1748, %v1740
        %v2653 = vpack.c.b16 %v1749, %v1741
        %v2654 = vpack.c.b16 %v1750, %v1742
        %v2655 = vpack.c.b16 %v1751, %v1743
        %v2656 = vpack.c.b16 %v1752, %v1744
        %v2657 = vpack.c.b16 %v1753, %v1745
        %v2658 = vpack.c.b16 %v1754, %v1746
        %v2659 = vpack.c.b16 %v1755, %v1747
        %v2660 = vpack.c.b16 %v1764, %v1756
        %v2661 = vpack.c.b16 %v1765, %v1757
        %v2662 = vpack.c.b16 %v1766, %v1758
        %v2663 = vpack.c.b16 %v1767, %v1759
        %v2664 = vpack.c.b16 %v1768, %v1760
        %v2665 = vpack.c.b16 %v1769, %v1761
        %v2666 = vpack.c.b16 %v1770, %v1762
        %v2667 = vpack.c.b16 %v1771, %v1763
        %v2668 = vpack.c.b16 %v1780, %v1772
        %v2669 = vpack.c.b16 %v1781, %v1773
        %v2670 = vpack.c.b16 %v1782, %v1774
        %v2671 = vpack.c.b16 %v1783, %v1775
        %v2672 = vpack.c.b16 %v1784, %v1776
        %v2673 = vpack.c.b16 %v1785, %v1777
        %v2674 = vpack.c.b16 %v1786, %v1778
        %v2675 = vpack.c.b16 %v1787, %v1779
        %v2676 = vpack.c.b16 %v1796, %v1788
        %v2677 = vpack.c.b16 %v1797, %v1789
        %v2678 = vpack.c.b16 %v1798, %v1790
        %v2679 = vpack.c.b16 %v1799, %v1791
        %v2680 = vpack.c.b16 %v1800, %v1792
        %v2681 = vpack.c.b16 %v1801, %v1793
        %v2682 = vpack.c.b16 %v1802, %v1794
        %v2683 = vpack.c.b16 %v1803, %v1795
        %v2684 = vpack.c.b16 %v1812, %v1804
        %v2685 = vpack.c.b16 %v1813, %v1805
        %v2686 = vpack.c.b16 %v1814, %v1806
        %v2687 = vpack.c.b16 %v1815, %v1807
        %v2688 = vpack.c.b16 %v1816, %v1808
        %v2689 = vpack.c.b16 %v1817, %v1809
        %v2690 = vpack.c.b16 %v1818, %v1810
        %v2691 = vpack.c.b16 %v1819, %v1811
        %v2692 = vpack.c.b16 %v1828, %v1820
        %v2693 = vpack.c.b16 %v1829, %v1821
        %v2694 = vpack.c.b16 %v1830, %v1822
        %v2695 = vpack.c.b16 %v1831, %v1823
        %v2696 = vpack.c.b16 %v1832, %v1824
        %v2697 = vpack.c.b16 %v1833, %v1825
        %v2698 = vpack.c.b16 %v1834, %v1826
        %v2699 = vpack.c.b16 %v1835, %v1827
        %v2700 = vpack.c.b16 %v1844, %v1836
        %v2701 = vpack.c.b16 %v1845, %v1837
        %v2702 = vpack.c.b16 %v1846, %v1838
        %v2703 = vpack.c.b16 %v1847, %v1839
        %v2704 = vpack.c.b16 %v1848, %v1840
        %v2705 = vpack.c.b16 %v1849, %v1841
        %v2706 = vpack.c.b16 %v1850, %v1842
        %v2707 = vpack.c.b16 %v1851, %v1843
        %v2708 = vpack.c.b16 %v1860, %v1852
        %v2709 = vpack.c.b16 %v1861, %v1853
        %v2710 = vpack.c.b16 %v1862, %v1854
        %v2711 = vpack.c.b16 %v1863, %v1855
        %v2712 = vpack.c.b16 %v1864, %v1856
        %v2713 = vpack.c.b16 %v1865, %v1857
        %v2714 = vpack.c.b16 %v1866, %v1858
        %v2715 = vpack.c.b16 %v1867, %v1859
        %v2716 = vpack.c.b16 %v1876, %v1868
        %v2717 = vpack.c.b16 %v1877, %v1869
        %v2718 = vpack.c.b16 %v1878, %v1870
        %v2719 = vpack.c.b16 %v1879, %v1871
        %v2720 = vpack.c.b16 %v1880, %v1872
        %v2721 = vpack.c.b16 %v1881, %v1873
        %v2722 = vpack.c.b16 %v1882, %v1874
        %v2723 = vpack.c.b16 %v1883, %v1875
        %v2724 = vpack.c.b16 %v1892, %v1884
        %v2725 = vpack.c.b16 %v1893, %v1885
        %v2726 = vpack.c.b16 %v1894, %v1886
        %v2727 = vpack.c.b16 %v1895, %v1887
        %v2728 = vpack.c.b16 %v1896, %v1888
        %v2729 = vpack.c.b16 %v1897, %v1889
        %v2730 = vpack.c.b16 %v1898, %v1890
        %v2731 = vpack.c.b16 %v1899, %v1891
        %v2732 = vpack.c.b16 %v1908, %v1900
        %v2733 = vpack.c.b16 %v1909, %v1901
        %v2734 = vpack.c.b16 %v1910, %v1902
        %v2735 = vpack.c.b16 %v1911, %v1903
        %v2736 = vpack.c.b16 %v1912, %v1904
        %v2737 = vpack.c.b16 %v1913, %v1905
        %v2738 = vpack.c.b16 %v1914, %v1906
        %v2739 = vpack.c.b16 %v1915, %v1907
        %v2740 = vpack.c.b16 %v1924, %v1916
        %v2741 = vpack.c.b16 %v1925, %v1917
        %v2742 = vpack.c.b16 %v1926, %v1918
        %v2743 = vpack.c.b16 %v1927, %v1919
        %v2744 = vpack.c.b16 %v1928, %v1920
        %v2745 = vpack.c.b16 %v1929, %v1921
        %v2746 = vpack.c.b16 %v1930, %v1922
        %v2747 = vpack.c.b16 %v1931, %v1923
        %v2748 = vpack.c.b16 %v1940, %v1932
        %v2749 = vpack.c.b16 %v1941, %v1933
        %v2750 = vpack.c.b16 %v1942, %v1934
        %v2751 = vpack.c.b16 %v1943, %v1935
        %v2752 = vpack.c.b16 %v1944, %v1936
        %v2753 = vpack.c.b16 %v1945, %v1937
        %v2754 = vpack.c.b16 %v1946, %v1938
        %v2755 = vpack.c.b16 %v1947, %v1939
        %v2756 = vpack.c.b16 %v1956, %v1948
        %v2757 = vpack.c.b16 %v1957, %v1949
        %v2758 = vpack.c.b16 %v1958, %v1950
        %v2759 = vpack.c.b16 %v1959, %v1951
        %v2760 = vpack.c.b16 %v1960, %v1952
        %v2761 = vpack.c.b16 %v1961, %v1953
        %v2762 = vpack.c.b16 %v1962, %v1954
        %v2763 = vpack.c.b16 %v1963, %v1955
        %v2764 = vpack.c.b16 %v1972, %v1964
        %v2765 = vpack.c.b16 %v1973, %v1965
        %v2766 = vpack.c.b16 %v1974, %v1966
        %v2767 = vpack.c.b16 %v1975, %v1967
        %v2768 = vpack.c.b16 %v1976, %v1968
        %v2769 = vpack.c.b16 %v1977, %v1969
        %v2770 = vpack.c.b16 %v1978, %v1970
        %v2771 = vpack.c.b16 %v1979, %v1971
        %v2772 = vpack.c.b16 %v1988, %v1980
        %v2773 = vpack.c.b16 %v1989, %v1981
        %v2774 = vpack.c.b16 %v1990, %v1982
        %v2775 = vpack.c.b16 %v1991, %v1983
        %v2776 = vpack.c.b16 %v1992, %v1984
        %v2777 = vpack.c.b16 %v1993, %v1985
        %v2778 = vpack.c.b16 %v1994, %v1986
        %v2779 = vpack.c.b16 %v1995, %v1987
        %v2780 = vpack.c.b16 %v2004, %v1996
        %v2781 = vpack.c.b16 %v2005, %v1997
        %v2782 = vpack.c.b16 %v2006, %v1998
        %v2783 = vpack.c.b16 %v2007, %v1999
        %v2784 = vpack.c.b16 %v2008, %v2000
        %v2785 = vpack.c.b16 %v2009, %v2001
        %v2786 = vpack.c.b16 %v2010, %v2002
        %v2787 = vpack.c.b16 %v2011, %v2003
        %v2788 = vpack.c.b16 %v2020, %v2012
        %v2789 = vpack.c.b16 %v2021, %v2013
        %v2790 = vpack.c.b16 %v2022, %v2014
        %v2791 = vpack.c.b16 %v2023, %v2015
        %v2792 = vpack.c.b16 %v2024, %v2016
        %v2793 = vpack.c.b16 %v2025, %v2017
        %v2794 = vpack.c.b16 %v2026, %v2018
        %v2795 = vpack.c.b16 %v2027, %v2019
        %v2796 = vpack.c.b16 %v2036, %v2028
        %v2797 = vpack.c.b16 %v2037, %v2029
        %v2798 = vpack.c.b16 %v2038, %v2030
        %v2799 = vpack.c.b16 %v2039, %v2031
        %v2800 = vpack.c.b16 %v2040, %v2032
        %v2801 = vpack.c.b16 %v2041, %v2033
        %v2802 = vpack.c.b16 %v2042, %v2034
        %v2803 = vpack.c.b16 %v2043, %v2035
        %v2804 = vpack.c.b16 %v2052, %v2044
        %v2805 = vpack.c.b16 %v2053, %v2045
        %v2806 = vpack.c.b16 %v2054, %v2046
        %v2807 = vpack.c.b16 %v2055, %v2047
        %v2808 = vpack.c.b16 %v2056, %v2048
        %v2809 = vpack.c.b16 %v2057, %v2049
        %v2810 = vpack.c.b16 %v2058, %v2050
        %v2811 = vpack.c.b16 %v2059, %v2051
        %v2812 = vpack.c.b16 %v2068, %v2060
        %v2813 = vpack.c.b16 %v2069, %v2061
        %v2814 = vpack.c.b16 %v2070, %v2062
        %v2815 = vpack.c.b16 %v2071, %v2063
        %v2816 = vpack.c.b16 %v2072, %v2064
        %v2817 = vpack.c.b16 %v2073, %v2065
        %v2818 = vpack.c.b16 %v2074, %v2066
        %v2819 = vpack.c.b16 %v2075, %v2067
        %v2820 = vpack.c.b16 %v2084, %v2076
        %v2821 = vpack.c.b16 %v2085, %v2077
        %v2822 = vpack.c.b16 %v2086, %v2078
        %v2823 = vpack.c.b16 %v2087, %v2079
        %v2824 = vpack.c.b16 %v2088, %v2080
        %v2825 = vpack.c.b16 %v2089, %v2081
        %v2826 = vpack.c.b16 %v2090, %v2082
        %v2827 = vpack.c.b16 %v2091, %v2083
        %v2828 = vpack.c.b16 %v2100, %v2092
        %v2829 = vpack.c.b16 %v2101, %v2093
        %v2830 = vpack.c.b16 %v2102, %v2094
        %v2831 = vpack.c.b16 %v2103, %v2095
        %v2832 = vpack.c.b16 %v2104, %v2096
        %v2833 = vpack.c.b16 %v2105, %v2097
        %v2834 = vpack.c.b16 %v2106, %v2098
        %v2835 = vpack.c.b16 %v2107, %v2099
        %v2836 = vpack.c.b16 %v2116, %v2108
        %v2837 = vpack.c.b16 %v2117, %v2109
        %v2838 = vpack.c.b16 %v2118, %v2110
        %v2839 = vpack.c.b16 %v2119, %v2111
        %v2840 = vpack.c.b16 %v2120, %v2112
        %v2841 = vpack.c.b16 %v2121, %v2113
        %v2842 = vpack.c.b16 %v2122, %v2114
        %v2843 = vpack.c.b16 %v2123, %v2115
        %v2844 = vpack.c.b16 %v2132, %v2124
        %v2845 = vpack.c.b16 %v2133, %v2125
        %v2846 = vpack.c.b16 %v2134, %v2126
        %v2847 = vpack.c.b16 %v2135, %v2127
        %v2848 = vpack.c.b16 %v2136, %v2128
        %v2849 = vpack.c.b16 %v2137, %v2129
        %v2850 = vpack.c.b16 %v2138, %v2130
        %v2851 = vpack.c.b16 %v2139, %v2131
        %v2852 = vpack.c.b16 %v2148, %v2140
        %v2853 = vpack.c.b16 %v2149, %v2141
        %v2854 = vpack.c.b16 %v2150, %v2142
        %v2855 = vpack.c.b16 %v2151, %v2143
        %v2856 = vpack.c.b16 %v2152, %v2144
        %v2857 = vpack.c.b16 %v2153, %v2145
        %v2858 = vpack.c.b16 %v2154, %v2146
        %v2859 = vpack.c.b16 %v2155, %v2147
        %v2860 = vpack.c.b16 %v2164, %v2156
        %v2861 = vpack.c.b16 %v2165, %v2157
        %v2862 = vpack.c.b16 %v2166, %v2158
        %v2863 = vpack.c.b16 %v2167, %v2159
        %v2864 = vpack.c.b16 %v2168, %v2160
        %v2865 = vpack.c.b16 %v2169, %v2161
        %v2866 = vpack.c.b16 %v2170, %v2162
        %v2867 = vpack.c.b16 %v2171, %v2163
        %v2868 = vpack.c.b16 %v2180, %v2172
        %v2869 = vpack.c.b16 %v2181, %v2173
        %v2870 = vpack.c.b16 %v2182, %v2174
        %v2871 = vpack.c.b16 %v2183, %v2175
        %v2872 = vpack.c.b16 %v2184, %v2176
        %v2873 = vpack.c.b16 %v2185, %v2177
        %v2874 = vpack.c.b16 %v2186, %v2178
        %v2875 = vpack.c.b16 %v2187, %v2179
        %v2876 = vpack.c.b16 %v2196, %v2188
        %v2877 = vpack.c.b16 %v2197, %v2189
        %v2878 = vpack.c.b16 %v2198, %v2190
        %v2879 = vpack.c.b16 %v2199, %v2191
        %v2880 = vpack.c.b16 %v2200, %v2192
        %v2881 = vpack.c.b16 %v2201, %v2193
        %v2882 = vpack.c.b16 %v2202, %v2194
        %v2883 = vpack.c.b16 %v2203, %v2195
        %v2884 = vpack.c.b16 %v2212, %v2204
        %v2885 = vpack.c.b16 %v2213, %v2205
        %v2886 = vpack.c.b16 %v2214, %v2206
        %v2887 = vpack.c.b16 %v2215, %v2207
        %v2888 = vpack.c.b16 %v2216, %v2208
        %v2889 = vpack.c.b16 %v2217, %v2209
        %v2890 = vpack.c.b16 %v2218, %v2210
        %v2891 = vpack.c.b16 %v2219, %v2211
        %v2892 = vpack.c.b16 %v2228, %v2220
        %v2893 = vpack.c.b16 %v2229, %v2221
        %v2894 = vpack.c.b16 %v2230, %v2222
        %v2895 = vpack.c.b16 %v2231, %v2223
        %v2896 = vpack.c.b16 %v2232, %v2224
        %v2897 = vpack.c.b16 %v2233, %v2225
        %v2898 = vpack.c.b16 %v2234, %v2226
        %v2899 = vpack.c.b16 %v2235, %v2227
        %v2900 = vpack.c.b16 %v2244, %v2236
        %v2901 = vpack.c.b16 %v2245, %v2237
        %v2902 = vpack.c.b16 %v2246, %v2238
        %v2903 = vpack.c.b16 %v2247, %v2239
        %v2904 = vpack.c.b16 %v2248, %v2240
        %v2905 = vpack.c.b16 %v2249, %v2241
        %v2906 = vpack.c.b16 %v2250, %v2242
        %v2907 = vpack.c.b16 %v2251, %v2243
        %v2908 = vpack.c.b16 %v2260, %v2252
        %v2909 = vpack.c.b16 %v2261, %v2253
        %v2910 = vpack.c.b16 %v2262, %v2254
        %v2911 = vpack.c.b16 %v2263, %v2255
        %v2912 = vpack.c.b16 %v2264, %v2256
        %v2913 = vpack.c.b16 %v2265, %v2257
        %v2914 = vpack.c.b16 %v2266, %v2258
        %v2915 = vpack.c.b16 %v2267, %v2259
        %v2916 = vpack.c.b16 %v2276, %v2268
        %v2917 = vpack.c.b16 %v2277, %v2269
        %v2918 = vpack.c.b16 %v2278, %v2270
        %v2919 = vpack.c.b16 %v2279, %v2271
        %v2920 = vpack.c.b16 %v2280, %v2272
        %v2921 = vpack.c.b16 %v2281, %v2273
        %v2922 = vpack.c.b16 %v2282, %v2274
        %v2923 = vpack.c.b16 %v2283, %v2275
        %v2924 = vpack.c.b16 %v2292, %v2284
        %v2925 = vpack.c.b16 %v2293, %v2285
        %v2926 = vpack.c.b16 %v2294, %v2286
        %v2927 = vpack.c.b16 %v2295, %v2287
        %v2928 = vpack.c.b16 %v2296, %v2288
        %v2929 = vpack.c.b16 %v2297, %v2289
        %v2930 = vpack.c.b16 %v2298, %v2290
        %v2931 = vpack.c.b16 %v2299, %v2291
        %v2932 = vpack.c.b16 %v2308, %v2300
        %v2933 = vpack.c.b16 %v2309, %v2301
        %v2934 = vpack.c.b16 %v2310, %v2302
        %v2935 = vpack.c.b16 %v2311, %v2303
        %v2936 = vpack.c.b16 %v2312, %v2304
        %v2937 = vpack.c.b16 %v2313, %v2305
        %v2938 = vpack.c.b16 %v2314, %v2306
        %v2939 = vpack.c.b16 %v2315, %v2307
        %v2940 = vpack.c.b16 %v2324, %v2316
        %v2941 = vpack.c.b16 %v2325, %v2317
        %v2942 = vpack.c.b16 %v2326, %v2318
        %v2943 = vpack.c.b16 %v2327, %v2319
        %v2944 = vpack.c.b16 %v2328, %v2320
        %v2945 = vpack.c.b16 %v2329, %v2321
        %v2946 = vpack.c.b16 %v2330, %v2322
        %v2947 = vpack.c.b16 %v2331, %v2323
        %v2948 = vpack.c.b16 %v2340, %v2332
        %v2949 = vpack.c.b16 %v2341, %v2333
        %v2950 = vpack.c.b16 %v2342, %v2334
        %v2951 = vpack.c.b16 %v2343, %v2335
        %v2952 = vpack.c.b16 %v2344, %v2336
        %v2953 = vpack.c.b16 %v2345, %v2337
        %v2954 = vpack.c.b16 %v2346, %v2338
        %v2955 = vpack.c.b16 %v2347, %v2339
        %v2956 = vpack.c.b16 %v2356, %v2348
        %v2957 = vpack.c.b16 %v2357, %v2349
        %v2958 = vpack.c.b16 %v2358, %v2350
        %v2959 = vpack.c.b16 %v2359, %v2351
        %v2960 = vpack.c.b16 %v2360, %v2352
        %v2961 = vpack.c.b16 %v2361, %v2353
        %v2962 = vpack.c.b16 %v2362, %v2354
        %v2963 = vpack.c.b16 %v2363, %v2355
        %v2964 = vpack.c.b16 %v2372, %v2364
        %v2965 = vpack.c.b16 %v2373, %v2365
        %v2966 = vpack.c.b16 %v2374, %v2366
        %v2967 = vpack.c.b16 %v2375, %v2367
        %v2968 = vpack.c.b16 %v2376, %v2368
        %v2969 = vpack.c.b16 %v2377, %v2369
        %v2970 = vpack.c.b16 %v2378, %v2370
        %v2971 = vpack.c.b16 %v2379, %v2371
        %v2972 = vpack.c.b16 %v2388, %v2380
        %v2973 = vpack.c.b16 %v2389, %v2381
        %v2974 = vpack.c.b16 %v2390, %v2382
        %v2975 = vpack.c.b16 %v2391, %v2383
        %v2976 = vpack.c.b16 %v2392, %v2384
        %v2977 = vpack.c.b16 %v2393, %v2385
        %v2978 = vpack.c.b16 %v2394, %v2386
        %v2979 = vpack.c.b16 %v2395, %v2387
        %v2980 = vpack.c.b16 %v2404, %v2396
        %v2981 = vpack.c.b16 %v2405, %v2397
        %v2982 = vpack.c.b16 %v2406, %v2398
        %v2983 = vpack.c.b16 %v2407, %v2399
        %v2984 = vpack.c.b16 %v2408, %v2400
        %v2985 = vpack.c.b16 %v2409, %v2401
        %v2986 = vpack.c.b16 %v2410, %v2402
        %v2987 = vpack.c.b16 %v2411, %v2403
        %v2988 = vpack.c.b16 %v2420, %v2412
        %v2989 = vpack.c.b16 %v2421, %v2413
        %v2990 = vpack.c.b16 %v2422, %v2414
        %v2991 = vpack.c.b16 %v2423, %v2415
        %v2992 = vpack.c.b16 %v2424, %v2416
        %v2993 = vpack.c.b16 %v2425, %v2417
        %v2994 = vpack.c.b16 %v2426, %v2418
        %v2995 = vpack.c.b16 %v2427, %v2419
        %v2996 = vpack.c.b16 %v2436, %v2428
        %v2997 = vpack.c.b16 %v2437, %v2429
        %v2998 = vpack.c.b16 %v2438, %v2430
        %v2999 = vpack.c.b16 %v2439, %v2431
        %v3000 = vpack.c.b16 %v2440, %v2432
        %v3001 = vpack.c.b16 %v2441, %v2433
        %v3002 = vpack.c.b16 %v2442, %v2434
        %v3003 = vpack.c.b16 %v2443, %v2435
        %v3004 = vpack.c.b16 %v2452, %v2444
        %v3005 = vpack.c.b16 %v2453, %v2445
        %v3006 = vpack.c.b16 %v2454, %v2446
        %v3007 = vpack.c.b16 %v2455, %v2447
        %v3008 = vpack.c.b16 %v2456, %v2448
        %v3009 = vpack.c.b16 %v2457, %v2449
        %v3010 = vpack.c.b16 %v2458, %v2450
        %v3011 = vpack.c.b16 %v2459, %v2451
        %v3012 = vpack.c.b16 %v2468, %v2460
        %v3013 = vpack.c.b16 %v2469, %v2461
        %v3014 = vpack.c.b16 %v2470, %v2462
        %v3015 = vpack.c.b16 %v2471, %v2463
        %v3016 = vpack.c.b16 %v2472, %v2464
        %v3017 = vpack.c.b16 %v2473, %v2465
        %v3018 = vpack.c.b16 %v2474, %v2466
        %v3019 = vpack.c.b16 %v2475, %v2467
        %v3020 = vpack.c.b16 %v2484, %v2476
        %v3021 = vpack.c.b16 %v2485, %v2477
        %v3022 = vpack.c.b16 %v2486, %v2478
        %v3023 = vpack.c.b16 %v2487, %v2479
        %v3024 = vpack.c.b16 %v2488, %v2480
        %v3025 = vpack.c.b16 %v2489, %v2481
        %v3026 = vpack.c.b16 %v2490, %v2482
        %v3027 = vpack.c.b16 %v2491, %v2483
        %v3028 = vpack.c.b16 %v2500, %v2492
        %v3029 = vpack.c.b16 %v2501, %v2493
        %v3030 = vpack.c.b16 %v2502, %v2494
        %v3031 = vpack.c.b16 %v2503, %v2495
        %v3032 = vpack.c.b16 %v2504, %v2496
        %v3033 = vpack.c.b16 %v2505, %v2497
        %v3034 = vpack.c.b16 %v2506, %v2498
        %v3035 = vpack.c.b16 %v2507, %v2499
        %v3036 = vpack.c.b16 %v2516, %v2508
        %v3037 = vpack.c.b16 %v2517, %v2509
        %v3038 = vpack.c.b16 %v2518, %v2510
        %v3039 = vpack.c.b16 %v2519, %v2511
        %v3040 = vpack.c.b16 %v2520, %v2512
        %v3041 = vpack.c.b16 %v2521, %v2513
        %v3042 = vpack.c.b16 %v2522, %v2514
        %v3043 = vpack.c.b16 %v2523, %v2515
        %v3044 = vpack.c.b16 %v2532, %v2524
        %v3045 = vpack.c.b16 %v2533, %v2525
        %v3046 = vpack.c.b16 %v2534, %v2526
        %v3047 = vpack.c.b16 %v2535, %v2527
        %v3048 = vpack.c.b16 %v2536, %v2528
        %v3049 = vpack.c.b16 %v2537, %v2529
        %v3050 = vpack.c.b16 %v2538, %v2530
        %v3051 = vpack.c.b16 %v2539, %v2531
        %3564 = vmatprep.subr.bf16.mxu0 %v2541
        %3565 = vmatpush1.bf16.msra.mxu0 %v2540
        %3566 = vmatprep.subr.bf16.mxu0 %v2549
        %3567 = vmatpush1.bf16.msra.mxu0 %v2548
        %3568 = vmatprep.subr.bf16.mxu0 %v2557
        %3569 = vmatpush1.bf16.msra.mxu0 %v2556
        %3570 = vmatprep.subr.bf16.mxu0 %v2565
        %3571 = vmatpush1.bf16.msra.mxu0 %v2564
        %3572 = vmatprep.subr.bf16.mxu0 %v2573
        %3573 = vmatpush1.bf16.msra.mxu0 %v2572
        %3574 = vmatprep.subr.bf16.mxu0 %v2581
        %3575 = vmatpush1.bf16.msra.mxu0 %v2580
        %3576 = vmatprep.subr.bf16.mxu0 %v2589
        %3577 = vmatpush1.bf16.msra.mxu0 %v2588
        %3578 = vmatprep.subr.bf16.mxu0 %v2597
        %3579 = vmatpush1.bf16.msra.mxu0 %v2596
        %3580 = vmatprep.subr.bf16.mxu0 %v2605
        %3581 = vmatpush1.bf16.msra.mxu0 %v2604
        %3582 = vmatprep.subr.bf16.mxu0 %v2613
        %3583 = vmatpush1.bf16.msra.mxu0 %v2612
        %3584 = vmatprep.subr.bf16.mxu0 %v2621
        %3585 = vmatpush1.bf16.msra.mxu0 %v2620
        %3586 = vmatprep.subr.bf16.mxu0 %v2629
        %3587 = vmatpush1.bf16.msra.mxu0 %v2628
        %3588 = vmatprep.subr.bf16.mxu0 %v2637
        %3589 = vmatpush1.bf16.msra.mxu0 %v2636
        %3590 = vmatprep.subr.bf16.mxu0 %v2645
        %3591 = vmatpush1.bf16.msra.mxu0 %v2644
        %3592 = vmatprep.subr.bf16.mxu0 %v2653
        %3593 = vmatpush1.bf16.msra.mxu0 %v2652
        %3594 = vmatprep.subr.bf16.mxu0 %v2661
        %3595 = vmatpush1.bf16.msra.mxu0 %v2660
        %3596 = vmatprep.mubr.bf16.mxu0 %v984
        %3597 = vmatmul.mubr.bf16.gmra.mrb[0].mxu0 %v970
        %v3598 = vpop.f32.mrb[0].mxu0
        %v3599 = vadd.f32 %v909, %v3598
        %v3600 = vpop.f32.mrb[0].mxu0
        %v3601 = vadd.f32 %v913, %v3600
        %v3602 = vpop.f32.mrb[0].mxu0
        %v3603 = vpop.f32.mrb[0].mxu0
        %3604 = vdwg.mxu0
        %3605 = vmatprep.subr.bf16.mxu0 %v2669
        %3606 = vmatpush1.bf16.msra.mxu0 %v2668
        %3607 = vmatprep.subr.bf16.mxu0 %v2677
        %3608 = vmatpush1.bf16.msra.mxu0 %v2676
        %3609 = vmatprep.subr.bf16.mxu0 %v2685
        %3610 = vmatpush1.bf16.msra.mxu0 %v2684
        %3611 = vmatprep.subr.bf16.mxu0 %v2693
        %3612 = vmatpush1.bf16.msra.mxu0 %v2692
        %3613 = vmatprep.subr.bf16.mxu0 %v2701
        %3614 = vmatpush1.bf16.msra.mxu0 %v2700
        %3615 = vmatprep.subr.bf16.mxu0 %v2709
        %3616 = vmatpush1.bf16.msra.mxu0 %v2708
        %3617 = vmatprep.subr.bf16.mxu0 %v2717
        %3618 = vmatpush1.bf16.msra.mxu0 %v2716
        %3619 = vmatprep.subr.bf16.mxu0 %v2725
        %3620 = vmatpush1.bf16.msra.mxu0 %v2724
        %3621 = vmatprep.subr.bf16.mxu0 %v2733
        %3622 = vmatpush1.bf16.msra.mxu0 %v2732
        %3623 = vmatprep.subr.bf16.mxu0 %v2741
        %3624 = vmatpush1.bf16.msra.mxu0 %v2740
        %3625 = vmatprep.subr.bf16.mxu0 %v2749
        %3626 = vmatpush1.bf16.msra.mxu0 %v2748
        %3627 = vmatprep.subr.bf16.mxu0 %v2757
        %3628 = vmatpush1.bf16.msra.mxu0 %v2756
        %3629 = vmatprep.subr.bf16.mxu0 %v2765
        %3630 = vmatpush1.bf16.msra.mxu0 %v2764
        %3631 = vmatprep.subr.bf16.mxu0 %v2773
        %3632 = vmatpush1.bf16.msra.mxu0 %v2772
        %3633 = vmatprep.subr.bf16.mxu0 %v2781
        %3634 = vmatpush1.bf16.msra.mxu0 %v2780
        %3635 = vmatprep.subr.bf16.mxu0 %v2789
        %3636 = vmatpush1.bf16.msra.mxu0 %v2788
        %3637 = vmatprep.mubr.bf16.mxu0 %v994
        %3638 = vmatmul.mubr.bf16.gmra.mrb[0].mxu0 %v992
        %v3639 = vpop.f32.mrb[0].mxu0
        %v3640 = vadd.f32 %v3599, %v3639
        %v3641 = vpop.f32.mrb[0].mxu0
        %v3642 = vadd.f32 %v3601, %v3641
        %v3643 = vpop.f32.mrb[0].mxu0
        %v3644 = vpop.f32.mrb[0].mxu0
        %3645 = vdwg.mxu0
        %3646 = vmatprep.subr.bf16.mxu0 %v2797
        %3647 = vmatpush1.bf16.msra.mxu0 %v2796
        %3648 = vmatprep.subr.bf16.mxu0 %v2805
        %3649 = vmatpush1.bf16.msra.mxu0 %v2804
        %3650 = vmatprep.subr.bf16.mxu0 %v2813
        %3651 = vmatpush1.bf16.msra.mxu0 %v2812
        %3652 = vmatprep.subr.bf16.mxu0 %v2821
        %3653 = vmatpush1.bf16.msra.mxu0 %v2820
        %3654 = vmatprep.subr.bf16.mxu0 %v2829
        %3655 = vmatpush1.bf16.msra.mxu0 %v2828
        %3656 = vmatprep.subr.bf16.mxu0 %v2837
        %3657 = vmatpush1.bf16.msra.mxu0 %v2836
        %3658 = vmatprep.subr.bf16.mxu0 %v2845
        %3659 = vmatpush1.bf16.msra.mxu0 %v2844
        %3660 = vmatprep.subr.bf16.mxu0 %v2853
        %3661 = vmatpush1.bf16.msra.mxu0 %v2852
        %3662 = vmatprep.subr.bf16.mxu0 %v2861
        %3663 = vmatpush1.bf16.msra.mxu0 %v2860
        %3664 = vmatprep.subr.bf16.mxu0 %v2869
        %3665 = vmatpush1.bf16.msra.mxu0 %v2868
        %3666 = vmatprep.subr.bf16.mxu0 %v2877
        %3667 = vmatpush1.bf16.msra.mxu0 %v2876
        %3668 = vmatprep.subr.bf16.mxu0 %v2885
        %3669 = vmatpush1.bf16.msra.mxu0 %v2884
        %3670 = vmatprep.subr.bf16.mxu0 %v2893
        %3671 = vmatpush1.bf16.msra.mxu0 %v2892
        %3672 = vmatprep.subr.bf16.mxu0 %v2901
        %3673 = vmatpush1.bf16.msra.mxu0 %v2900
        %3674 = vmatprep.subr.bf16.mxu0 %v2909
        %3675 = vmatpush1.bf16.msra.mxu0 %v2908
        %3676 = vmatprep.subr.bf16.mxu0 %v2917
        %3677 = vmatpush1.bf16.msra.mxu0 %v2916
        %3678 = vmatprep.mubr.bf16.mxu0 %v991
        %3679 = vmatmul.mubr.bf16.gmra.mrb[0].mxu0 %v977
        %v3680 = vpop.f32.mrb[0].mxu0
        %v3681 = vadd.f32 %v3640, %v3680
        %v3682 = vpop.f32.mrb[0].mxu0
        %v3683 = vadd.f32 %v3642, %v3682
        %v3684 = vpop.f32.mrb[0].mxu0
        %v3685 = vpop.f32.mrb[0].mxu0
        %3686 = vdwg.mxu0
        %3687 = vmatprep.subr.bf16.mxu0 %v2925
        %3688 = vmatpush1.bf16.msra.mxu0 %v2924
        %3689 = vmatprep.subr.bf16.mxu0 %v2933
        %3690 = vmatpush1.bf16.msra.mxu0 %v2932
        %3691 = vmatprep.subr.bf16.mxu0 %v2941
        %3692 = vmatpush1.bf16.msra.mxu0 %v2940
        %3693 = vmatprep.subr.bf16.mxu0 %v2949
        %3694 = vmatpush1.bf16.msra.mxu0 %v2948
        %3695 = vmatprep.subr.bf16.mxu0 %v2957
        %3696 = vmatpush1.bf16.msra.mxu0 %v2956
        %3697 = vmatprep.subr.bf16.mxu0 %v2965
        %3698 = vmatpush1.bf16.msra.mxu0 %v2964
        %3699 = vmatprep.subr.bf16.mxu0 %v2973
        %3700 = vmatpush1.bf16.msra.mxu0 %v2972
        %3701 = vmatprep.subr.bf16.mxu0 %v2981
        %3702 = vmatpush1.bf16.msra.mxu0 %v2980
        %3703 = vmatprep.subr.bf16.mxu0 %v2989
        %3704 = vmatpush1.bf16.msra.mxu0 %v2988
        %3705 = vmatprep.subr.bf16.mxu0 %v2997
        %3706 = vmatpush1.bf16.msra.mxu0 %v2996
        %3707 = vmatprep.subr.bf16.mxu0 %v3005
        %3708 = vmatpush1.bf16.msra.mxu0 %v3004
        %3709 = vmatprep.subr.bf16.mxu0 %v3013
        %3710 = vmatpush1.bf16.msra.mxu0 %v3012
        %3711 = vmatprep.subr.bf16.mxu0 %v3021
        %3712 = vmatpush1.bf16.msra.mxu0 %v3020
        %3713 = vmatprep.subr.bf16.mxu0 %v3029
        %3714 = vmatpush1.bf16.msra.mxu0 %v3028
        %3715 = vmatprep.subr.bf16.mxu0 %v3037
        %3716 = vmatpush1.bf16.msra.mxu0 %v3036
        %3717 = vmatprep.subr.bf16.mxu0 %v3045
        %3718 = vmatpush1.bf16.msra.mxu0 %v3044
        %3719 = vmatprep.mubr.bf16.mxu0 %v995
        %3720 = vmatmul.mubr.bf16.gmra.mrb[0].mxu0 %v993
        %v3721 = vpop.f32.mrb[0].mxu0
        %v3722 = vadd.f32 %v3681, %v3721
        %v3723 = vpop.f32.mrb[0].mxu0
        %v3724 = vadd.f32 %v3683, %v3723
        %v3725 = vpop.f32.mrb[0].mxu0
        %v3726 = vpop.f32.mrb[0].mxu0
        %3727 = vdwg.mxu0
        %3728 = vmatprep.subr.bf16.mxu0 %v2543
        %3729 = vmatpush1.bf16.msra.mxu0 %v2542
        %3730 = vmatprep.subr.bf16.mxu0 %v2551
        %3731 = vmatpush1.bf16.msra.mxu0 %v2550
        %3732 = vmatprep.subr.bf16.mxu0 %v2559
        %3733 = vmatpush1.bf16.msra.mxu0 %v2558
        %3734 = vmatprep.subr.bf16.mxu0 %v2567
        %3735 = vmatpush1.bf16.msra.mxu0 %v2566
        %3736 = vmatprep.subr.bf16.mxu0 %v2575
        %3737 = vmatpush1.bf16.msra.mxu0 %v2574
        %3738 = vmatprep.subr.bf16.mxu0 %v2583
        %3739 = vmatpush1.bf16.msra.mxu0 %v2582
        %3740 = vmatprep.subr.bf16.mxu0 %v2591
        %3741 = vmatpush1.bf16.msra.mxu0 %v2590
        %3742 = vmatprep.subr.bf16.mxu0 %v2599
        %3743 = vmatpush1.bf16.msra.mxu0 %v2598
        %3744 = vmatprep.subr.bf16.mxu0 %v2607
        %3745 = vmatpush1.bf16.msra.mxu0 %v2606
        %3746 = vmatprep.subr.bf16.mxu0 %v2615
        %3747 = vmatpush1.bf16.msra.mxu0 %v2614
        %3748 = vmatprep.subr.bf16.mxu0 %v2623
        %3749 = vmatpush1.bf16.msra.mxu0 %v2622
        %3750 = vmatprep.subr.bf16.mxu0 %v2631
        %3751 = vmatpush1.bf16.msra.mxu0 %v2630
        %3752 = vmatprep.subr.bf16.mxu0 %v2639
        %3753 = vmatpush1.bf16.msra.mxu0 %v2638
        %3754 = vmatprep.subr.bf16.mxu0 %v2647
        %3755 = vmatpush1.bf16.msra.mxu0 %v2646
        %3756 = vmatprep.subr.bf16.mxu0 %v2655
        %3757 = vmatpush1.bf16.msra.mxu0 %v2654
        %3758 = vmatprep.subr.bf16.mxu0 %v2663
        %3759 = vmatpush1.bf16.msra.mxu0 %v2662
        %3760 = vmatprep.mubr.bf16.mxu0 %v984
        %3761 = vmatmul.mubr.bf16.gmra.mrb[0].mxu0 %v970
        %v3762 = vpop.f32.mrb[0].mxu0
        %v3763 = vadd.f32 %v917, %v3762
        %v3764 = vpop.f32.mrb[0].mxu0
        %v3765 = vadd.f32 %v921, %v3764
        %v3766 = vpop.f32.mrb[0].mxu0
        %v3767 = vpop.f32.mrb[0].mxu0
        %3768 = vdwg.mxu0
        %3769 = vmatprep.subr.bf16.mxu0 %v2671
        %3770 = vmatpush1.bf16.msra.mxu0 %v2670
        %3771 = vmatprep.subr.bf16.mxu0 %v2679
        %3772 = vmatpush1.bf16.msra.mxu0 %v2678
        %3773 = vmatprep.subr.bf16.mxu0 %v2687
        %3774 = vmatpush1.bf16.msra.mxu0 %v2686
        %3775 = vmatprep.subr.bf16.mxu0 %v2695
        %3776 = vmatpush1.bf16.msra.mxu0 %v2694
        %3777 = vmatprep.subr.bf16.mxu0 %v2703
        %3778 = vmatpush1.bf16.msra.mxu0 %v2702
        %3779 = vmatprep.subr.bf16.mxu0 %v2711
        %3780 = vmatpush1.bf16.msra.mxu0 %v2710
        %3781 = vmatprep.subr.bf16.mxu0 %v2719
        %3782 = vmatpush1.bf16.msra.mxu0 %v2718
        %3783 = vmatprep.subr.bf16.mxu0 %v2727
        %3784 = vmatpush1.bf16.msra.mxu0 %v2726
        %3785 = vmatprep.subr.bf16.mxu0 %v2735
        %3786 = vmatpush1.bf16.msra.mxu0 %v2734
        %3787 = vmatprep.subr.bf16.mxu0 %v2743
        %3788 = vmatpush1.bf16.msra.mxu0 %v2742
        %3789 = vmatprep.subr.bf16.mxu0 %v2751
        %3790 = vmatpush1.bf16.msra.mxu0 %v2750
        %3791 = vmatprep.subr.bf16.mxu0 %v2759
        %3792 = vmatpush1.bf16.msra.mxu0 %v2758
        %3793 = vmatprep.subr.bf16.mxu0 %v2767
        %3794 = vmatpush1.bf16.msra.mxu0 %v2766
        %3795 = vmatprep.subr.bf16.mxu0 %v2775
        %3796 = vmatpush1.bf16.msra.mxu0 %v2774
        %3797 = vmatprep.subr.bf16.mxu0 %v2783
        %3798 = vmatpush1.bf16.msra.mxu0 %v2782
        %3799 = vmatprep.subr.bf16.mxu0 %v2791
        %3800 = vmatpush1.bf16.msra.mxu0 %v2790
        %3801 = vmatprep.mubr.bf16.mxu0 %v994
        %3802 = vmatmul.mubr.bf16.gmra.mrb[0].mxu0 %v992
        %v3803 = vpop.f32.mrb[0].mxu0
        %v3804 = vadd.f32 %v3763, %v3803
        %v3805 = vpop.f32.mrb[0].mxu0
        %v3806 = vadd.f32 %v3765, %v3805
        %v3807 = vpop.f32.mrb[0].mxu0
        %v3808 = vpop.f32.mrb[0].mxu0
        %3809 = vdwg.mxu0
        %3810 = vmatprep.subr.bf16.mxu0 %v2799
        %3811 = vmatpush1.bf16.msra.mxu0 %v2798
        %3812 = vmatprep.subr.bf16.mxu0 %v2807
        %3813 = vmatpush1.bf16.msra.mxu0 %v2806
        %3814 = vmatprep.subr.bf16.mxu0 %v2815
        %3815 = vmatpush1.bf16.msra.mxu0 %v2814
        %3816 = vmatprep.subr.bf16.mxu0 %v2823
        %3817 = vmatpush1.bf16.msra.mxu0 %v2822
        %3818 = vmatprep.subr.bf16.mxu0 %v2831
        %3819 = vmatpush1.bf16.msra.mxu0 %v2830
        %3820 = vmatprep.subr.bf16.mxu0 %v2839
        %3821 = vmatpush1.bf16.msra.mxu0 %v2838
        %3822 = vmatprep.subr.bf16.mxu0 %v2847
        %3823 = vmatpush1.bf16.msra.mxu0 %v2846
        %3824 = vmatprep.subr.bf16.mxu0 %v2855
        %3825 = vmatpush1.bf16.msra.mxu0 %v2854
        %3826 = vmatprep.subr.bf16.mxu0 %v2863
        %3827 = vmatpush1.bf16.msra.mxu0 %v2862
        %3828 = vmatprep.subr.bf16.mxu0 %v2871
        %3829 = vmatpush1.bf16.msra.mxu0 %v2870
        %3830 = vmatprep.subr.bf16.mxu0 %v2879
        %3831 = vmatpush1.bf16.msra.mxu0 %v2878
        %3832 = vmatprep.subr.bf16.mxu0 %v2887
        %3833 = vmatpush1.bf16.msra.mxu0 %v2886
        %3834 = vmatprep.subr.bf16.mxu0 %v2895
        %3835 = vmatpush1.bf16.msra.mxu0 %v2894
        %3836 = vmatprep.subr.bf16.mxu0 %v2903
        %3837 = vmatpush1.bf16.msra.mxu0 %v2902
        %3838 = vmatprep.subr.bf16.mxu0 %v2911
        %3839 = vmatpush1.bf16.msra.mxu0 %v2910
        %3840 = vmatprep.subr.bf16.mxu0 %v2919
        %3841 = vmatpush1.bf16.msra.mxu0 %v2918
        %3842 = vmatprep.mubr.bf16.mxu0 %v991
        %3843 = vmatmul.mubr.bf16.gmra.mrb[0].mxu0 %v977
        %v3844 = vpop.f32.mrb[0].mxu0
        %v3845 = vadd.f32 %v3804, %v3844
        %v3846 = vpop.f32.mrb[0].mxu0
        %v3847 = vadd.f32 %v3806, %v3846
        %v3848 = vpop.f32.mrb[0].mxu0
        %v3849 = vpop.f32.mrb[0].mxu0
        %3850 = vdwg.mxu0
        %3851 = vmatprep.subr.bf16.mxu0 %v2927
        %3852 = vmatpush1.bf16.msra.mxu0 %v2926
        %3853 = vmatprep.subr.bf16.mxu0 %v2935
        %3854 = vmatpush1.bf16.msra.mxu0 %v2934
        %3855 = vmatprep.subr.bf16.mxu0 %v2943
        %3856 = vmatpush1.bf16.msra.mxu0 %v2942
        %3857 = vmatprep.subr.bf16.mxu0 %v2951
        %3858 = vmatpush1.bf16.msra.mxu0 %v2950
        %3859 = vmatprep.subr.bf16.mxu0 %v2959
        %3860 = vmatpush1.bf16.msra.mxu0 %v2958
        %3861 = vmatprep.subr.bf16.mxu0 %v2967
        %3862 = vmatpush1.bf16.msra.mxu0 %v2966
        %3863 = vmatprep.subr.bf16.mxu0 %v2975
        %3864 = vmatpush1.bf16.msra.mxu0 %v2974
        %3865 = vmatprep.subr.bf16.mxu0 %v2983
        %3866 = vmatpush1.bf16.msra.mxu0 %v2982
        %3867 = vmatprep.subr.bf16.mxu0 %v2991
        %3868 = vmatpush1.bf16.msra.mxu0 %v2990
        %3869 = vmatprep.subr.bf16.mxu0 %v2999
        %3870 = vmatpush1.bf16.msra.mxu0 %v2998
        %3871 = vmatprep.subr.bf16.mxu0 %v3007
        %3872 = vmatpush1.bf16.msra.mxu0 %v3006
        %3873 = vmatprep.subr.bf16.mxu0 %v3015
        %3874 = vmatpush1.bf16.msra.mxu0 %v3014
        %3875 = vmatprep.subr.bf16.mxu0 %v3023
        %3876 = vmatpush1.bf16.msra.mxu0 %v3022
        %3877 = vmatprep.subr.bf16.mxu0 %v3031
        %3878 = vmatpush1.bf16.msra.mxu0 %v3030
        %3879 = vmatprep.subr.bf16.mxu0 %v3039
        %3880 = vmatpush1.bf16.msra.mxu0 %v3038
        %3881 = vmatprep.subr.bf16.mxu0 %v3047
        %3882 = vmatpush1.bf16.msra.mxu0 %v3046
        %3883 = vmatprep.mubr.bf16.mxu0 %v995
        %3884 = vmatmul.mubr.bf16.gmra.mrb[0].mxu0 %v993
        %v3885 = vpop.f32.mrb[0].mxu0
        %v3886 = vadd.f32 %v3845, %v3885
        %v3887 = vpop.f32.mrb[0].mxu0
        %v3888 = vadd.f32 %v3847, %v3887
        %v3889 = vpop.f32.mrb[0].mxu0
        %v3890 = vpop.f32.mrb[0].mxu0
        %3891 = vdwg.mxu0
        %3892 = vmatprep.subr.bf16.mxu0 %v2545
        %3893 = vmatpush1.bf16.msra.mxu0 %v2544
        %3894 = vmatprep.subr.bf16.mxu0 %v2553
        %3895 = vmatpush1.bf16.msra.mxu0 %v2552
        %3896 = vmatprep.subr.bf16.mxu0 %v2561
        %3897 = vmatpush1.bf16.msra.mxu0 %v2560
        %3898 = vmatprep.subr.bf16.mxu0 %v2569
        %3899 = vmatpush1.bf16.msra.mxu0 %v2568
        %3900 = vmatprep.subr.bf16.mxu0 %v2577
        %3901 = vmatpush1.bf16.msra.mxu0 %v2576
        %3902 = vmatprep.subr.bf16.mxu0 %v2585
        %3903 = vmatpush1.bf16.msra.mxu0 %v2584
        %3904 = vmatprep.subr.bf16.mxu0 %v2593
        %3905 = vmatpush1.bf16.msra.mxu0 %v2592
        %3906 = vmatprep.subr.bf16.mxu0 %v2601
        %3907 = vmatpush1.bf16.msra.mxu0 %v2600
        %3908 = vmatprep.subr.bf16.mxu0 %v2609
        %3909 = vmatpush1.bf16.msra.mxu0 %v2608
        %3910 = vmatprep.subr.bf16.mxu0 %v2617
        %3911 = vmatpush1.bf16.msra.mxu0 %v2616
        %3912 = vmatprep.subr.bf16.mxu0 %v2625
        %3913 = vmatpush1.bf16.msra.mxu0 %v2624
        %3914 = vmatprep.subr.bf16.mxu0 %v2633
        %3915 = vmatpush1.bf16.msra.mxu0 %v2632
        %3916 = vmatprep.subr.bf16.mxu0 %v2641
        %3917 = vmatpush1.bf16.msra.mxu0 %v2640
        %3918 = vmatprep.subr.bf16.mxu0 %v2649
        %3919 = vmatpush1.bf16.msra.mxu0 %v2648
        %3920 = vmatprep.subr.bf16.mxu0 %v2657
        %3921 = vmatpush1.bf16.msra.mxu0 %v2656
        %3922 = vmatprep.subr.bf16.mxu0 %v2665
        %3923 = vmatpush1.bf16.msra.mxu0 %v2664
        %3924 = vmatprep.mubr.bf16.mxu0 %v984
        %3925 = vmatmul.mubr.bf16.gmra.mrb[0].mxu0 %v970
        %v3926 = vpop.f32.mrb[0].mxu0
        %v3927 = vadd.f32 %v925, %v3926
        %v3928 = vpop.f32.mrb[0].mxu0
        %v3929 = vadd.f32 %v929, %v3928
        %v3930 = vpop.f32.mrb[0].mxu0
        %v3931 = vpop.f32.mrb[0].mxu0
        %3932 = vdwg.mxu0
        %3933 = vmatprep.subr.bf16.mxu0 %v2673
        %3934 = vmatpush1.bf16.msra.mxu0 %v2672
        %3935 = vmatprep.subr.bf16.mxu0 %v2681
        %3936 = vmatpush1.bf16.msra.mxu0 %v2680
        %3937 = vmatprep.subr.bf16.mxu0 %v2689
        %3938 = vmatpush1.bf16.msra.mxu0 %v2688
        %3939 = vmatprep.subr.bf16.mxu0 %v2697
        %3940 = vmatpush1.bf16.msra.mxu0 %v2696
        %3941 = vmatprep.subr.bf16.mxu0 %v2705
        %3942 = vmatpush1.bf16.msra.mxu0 %v2704
        %3943 = vmatprep.subr.bf16.mxu0 %v2713
        %3944 = vmatpush1.bf16.msra.mxu0 %v2712
        %3945 = vmatprep.subr.bf16.mxu0 %v2721
        %3946 = vmatpush1.bf16.msra.mxu0 %v2720
        %3947 = vmatprep.subr.bf16.mxu0 %v2729
        %3948 = vmatpush1.bf16.msra.mxu0 %v2728
        %3949 = vmatprep.subr.bf16.mxu0 %v2737
        %3950 = vmatpush1.bf16.msra.mxu0 %v2736
        %3951 = vmatprep.subr.bf16.mxu0 %v2745
        %3952 = vmatpush1.bf16.msra.mxu0 %v2744
        %3953 = vmatprep.subr.bf16.mxu0 %v2753
        %3954 = vmatpush1.bf16.msra.mxu0 %v2752
        %3955 = vmatprep.subr.bf16.mxu0 %v2761
        %3956 = vmatpush1.bf16.msra.mxu0 %v2760
        %3957 = vmatprep.subr.bf16.mxu0 %v2769
        %3958 = vmatpush1.bf16.msra.mxu0 %v2768
        %3959 = vmatprep.subr.bf16.mxu0 %v2777
        %3960 = vmatpush1.bf16.msra.mxu0 %v2776
        %3961 = vmatprep.subr.bf16.mxu0 %v2785
        %3962 = vmatpush1.bf16.msra.mxu0 %v2784
        %3963 = vmatprep.subr.bf16.mxu0 %v2793
        %3964 = vmatpush1.bf16.msra.mxu0 %v2792
        %3965 = vmatprep.mubr.bf16.mxu0 %v994
        %3966 = vmatmul.mubr.bf16.gmra.mrb[0].mxu0 %v992
        %v3967 = vpop.f32.mrb[0].mxu0
        %v3968 = vadd.f32 %v3927, %v3967
        %v3969 = vpop.f32.mrb[0].mxu0
        %v3970 = vadd.f32 %v3929, %v3969
        %v3971 = vpop.f32.mrb[0].mxu0
        %v3972 = vpop.f32.mrb[0].mxu0
        %3973 = vdwg.mxu0
        %3974 = vmatprep.subr.bf16.mxu0 %v2801
        %3975 = vmatpush1.bf16.msra.mxu0 %v2800
        %3976 = vmatprep.subr.bf16.mxu0 %v2809
        %3977 = vmatpush1.bf16.msra.mxu0 %v2808
        %3978 = vmatprep.subr.bf16.mxu0 %v2817
        %3979 = vmatpush1.bf16.msra.mxu0 %v2816
        %3980 = vmatprep.subr.bf16.mxu0 %v2825
        %3981 = vmatpush1.bf16.msra.mxu0 %v2824
        %3982 = vmatprep.subr.bf16.mxu0 %v2833
        %3983 = vmatpush1.bf16.msra.mxu0 %v2832
        %3984 = vmatprep.subr.bf16.mxu0 %v2841
        %3985 = vmatpush1.bf16.msra.mxu0 %v2840
        %3986 = vmatprep.subr.bf16.mxu0 %v2849
        %3987 = vmatpush1.bf16.msra.mxu0 %v2848
        %3988 = vmatprep.subr.bf16.mxu0 %v2857
        %3989 = vmatpush1.bf16.msra.mxu0 %v2856
        %3990 = vmatprep.subr.bf16.mxu0 %v2865
        %3991 = vmatpush1.bf16.msra.mxu0 %v2864
        %3992 = vmatprep.subr.bf16.mxu0 %v2873
        %3993 = vmatpush1.bf16.msra.mxu0 %v2872
        %3994 = vmatprep.subr.bf16.mxu0 %v2881
        %3995 = vmatpush1.bf16.msra.mxu0 %v2880
        %3996 = vmatprep.subr.bf16.mxu0 %v2889
        %3997 = vmatpush1.bf16.msra.mxu0 %v2888
        %3998 = vmatprep.subr.bf16.mxu0 %v2897
        %3999 = vmatpush1.bf16.msra.mxu0 %v2896
        %4000 = vmatprep.subr.bf16.mxu0 %v2905
        %4001 = vmatpush1.bf16.msra.mxu0 %v2904
        %4002 = vmatprep.subr.bf16.mxu0 %v2913
        %4003 = vmatpush1.bf16.msra.mxu0 %v2912
        %4004 = vmatprep.subr.bf16.mxu0 %v2921
        %4005 = vmatpush1.bf16.msra.mxu0 %v2920
        %4006 = vmatprep.mubr.bf16.mxu0 %v991
        %4007 = vmatmul.mubr.bf16.gmra.mrb[0].mxu0 %v977
        %v4008 = vpop.f32.mrb[0].mxu0
        %v4009 = vadd.f32 %v3968, %v4008
        %v4010 = vpop.f32.mrb[0].mxu0
        %v4011 = vadd.f32 %v3970, %v4010
        %v4012 = vpop.f32.mrb[0].mxu0
        %v4013 = vpop.f32.mrb[0].mxu0
        %4014 = vdwg.mxu0
        %4015 = vmatprep.subr.bf16.mxu0 %v2929
        %4016 = vmatpush1.bf16.msra.mxu0 %v2928
        %4017 = vmatprep.subr.bf16.mxu0 %v2937
        %4018 = vmatpush1.bf16.msra.mxu0 %v2936
        %4019 = vmatprep.subr.bf16.mxu0 %v2945
        %4020 = vmatpush1.bf16.msra.mxu0 %v2944
        %4021 = vmatprep.subr.bf16.mxu0 %v2953
        %4022 = vmatpush1.bf16.msra.mxu0 %v2952
        %4023 = vmatprep.subr.bf16.mxu0 %v2961
        %4024 = vmatpush1.bf16.msra.mxu0 %v2960
        %4025 = vmatprep.subr.bf16.mxu0 %v2969
        %4026 = vmatpush1.bf16.msra.mxu0 %v2968
        %4027 = vmatprep.subr.bf16.mxu0 %v2977
        %4028 = vmatpush1.bf16.msra.mxu0 %v2976
        %4029 = vmatprep.subr.bf16.mxu0 %v2985
        %4030 = vmatpush1.bf16.msra.mxu0 %v2984
        %4031 = vmatprep.subr.bf16.mxu0 %v2993
        %4032 = vmatpush1.bf16.msra.mxu0 %v2992
        %4033 = vmatprep.subr.bf16.mxu0 %v3001
        %4034 = vmatpush1.bf16.msra.mxu0 %v3000
        %4035 = vmatprep.subr.bf16.mxu0 %v3009
        %4036 = vmatpush1.bf16.msra.mxu0 %v3008
        %4037 = vmatprep.subr.bf16.mxu0 %v3017
        %4038 = vmatpush1.bf16.msra.mxu0 %v3016
        %4039 = vmatprep.subr.bf16.mxu0 %v3025
        %4040 = vmatpush1.bf16.msra.mxu0 %v3024
        %4041 = vmatprep.subr.bf16.mxu0 %v3033
        %4042 = vmatpush1.bf16.msra.mxu0 %v3032
        %4043 = vmatprep.subr.bf16.mxu0 %v3041
        %4044 = vmatpush1.bf16.msra.mxu0 %v3040
        %4045 = vmatprep.subr.bf16.mxu0 %v3049
        %4046 = vmatpush1.bf16.msra.mxu0 %v3048
        %4047 = vmatprep.mubr.bf16.mxu0 %v995
        %4048 = vmatmul.mubr.bf16.gmra.mrb[0].mxu0 %v993
        %v4049 = vpop.f32.mrb[0].mxu0
        %v4050 = vadd.f32 %v4009, %v4049
        %v4051 = vpop.f32.mrb[0].mxu0
        %v4052 = vadd.f32 %v4011, %v4051
        %v4053 = vpop.f32.mrb[0].mxu0
        %v4054 = vpop.f32.mrb[0].mxu0
        %4055 = vdwg.mxu0
        %4056 = vmatprep.subr.bf16.mxu0 %v2547
        %4057 = vmatpush1.bf16.msra.mxu0 %v2546
        %4058 = vmatprep.subr.bf16.mxu0 %v2555
        %4059 = vmatpush1.bf16.msra.mxu0 %v2554
        %4060 = vmatprep.subr.bf16.mxu0 %v2563
        %4061 = vmatpush1.bf16.msra.mxu0 %v2562
        %4062 = vmatprep.subr.bf16.mxu0 %v2571
        %4063 = vmatpush1.bf16.msra.mxu0 %v2570
        %4064 = vmatprep.subr.bf16.mxu0 %v2579
        %4065 = vmatpush1.bf16.msra.mxu0 %v2578
        %4066 = vmatprep.subr.bf16.mxu0 %v2587
        %4067 = vmatpush1.bf16.msra.mxu0 %v2586
        %4068 = vmatprep.subr.bf16.mxu0 %v2595
        %4069 = vmatpush1.bf16.msra.mxu0 %v2594
        %4070 = vmatprep.subr.bf16.mxu0 %v2603
        %4071 = vmatpush1.bf16.msra.mxu0 %v2602
        %4072 = vmatprep.subr.bf16.mxu0 %v2611
        %4073 = vmatpush1.bf16.msra.mxu0 %v2610
        %4074 = vmatprep.subr.bf16.mxu0 %v2619
        %4075 = vmatpush1.bf16.msra.mxu0 %v2618
        %4076 = vmatprep.subr.bf16.mxu0 %v2627
        %4077 = vmatpush1.bf16.msra.mxu0 %v2626
        %4078 = vmatprep.subr.bf16.mxu0 %v2635
        %4079 = vmatpush1.bf16.msra.mxu0 %v2634
        %4080 = vmatprep.subr.bf16.mxu0 %v2643
        %4081 = vmatpush1.bf16.msra.mxu0 %v2642
        %4082 = vmatprep.subr.bf16.mxu0 %v2651
        %4083 = vmatpush1.bf16.msra.mxu0 %v2650
        %4084 = vmatprep.subr.bf16.mxu0 %v2659
        %4085 = vmatpush1.bf16.msra.mxu0 %v2658
        %4086 = vmatprep.subr.bf16.mxu0 %v2667
        %4087 = vmatpush1.bf16.msra.mxu0 %v2666
        %4088 = vmatprep.mubr.bf16.mxu0 %v984
        %4089 = vmatmul.mubr.bf16.gmra.mrb[0].mxu0 %v970
        %v4090 = vpop.f32.mrb[0].mxu0
        %v4091 = vadd.f32 %v933, %v4090
        %v4092 = vpop.f32.mrb[0].mxu0
        %v4093 = vadd.f32 %v937, %v4092
        %v4094 = vpop.f32.mrb[0].mxu0
        %v4095 = vpop.f32.mrb[0].mxu0
        %4096 = vdwg.mxu0
        %4097 = vmatprep.subr.bf16.mxu0 %v2675
        %4098 = vmatpush1.bf16.msra.mxu0 %v2674
        %4099 = vmatprep.subr.bf16.mxu0 %v2683
        %4100 = vmatpush1.bf16.msra.mxu0 %v2682
        %4101 = vmatprep.subr.bf16.mxu0 %v2691
        %4102 = vmatpush1.bf16.msra.mxu0 %v2690
        %4103 = vmatprep.subr.bf16.mxu0 %v2699
        %4104 = vmatpush1.bf16.msra.mxu0 %v2698
        %4105 = vmatprep.subr.bf16.mxu0 %v2707
        %4106 = vmatpush1.bf16.msra.mxu0 %v2706
        %4107 = vmatprep.subr.bf16.mxu0 %v2715
        %4108 = vmatpush1.bf16.msra.mxu0 %v2714
        %4109 = vmatprep.subr.bf16.mxu0 %v2723
        %4110 = vmatpush1.bf16.msra.mxu0 %v2722
        %4111 = vmatprep.subr.bf16.mxu0 %v2731
        %4112 = vmatpush1.bf16.msra.mxu0 %v2730
        %4113 = vmatprep.subr.bf16.mxu0 %v2739
        %4114 = vmatpush1.bf16.msra.mxu0 %v2738
        %4115 = vmatprep.subr.bf16.mxu0 %v2747
        %4116 = vmatpush1.bf16.msra.mxu0 %v2746
        %4117 = vmatprep.subr.bf16.mxu0 %v2755
        %4118 = vmatpush1.bf16.msra.mxu0 %v2754
        %4119 = vmatprep.subr.bf16.mxu0 %v2763
        %4120 = vmatpush1.bf16.msra.mxu0 %v2762
        %4121 = vmatprep.subr.bf16.mxu0 %v2771
        %4122 = vmatpush1.bf16.msra.mxu0 %v2770
        %4123 = vmatprep.subr.bf16.mxu0 %v2779
        %4124 = vmatpush1.bf16.msra.mxu0 %v2778
        %4125 = vmatprep.subr.bf16.mxu0 %v2787
        %4126 = vmatpush1.bf16.msra.mxu0 %v2786
        %4127 = vmatprep.subr.bf16.mxu0 %v2795
        %4128 = vmatpush1.bf16.msra.mxu0 %v2794
        %4129 = vmatprep.mubr.bf16.mxu0 %v994
        %4130 = vmatmul.mubr.bf16.gmra.mrb[0].mxu0 %v992
        %v4131 = vpop.f32.mrb[0].mxu0
        %v4132 = vadd.f32 %v4091, %v4131
        %v4133 = vpop.f32.mrb[0].mxu0
        %v4134 = vadd.f32 %v4093, %v4133
        %v4135 = vpop.f32.mrb[0].mxu0
        %v4136 = vpop.f32.mrb[0].mxu0
        %4137 = vdwg.mxu0
        %4138 = vmatprep.subr.bf16.mxu0 %v2803
        %4139 = vmatpush1.bf16.msra.mxu0 %v2802
        %4140 = vmatprep.subr.bf16.mxu0 %v2811
        %4141 = vmatpush1.bf16.msra.mxu0 %v2810
        %4142 = vmatprep.subr.bf16.mxu0 %v2819
        %4143 = vmatpush1.bf16.msra.mxu0 %v2818
        %4144 = vmatprep.subr.bf16.mxu0 %v2827
        %4145 = vmatpush1.bf16.msra.mxu0 %v2826
        %4146 = vmatprep.subr.bf16.mxu0 %v2835
        %4147 = vmatpush1.bf16.msra.mxu0 %v2834
        %4148 = vmatprep.subr.bf16.mxu0 %v2843
        %4149 = vmatpush1.bf16.msra.mxu0 %v2842
        %4150 = vmatprep.subr.bf16.mxu0 %v2851
        %4151 = vmatpush1.bf16.msra.mxu0 %v2850
        %4152 = vmatprep.subr.bf16.mxu0 %v2859
        %4153 = vmatpush1.bf16.msra.mxu0 %v2858
        %4154 = vmatprep.subr.bf16.mxu0 %v2867
        %4155 = vmatpush1.bf16.msra.mxu0 %v2866
        %4156 = vmatprep.subr.bf16.mxu0 %v2875
        %4157 = vmatpush1.bf16.msra.mxu0 %v2874
        %4158 = vmatprep.subr.bf16.mxu0 %v2883
        %4159 = vmatpush1.bf16.msra.mxu0 %v2882
        %4160 = vmatprep.subr.bf16.mxu0 %v2891
        %4161 = vmatpush1.bf16.msra.mxu0 %v2890
        %4162 = vmatprep.subr.bf16.mxu0 %v2899
        %4163 = vmatpush1.bf16.msra.mxu0 %v2898
        %4164 = vmatprep.subr.bf16.mxu0 %v2907
        %4165 = vmatpush1.bf16.msra.mxu0 %v2906
        %4166 = vmatprep.subr.bf16.mxu0 %v2915
        %4167 = vmatpush1.bf16.msra.mxu0 %v2914
        %4168 = vmatprep.subr.bf16.mxu0 %v2923
        %4169 = vmatpush1.bf16.msra.mxu0 %v2922
        %4170 = vmatprep.mubr.bf16.mxu0 %v991
        %4171 = vmatmul.mubr.bf16.gmra.mrb[0].mxu0 %v977
        %v4172 = vpop.f32.mrb[0].mxu0
        %v4173 = vadd.f32 %v4132, %v4172
        %v4174 = vpop.f32.mrb[0].mxu0
        %v4175 = vadd.f32 %v4134, %v4174
        %v4176 = vpop.f32.mrb[0].mxu0
        %v4177 = vpop.f32.mrb[0].mxu0
        %4178 = vdwg.mxu0
        %4179 = vmatprep.subr.bf16.mxu0 %v2931
        %4180 = vmatpush1.bf16.msra.mxu0 %v2930
        %4181 = vmatprep.subr.bf16.mxu0 %v2939
        %4182 = vmatpush1.bf16.msra.mxu0 %v2938
        %4183 = vmatprep.subr.bf16.mxu0 %v2947
        %4184 = vmatpush1.bf16.msra.mxu0 %v2946
        %4185 = vmatprep.subr.bf16.mxu0 %v2955
        %4186 = vmatpush1.bf16.msra.mxu0 %v2954
        %4187 = vmatprep.subr.bf16.mxu0 %v2963
        %4188 = vmatpush1.bf16.msra.mxu0 %v2962
        %4189 = vmatprep.subr.bf16.mxu0 %v2971
        %4190 = vmatpush1.bf16.msra.mxu0 %v2970
        %4191 = vmatprep.subr.bf16.mxu0 %v2979
        %4192 = vmatpush1.bf16.msra.mxu0 %v2978
        %4193 = vmatprep.subr.bf16.mxu0 %v2987
        %4194 = vmatpush1.bf16.msra.mxu0 %v2986
        %4195 = vmatprep.subr.bf16.mxu0 %v2995
        %4196 = vmatpush1.bf16.msra.mxu0 %v2994
        %4197 = vmatprep.subr.bf16.mxu0 %v3003
        %4198 = vmatpush1.bf16.msra.mxu0 %v3002
        %4199 = vmatprep.subr.bf16.mxu0 %v3011
        %4200 = vmatpush1.bf16.msra.mxu0 %v3010
        %4201 = vmatprep.subr.bf16.mxu0 %v3019
        %4202 = vmatpush1.bf16.msra.mxu0 %v3018
        %4203 = vmatprep.subr.bf16.mxu0 %v3027
        %4204 = vmatpush1.bf16.msra.mxu0 %v3026
        %4205 = vmatprep.subr.bf16.mxu0 %v3035
        %4206 = vmatpush1.bf16.msra.mxu0 %v3034
        %4207 = vmatprep.subr.bf16.mxu0 %v3043
        %4208 = vmatpush1.bf16.msra.mxu0 %v3042
        %4209 = vmatprep.subr.bf16.mxu0 %v3051
        %4210 = vmatpush1.bf16.msra.mxu0 %v3050
        %4211 = vmatprep.mubr.bf16.mxu0 %v995
        %4212 = vmatmul.mubr.bf16.gmra.mrb[0].mxu0 %v993
        %v4213 = vpop.f32.mrb[0].mxu0
        %v4214 = vadd.f32 %v4173, %v4213
        %v4215 = vpop.f32.mrb[0].mxu0
        %v4216 = vadd.f32 %v4175, %v4215
        %v4217 = vpop.f32.mrb[0].mxu0
        %v4218 = vpop.f32.mrb[0].mxu0
        %4219 = vdwg.mxu0
        %v4220 = vmax.f32 %v3722, 0.0
        %v4221 = vmax.f32 %v3724, 0.0
        %v4222 = vmax.f32 %v3886, 0.0
        %v4223 = vmax.f32 %v3888, 0.0
        %v4224 = vmax.f32 %v4050, 0.0
        %v4225 = vmax.f32 %v4052, 0.0
        %v4226 = vmax.f32 %v4214, 0.0
        %v4227 = vmax.f32 %v4216, 0.0
        %v4228 = vld [vmem:[#allocation2] sm:$0xff]
        %v4229 = vpack.c.bf16 %v4220, %v4220
        %v4230 = vpack.c.bf16 %v4221, %v4221
        %v4231 = vpack.c.bf16 %v4222, %v4222
        %v4232 = vpack.c.bf16 %v4223, %v4223
        %v4233 = vpack.c.bf16 %v4224, %v4224
        %v4234 = vpack.c.bf16 %v4225, %v4225
        %v4235 = vpack.c.bf16 %v4226, %v4226
        %v4236 = vpack.c.bf16 %v4227, %v4227
        %v4237 = vld [vmem:[%s332] sm:$0xff]
        %v4238 = vld [vmem:[%s332 + $0x8] sm:$0xff]
        %v4239 = vld [vmem:[%s332 + $0x10] sm:$0xff]
        %v4240 = vld [vmem:[%s332 + $0x18] sm:$0xff]
        %v4241 = vld [vmem:[%s332 + $0x20] sm:$0xff]
        %v4242 = vld [vmem:[%s332 + $0x28] sm:$0xff]
        %v4243 = vld [vmem:[%s332 + $0x30] sm:$0xff]
        %v4244 = vld [vmem:[%s332 + $0x38] sm:$0xff]
        %v4245 = vld [vmem:[%s332 + $0x40] sm:$0xff]
        %v4246 = vld [vmem:[%s332 + $0x48] sm:$0xff]
        %v4247 = vld [vmem:[%s332 + $0x50] sm:$0xff]
        %v4248 = vld [vmem:[%s332 + $0x58] sm:$0xff]
        %v4249 = vld [vmem:[%s332 + $0x60] sm:$0xff]
        %v4250 = vld [vmem:[%s332 + $0x68] sm:$0xff]
        %v4251 = vld [vmem:[%s332 + $0x70] sm:$0xff]
        %v4252 = vld [vmem:[%s332 + $0x78] sm:$0xff]
        %v4253 = vld [vmem:[%s332 + $0x80] sm:$0xff]
        %v4254 = vld [vmem:[%s332 + $0x88] sm:$0xff]
        %v4255 = vld [vmem:[%s332 + $0x90] sm:$0xff]
        %v4256 = vld [vmem:[%s332 + $0x98] sm:$0xff]
        %v4257 = vld [vmem:[%s332 + $0xa0] sm:$0xff]
        %v4258 = vld [vmem:[%s332 + $0xa8] sm:$0xff]
        %v4259 = vld [vmem:[%s332 + $0xb0] sm:$0xff]
        %v4260 = vld [vmem:[%s332 + $0xb8] sm:$0xff]
        %v4261 = vld [vmem:[%s332 + $0xc0] sm:$0xff]
        %v4262 = vld [vmem:[%s332 + $0xc8] sm:$0xff]
        %v4263 = vld [vmem:[%s332 + $0xd0] sm:$0xff]
        %v4264 = vld [vmem:[%s332 + $0xd8] sm:$0xff]
        %v4265 = vld [vmem:[%s332 + $0xe0] sm:$0xff]
        %v4266 = vld [vmem:[%s332 + $0xe8] sm:$0xff]
        %v4267 = vld [vmem:[%s332 + $0xf0] sm:$0xff]
        %v4268 = vld [vmem:[%s332 + $0xf8] sm:$0xff]
        %v4269 = vld [vmem:[%s332 + $0x100] sm:$0xff]
        %v4270 = vld [vmem:[%s332 + $0x108] sm:$0xff]
        %v4271 = vld [vmem:[%s332 + $0x110] sm:$0xff]
        %v4272 = vld [vmem:[%s332 + $0x118] sm:$0xff]
        %v4273 = vld [vmem:[%s332 + $0x120] sm:$0xff]
        %v4274 = vld [vmem:[%s332 + $0x128] sm:$0xff]
        %v4275 = vld [vmem:[%s332 + $0x130] sm:$0xff]
        %v4276 = vld [vmem:[%s332 + $0x138] sm:$0xff]
        %v4277 = vld [vmem:[%s332 + $0x140] sm:$0xff]
        %v4278 = vld [vmem:[%s332 + $0x148] sm:$0xff]
        %v4279 = vld [vmem:[%s332 + $0x150] sm:$0xff]
        %v4280 = vld [vmem:[%s332 + $0x158] sm:$0xff]
        %v4281 = vld [vmem:[%s332 + $0x160] sm:$0xff]
        %v4282 = vld [vmem:[%s332 + $0x168] sm:$0xff]
        %v4283 = vld [vmem:[%s332 + $0x170] sm:$0xff]
        %v4284 = vld [vmem:[%s332 + $0x178] sm:$0xff]
        %v4285 = vld [vmem:[%s332 + $0x180] sm:$0xff]
        %v4286 = vld [vmem:[%s332 + $0x188] sm:$0xff]
        %v4287 = vld [vmem:[%s332 + $0x190] sm:$0xff]
        %v4288 = vld [vmem:[%s332 + $0x198] sm:$0xff]
        %v4289 = vld [vmem:[%s332 + $0x1a0] sm:$0xff]
        %v4290 = vld [vmem:[%s332 + $0x1a8] sm:$0xff]
        %v4291 = vld [vmem:[%s332 + $0x1b0] sm:$0xff]
        %v4292 = vld [vmem:[%s332 + $0x1b8] sm:$0xff]
        %v4293 = vld [vmem:[%s332 + $0x1c0] sm:$0xff]
        %v4294 = vld [vmem:[%s332 + $0x1c8] sm:$0xff]
        %v4295 = vld [vmem:[%s332 + $0x1d0] sm:$0xff]
        %v4296 = vld [vmem:[%s332 + $0x1d8] sm:$0xff]
        %v4297 = vld [vmem:[%s332 + $0x1e0] sm:$0xff]
        %v4298 = vld [vmem:[%s332 + $0x1e8] sm:$0xff]
        %v4299 = vld [vmem:[%s332 + $0x1f0] sm:$0xff]
        %v4300 = vld [vmem:[%s332 + $0x1f8] sm:$0xff]
        %v4301 = vld [vmem:[%s332 + $0x200] sm:$0xff]
        %v4302 = vld [vmem:[%s332 + $0x208] sm:$0xff]
        %v4303 = vld [vmem:[%s332 + $0x210] sm:$0xff]
        %v4304 = vld [vmem:[%s332 + $0x218] sm:$0xff]
        %v4305 = vld [vmem:[%s332 + $0x220] sm:$0xff]
        %v4306 = vld [vmem:[%s332 + $0x228] sm:$0xff]
        %v4307 = vld [vmem:[%s332 + $0x230] sm:$0xff]
        %v4308 = vld [vmem:[%s332 + $0x238] sm:$0xff]
        %v4309 = vld [vmem:[%s332 + $0x240] sm:$0xff]
        %v4310 = vld [vmem:[%s332 + $0x248] sm:$0xff]
        %v4311 = vld [vmem:[%s332 + $0x250] sm:$0xff]
        %v4312 = vld [vmem:[%s332 + $0x258] sm:$0xff]
        %v4313 = vld [vmem:[%s332 + $0x260] sm:$0xff]
        %v4314 = vld [vmem:[%s332 + $0x268] sm:$0xff]
        %v4315 = vld [vmem:[%s332 + $0x270] sm:$0xff]
        %v4316 = vld [vmem:[%s332 + $0x278] sm:$0xff]
        %v4317 = vld [vmem:[%s332 + $0x280] sm:$0xff]
        %v4318 = vld [vmem:[%s332 + $0x288] sm:$0xff]
        %v4319 = vld [vmem:[%s332 + $0x290] sm:$0xff]
        %v4320 = vld [vmem:[%s332 + $0x298] sm:$0xff]
        %v4321 = vld [vmem:[%s332 + $0x2a0] sm:$0xff]
        %v4322 = vld [vmem:[%s332 + $0x2a8] sm:$0xff]
        %v4323 = vld [vmem:[%s332 + $0x2b0] sm:$0xff]
        %v4324 = vld [vmem:[%s332 + $0x2b8] sm:$0xff]
        %v4325 = vld [vmem:[%s332 + $0x2c0] sm:$0xff]
        %v4326 = vld [vmem:[%s332 + $0x2c8] sm:$0xff]
        %v4327 = vld [vmem:[%s332 + $0x2d0] sm:$0xff]
        %v4328 = vld [vmem:[%s332 + $0x2d8] sm:$0xff]
        %v4329 = vld [vmem:[%s332 + $0x2e0] sm:$0xff]
        %v4330 = vld [vmem:[%s332 + $0x2e8] sm:$0xff]
        %v4331 = vld [vmem:[%s332 + $0x2f0] sm:$0xff]
        %v4332 = vld [vmem:[%s332 + $0x2f8] sm:$0xff]
        %v4333 = vld [vmem:[%s332 + $0x300] sm:$0xff]
        %v4334 = vld [vmem:[%s332 + $0x308] sm:$0xff]
        %v4335 = vld [vmem:[%s332 + $0x310] sm:$0xff]
        %v4336 = vld [vmem:[%s332 + $0x318] sm:$0xff]
        %v4337 = vld [vmem:[%s332 + $0x320] sm:$0xff]
        %v4338 = vld [vmem:[%s332 + $0x328] sm:$0xff]
        %v4339 = vld [vmem:[%s332 + $0x330] sm:$0xff]
        %v4340 = vld [vmem:[%s332 + $0x338] sm:$0xff]
        %v4341 = vld [vmem:[%s332 + $0x340] sm:$0xff]
        %v4342 = vld [vmem:[%s332 + $0x348] sm:$0xff]
        %v4343 = vld [vmem:[%s332 + $0x350] sm:$0xff]
        %v4344 = vld [vmem:[%s332 + $0x358] sm:$0xff]
        %v4345 = vld [vmem:[%s332 + $0x360] sm:$0xff]
        %v4346 = vld [vmem:[%s332 + $0x368] sm:$0xff]
        %v4347 = vld [vmem:[%s332 + $0x370] sm:$0xff]
        %v4348 = vld [vmem:[%s332 + $0x378] sm:$0xff]
        %v4349 = vld [vmem:[%s332 + $0x380] sm:$0xff]
        %v4350 = vld [vmem:[%s332 + $0x388] sm:$0xff]
        %v4351 = vld [vmem:[%s332 + $0x390] sm:$0xff]
        %v4352 = vld [vmem:[%s332 + $0x398] sm:$0xff]
        %v4353 = vld [vmem:[%s332 + $0x3a0] sm:$0xff]
        %v4354 = vld [vmem:[%s332 + $0x3a8] sm:$0xff]
        %v4355 = vld [vmem:[%s332 + $0x3b0] sm:$0xff]
        %v4356 = vld [vmem:[%s332 + $0x3b8] sm:$0xff]
        %v4357 = vld [vmem:[%s332 + $0x3c0] sm:$0xff]
        %v4358 = vld [vmem:[%s332 + $0x3c8] sm:$0xff]
        %v4359 = vld [vmem:[%s332 + $0x3d0] sm:$0xff]
        %v4360 = vld [vmem:[%s332 + $0x3d8] sm:$0xff]
        %v4361 = vld [vmem:[%s332 + $0x3e0] sm:$0xff]
        %v4362 = vld [vmem:[%s332 + $0x3e8] sm:$0xff]
        %v4363 = vld [vmem:[%s332 + $0x3f0] sm:$0xff]
        %v4364 = vld [vmem:[%s332 + $0x3f8] sm:$0xff]
        %v4365 = vld [vmem:[%s332 + $0x400] sm:$0xff]
        %v4366 = vld [vmem:[%s332 + $0x408] sm:$0xff]
        %v4367 = vld [vmem:[%s332 + $0x410] sm:$0xff]
        %v4368 = vld [vmem:[%s332 + $0x418] sm:$0xff]
        %v4369 = vld [vmem:[%s332 + $0x420] sm:$0xff]
        %v4370 = vld [vmem:[%s332 + $0x428] sm:$0xff]
        %v4371 = vld [vmem:[%s332 + $0x430] sm:$0xff]
        %v4372 = vld [vmem:[%s332 + $0x438] sm:$0xff]
        %v4373 = vld [vmem:[%s332 + $0x440] sm:$0xff]
        %v4374 = vld [vmem:[%s332 + $0x448] sm:$0xff]
        %v4375 = vld [vmem:[%s332 + $0x450] sm:$0xff]
        %v4376 = vld [vmem:[%s332 + $0x458] sm:$0xff]
        %v4377 = vld [vmem:[%s332 + $0x460] sm:$0xff]
        %v4378 = vld [vmem:[%s332 + $0x468] sm:$0xff]
        %v4379 = vld [vmem:[%s332 + $0x470] sm:$0xff]
        %v4380 = vld [vmem:[%s332 + $0x478] sm:$0xff]
        %v4381 = vld [vmem:[%s332 + $0x480] sm:$0xff]
        %v4382 = vld [vmem:[%s332 + $0x488] sm:$0xff]
        %v4383 = vld [vmem:[%s332 + $0x490] sm:$0xff]
        %v4384 = vld [vmem:[%s332 + $0x498] sm:$0xff]
        %v4385 = vld [vmem:[%s332 + $0x4a0] sm:$0xff]
        %v4386 = vld [vmem:[%s332 + $0x4a8] sm:$0xff]
        %v4387 = vld [vmem:[%s332 + $0x4b0] sm:$0xff]
        %v4388 = vld [vmem:[%s332 + $0x4b8] sm:$0xff]
        %v4389 = vld [vmem:[%s332 + $0x4c0] sm:$0xff]
        %v4390 = vld [vmem:[%s332 + $0x4c8] sm:$0xff]
        %v4391 = vld [vmem:[%s332 + $0x4d0] sm:$0xff]
        %v4392 = vld [vmem:[%s332 + $0x4d8] sm:$0xff]
        %v4393 = vld [vmem:[%s332 + $0x4e0] sm:$0xff]
        %v4394 = vld [vmem:[%s332 + $0x4e8] sm:$0xff]
        %v4395 = vld [vmem:[%s332 + $0x4f0] sm:$0xff]
        %v4396 = vld [vmem:[%s332 + $0x4f8] sm:$0xff]
        %v4397 = vld [vmem:[%s332 + $0x500] sm:$0xff]
        %v4398 = vld [vmem:[%s332 + $0x508] sm:$0xff]
        %v4399 = vld [vmem:[%s332 + $0x510] sm:$0xff]
        %v4400 = vld [vmem:[%s332 + $0x518] sm:$0xff]
        %v4401 = vld [vmem:[%s332 + $0x520] sm:$0xff]
        %v4402 = vld [vmem:[%s332 + $0x528] sm:$0xff]
        %v4403 = vld [vmem:[%s332 + $0x530] sm:$0xff]
        %v4404 = vld [vmem:[%s332 + $0x538] sm:$0xff]
        %v4405 = vld [vmem:[%s332 + $0x540] sm:$0xff]
        %v4406 = vld [vmem:[%s332 + $0x548] sm:$0xff]
        %v4407 = vld [vmem:[%s332 + $0x550] sm:$0xff]
        %v4408 = vld [vmem:[%s332 + $0x558] sm:$0xff]
        %v4409 = vld [vmem:[%s332 + $0x560] sm:$0xff]
        %v4410 = vld [vmem:[%s332 + $0x568] sm:$0xff]
        %v4411 = vld [vmem:[%s332 + $0x570] sm:$0xff]
        %v4412 = vld [vmem:[%s332 + $0x578] sm:$0xff]
        %v4413 = vld [vmem:[%s332 + $0x580] sm:$0xff]
        %v4414 = vld [vmem:[%s332 + $0x588] sm:$0xff]
        %v4415 = vld [vmem:[%s332 + $0x590] sm:$0xff]
        %v4416 = vld [vmem:[%s332 + $0x598] sm:$0xff]
        %v4417 = vld [vmem:[%s332 + $0x5a0] sm:$0xff]
        %v4418 = vld [vmem:[%s332 + $0x5a8] sm:$0xff]
        %v4419 = vld [vmem:[%s332 + $0x5b0] sm:$0xff]
        %v4420 = vld [vmem:[%s332 + $0x5b8] sm:$0xff]
        %v4421 = vld [vmem:[%s332 + $0x5c0] sm:$0xff]
        %v4422 = vld [vmem:[%s332 + $0x5c8] sm:$0xff]
        %v4423 = vld [vmem:[%s332 + $0x5d0] sm:$0xff]
        %v4424 = vld [vmem:[%s332 + $0x5d8] sm:$0xff]
        %v4425 = vld [vmem:[%s332 + $0x5e0] sm:$0xff]
        %v4426 = vld [vmem:[%s332 + $0x5e8] sm:$0xff]
        %v4427 = vld [vmem:[%s332 + $0x5f0] sm:$0xff]
        %v4428 = vld [vmem:[%s332 + $0x5f8] sm:$0xff]
        %v4429 = vld [vmem:[%s332 + $0x600] sm:$0xff]
        %v4430 = vld [vmem:[%s332 + $0x608] sm:$0xff]
        %v4431 = vld [vmem:[%s332 + $0x610] sm:$0xff]
        %v4432 = vld [vmem:[%s332 + $0x618] sm:$0xff]
        %v4433 = vld [vmem:[%s332 + $0x620] sm:$0xff]
        %v4434 = vld [vmem:[%s332 + $0x628] sm:$0xff]
        %v4435 = vld [vmem:[%s332 + $0x630] sm:$0xff]
        %v4436 = vld [vmem:[%s332 + $0x638] sm:$0xff]
        %v4437 = vld [vmem:[%s332 + $0x640] sm:$0xff]
        %v4438 = vld [vmem:[%s332 + $0x648] sm:$0xff]
        %v4439 = vld [vmem:[%s332 + $0x650] sm:$0xff]
        %v4440 = vld [vmem:[%s332 + $0x658] sm:$0xff]
        %v4441 = vld [vmem:[%s332 + $0x660] sm:$0xff]
        %v4442 = vld [vmem:[%s332 + $0x668] sm:$0xff]
        %v4443 = vld [vmem:[%s332 + $0x670] sm:$0xff]
        %v4444 = vld [vmem:[%s332 + $0x678] sm:$0xff]
        %v4445 = vld [vmem:[%s332 + $0x680] sm:$0xff]
        %v4446 = vld [vmem:[%s332 + $0x688] sm:$0xff]
        %v4447 = vld [vmem:[%s332 + $0x690] sm:$0xff]
        %v4448 = vld [vmem:[%s332 + $0x698] sm:$0xff]
        %v4449 = vld [vmem:[%s332 + $0x6a0] sm:$0xff]
        %v4450 = vld [vmem:[%s332 + $0x6a8] sm:$0xff]
        %v4451 = vld [vmem:[%s332 + $0x6b0] sm:$0xff]
        %v4452 = vld [vmem:[%s332 + $0x6b8] sm:$0xff]
        %v4453 = vld [vmem:[%s332 + $0x6c0] sm:$0xff]
        %v4454 = vld [vmem:[%s332 + $0x6c8] sm:$0xff]
        %v4455 = vld [vmem:[%s332 + $0x6d0] sm:$0xff]
        %v4456 = vld [vmem:[%s332 + $0x6d8] sm:$0xff]
        %v4457 = vld [vmem:[%s332 + $0x6e0] sm:$0xff]
        %v4458 = vld [vmem:[%s332 + $0x6e8] sm:$0xff]
        %v4459 = vld [vmem:[%s332 + $0x6f0] sm:$0xff]
        %v4460 = vld [vmem:[%s332 + $0x6f8] sm:$0xff]
        %v4461 = vld [vmem:[%s332 + $0x700] sm:$0xff]
        %v4462 = vld [vmem:[%s332 + $0x708] sm:$0xff]
        %v4463 = vld [vmem:[%s332 + $0x710] sm:$0xff]
        %v4464 = vld [vmem:[%s332 + $0x718] sm:$0xff]
        %v4465 = vld [vmem:[%s332 + $0x720] sm:$0xff]
        %v4466 = vld [vmem:[%s332 + $0x728] sm:$0xff]
        %v4467 = vld [vmem:[%s332 + $0x730] sm:$0xff]
        %v4468 = vld [vmem:[%s332 + $0x738] sm:$0xff]
        %v4469 = vld [vmem:[%s332 + $0x740] sm:$0xff]
        %v4470 = vld [vmem:[%s332 + $0x748] sm:$0xff]
        %v4471 = vld [vmem:[%s332 + $0x750] sm:$0xff]
        %v4472 = vld [vmem:[%s332 + $0x758] sm:$0xff]
        %v4473 = vld [vmem:[%s332 + $0x760] sm:$0xff]
        %v4474 = vld [vmem:[%s332 + $0x768] sm:$0xff]
        %v4475 = vld [vmem:[%s332 + $0x770] sm:$0xff]
        %v4476 = vld [vmem:[%s332 + $0x778] sm:$0xff]
        %v4477 = vld [vmem:[%s332 + $0x780] sm:$0xff]
        %v4478 = vld [vmem:[%s332 + $0x788] sm:$0xff]
        %v4479 = vld [vmem:[%s332 + $0x790] sm:$0xff]
        %v4480 = vld [vmem:[%s332 + $0x798] sm:$0xff]
        %v4481 = vld [vmem:[%s332 + $0x7a0] sm:$0xff]
        %v4482 = vld [vmem:[%s332 + $0x7a8] sm:$0xff]
        %v4483 = vld [vmem:[%s332 + $0x7b0] sm:$0xff]
        %v4484 = vld [vmem:[%s332 + $0x7b8] sm:$0xff]
        %v4485 = vld [vmem:[%s332 + $0x7c0] sm:$0xff]
        %v4486 = vld [vmem:[%s332 + $0x7c8] sm:$0xff]
        %v4487 = vld [vmem:[%s332 + $0x7d0] sm:$0xff]
        %v4488 = vld [vmem:[%s332 + $0x7d8] sm:$0xff]
        %v4489 = vld [vmem:[%s332 + $0x7e0] sm:$0xff]
        %v4490 = vld [vmem:[%s332 + $0x7e8] sm:$0xff]
        %v4491 = vld [vmem:[%s332 + $0x7f0] sm:$0xff]
        %v4492 = vld [vmem:[%s332 + $0x7f8] sm:$0xff]
        %v4749 = vunpack.c.l.b16 %v4237
        %v4750 = vunpack.c.h.b16 %v4237
        %v4751 = vunpack.c.l.b16 %v4238
        %v4752 = vunpack.c.h.b16 %v4238
        %v4753 = vunpack.c.l.b16 %v4239
        %v4754 = vunpack.c.h.b16 %v4239
        %v4755 = vunpack.c.l.b16 %v4240
        %v4756 = vunpack.c.h.b16 %v4240
        %v4757 = vunpack.c.l.b16 %v4241
        %v4758 = vunpack.c.h.b16 %v4241
        %v4759 = vunpack.c.l.b16 %v4242
        %v4760 = vunpack.c.h.b16 %v4242
        %v4761 = vunpack.c.l.b16 %v4243
        %v4762 = vunpack.c.h.b16 %v4243
        %v4763 = vunpack.c.l.b16 %v4244
        %v4764 = vunpack.c.h.b16 %v4244
        %v4765 = vunpack.c.l.b16 %v4245
        %v4766 = vunpack.c.h.b16 %v4245
        %v4767 = vunpack.c.l.b16 %v4246
        %v4768 = vunpack.c.h.b16 %v4246
        %v4769 = vunpack.c.l.b16 %v4247
        %v4770 = vunpack.c.h.b16 %v4247
        %v4771 = vunpack.c.l.b16 %v4248
        %v4772 = vunpack.c.h.b16 %v4248
        %v4773 = vunpack.c.l.b16 %v4249
        %v4774 = vunpack.c.h.b16 %v4249
        %v4775 = vunpack.c.l.b16 %v4250
        %v4776 = vunpack.c.h.b16 %v4250
        %v4777 = vunpack.c.l.b16 %v4251
        %v4778 = vunpack.c.h.b16 %v4251
        %v4779 = vunpack.c.l.b16 %v4252
        %v4780 = vunpack.c.h.b16 %v4252
        %v4781 = vunpack.c.l.b16 %v4253
        %v4782 = vunpack.c.h.b16 %v4253
        %v4783 = vunpack.c.l.b16 %v4254
        %v4784 = vunpack.c.h.b16 %v4254
        %v4785 = vunpack.c.l.b16 %v4255
        %v4786 = vunpack.c.h.b16 %v4255
        %v4787 = vunpack.c.l.b16 %v4256
        %v4788 = vunpack.c.h.b16 %v4256
        %v4789 = vunpack.c.l.b16 %v4257
        %v4790 = vunpack.c.h.b16 %v4257
        %v4791 = vunpack.c.l.b16 %v4258
        %v4792 = vunpack.c.h.b16 %v4258
        %v4793 = vunpack.c.l.b16 %v4259
        %v4794 = vunpack.c.h.b16 %v4259
        %v4795 = vunpack.c.l.b16 %v4260
        %v4796 = vunpack.c.h.b16 %v4260
        %v4797 = vunpack.c.l.b16 %v4261
        %v4798 = vunpack.c.h.b16 %v4261
        %v4799 = vunpack.c.l.b16 %v4262
        %v4800 = vunpack.c.h.b16 %v4262
        %v4801 = vunpack.c.l.b16 %v4263
        %v4802 = vunpack.c.h.b16 %v4263
        %v4803 = vunpack.c.l.b16 %v4264
        %v4804 = vunpack.c.h.b16 %v4264
        %v4805 = vunpack.c.l.b16 %v4265
        %v4806 = vunpack.c.h.b16 %v4265
        %v4807 = vunpack.c.l.b16 %v4266
        %v4808 = vunpack.c.h.b16 %v4266
        %v4809 = vunpack.c.l.b16 %v4267
        %v4810 = vunpack.c.h.b16 %v4267
        %v4811 = vunpack.c.l.b16 %v4268
        %v4812 = vunpack.c.h.b16 %v4268
        %v4813 = vunpack.c.l.b16 %v4269
        %v4814 = vunpack.c.h.b16 %v4269
        %v4815 = vunpack.c.l.b16 %v4270
        %v4816 = vunpack.c.h.b16 %v4270
        %v4817 = vunpack.c.l.b16 %v4271
        %v4818 = vunpack.c.h.b16 %v4271
        %v4819 = vunpack.c.l.b16 %v4272
        %v4820 = vunpack.c.h.b16 %v4272
        %v4821 = vunpack.c.l.b16 %v4273
        %v4822 = vunpack.c.h.b16 %v4273
        %v4823 = vunpack.c.l.b16 %v4274
        %v4824 = vunpack.c.h.b16 %v4274
        %v4825 = vunpack.c.l.b16 %v4275
        %v4826 = vunpack.c.h.b16 %v4275
        %v4827 = vunpack.c.l.b16 %v4276
        %v4828 = vunpack.c.h.b16 %v4276
        %v4829 = vunpack.c.l.b16 %v4277
        %v4830 = vunpack.c.h.b16 %v4277
        %v4831 = vunpack.c.l.b16 %v4278
        %v4832 = vunpack.c.h.b16 %v4278
        %v4833 = vunpack.c.l.b16 %v4279
        %v4834 = vunpack.c.h.b16 %v4279
        %v4835 = vunpack.c.l.b16 %v4280
        %v4836 = vunpack.c.h.b16 %v4280
        %v4837 = vunpack.c.l.b16 %v4281
        %v4838 = vunpack.c.h.b16 %v4281
        %v4839 = vunpack.c.l.b16 %v4282
        %v4840 = vunpack.c.h.b16 %v4282
        %v4841 = vunpack.c.l.b16 %v4283
        %v4842 = vunpack.c.h.b16 %v4283
        %v4843 = vunpack.c.l.b16 %v4284
        %v4844 = vunpack.c.h.b16 %v4284
        %v4845 = vunpack.c.l.b16 %v4285
        %v4846 = vunpack.c.h.b16 %v4285
        %v4847 = vunpack.c.l.b16 %v4286
        %v4848 = vunpack.c.h.b16 %v4286
        %v4849 = vunpack.c.l.b16 %v4287
        %v4850 = vunpack.c.h.b16 %v4287
        %v4851 = vunpack.c.l.b16 %v4288
        %v4852 = vunpack.c.h.b16 %v4288
        %v4853 = vunpack.c.l.b16 %v4289
        %v4854 = vunpack.c.h.b16 %v4289
        %v4855 = vunpack.c.l.b16 %v4290
        %v4856 = vunpack.c.h.b16 %v4290
        %v4857 = vunpack.c.l.b16 %v4291
        %v4858 = vunpack.c.h.b16 %v4291
        %v4859 = vunpack.c.l.b16 %v4292
        %v4860 = vunpack.c.h.b16 %v4292
        %v4861 = vunpack.c.l.b16 %v4293
        %v4862 = vunpack.c.h.b16 %v4293
        %v4863 = vunpack.c.l.b16 %v4294
        %v4864 = vunpack.c.h.b16 %v4294
        %v4865 = vunpack.c.l.b16 %v4295
        %v4866 = vunpack.c.h.b16 %v4295
        %v4867 = vunpack.c.l.b16 %v4296
        %v4868 = vunpack.c.h.b16 %v4296
        %v4869 = vunpack.c.l.b16 %v4297
        %v4870 = vunpack.c.h.b16 %v4297
        %v4871 = vunpack.c.l.b16 %v4298
        %v4872 = vunpack.c.h.b16 %v4298
        %v4873 = vunpack.c.l.b16 %v4299
        %v4874 = vunpack.c.h.b16 %v4299
        %v4875 = vunpack.c.l.b16 %v4300
        %v4876 = vunpack.c.h.b16 %v4300
        %v4877 = vunpack.c.l.b16 %v4301
        %v4878 = vunpack.c.h.b16 %v4301
        %v4879 = vunpack.c.l.b16 %v4302
        %v4880 = vunpack.c.h.b16 %v4302
        %v4881 = vunpack.c.l.b16 %v4303
        %v4882 = vunpack.c.h.b16 %v4303
        %v4883 = vunpack.c.l.b16 %v4304
        %v4884 = vunpack.c.h.b16 %v4304
        %v4885 = vunpack.c.l.b16 %v4305
        %v4886 = vunpack.c.h.b16 %v4305
        %v4887 = vunpack.c.l.b16 %v4306
        %v4888 = vunpack.c.h.b16 %v4306
        %v4889 = vunpack.c.l.b16 %v4307
        %v4890 = vunpack.c.h.b16 %v4307
        %v4891 = vunpack.c.l.b16 %v4308
        %v4892 = vunpack.c.h.b16 %v4308
        %v4893 = vunpack.c.l.b16 %v4309
        %v4894 = vunpack.c.h.b16 %v4309
        %v4895 = vunpack.c.l.b16 %v4310
        %v4896 = vunpack.c.h.b16 %v4310
        %v4897 = vunpack.c.l.b16 %v4311
        %v4898 = vunpack.c.h.b16 %v4311
        %v4899 = vunpack.c.l.b16 %v4312
        %v4900 = vunpack.c.h.b16 %v4312
        %v4901 = vunpack.c.l.b16 %v4313
        %v4902 = vunpack.c.h.b16 %v4313
        %v4903 = vunpack.c.l.b16 %v4314
        %v4904 = vunpack.c.h.b16 %v4314
        %v4905 = vunpack.c.l.b16 %v4315
        %v4906 = vunpack.c.h.b16 %v4315
        %v4907 = vunpack.c.l.b16 %v4316
        %v4908 = vunpack.c.h.b16 %v4316
        %v4909 = vunpack.c.l.b16 %v4317
        %v4910 = vunpack.c.h.b16 %v4317
        %v4911 = vunpack.c.l.b16 %v4318
        %v4912 = vunpack.c.h.b16 %v4318
        %v4913 = vunpack.c.l.b16 %v4319
        %v4914 = vunpack.c.h.b16 %v4319
        %v4915 = vunpack.c.l.b16 %v4320
        %v4916 = vunpack.c.h.b16 %v4320
        %v4917 = vunpack.c.l.b16 %v4321
        %v4918 = vunpack.c.h.b16 %v4321
        %v4919 = vunpack.c.l.b16 %v4322
        %v4920 = vunpack.c.h.b16 %v4322
        %v4921 = vunpack.c.l.b16 %v4323
        %v4922 = vunpack.c.h.b16 %v4323
        %v4923 = vunpack.c.l.b16 %v4324
        %v4924 = vunpack.c.h.b16 %v4324
        %v4925 = vunpack.c.l.b16 %v4325
        %v4926 = vunpack.c.h.b16 %v4325
        %v4927 = vunpack.c.l.b16 %v4326
        %v4928 = vunpack.c.h.b16 %v4326
        %v4929 = vunpack.c.l.b16 %v4327
        %v4930 = vunpack.c.h.b16 %v4327
        %v4931 = vunpack.c.l.b16 %v4328
        %v4932 = vunpack.c.h.b16 %v4328
        %v4933 = vunpack.c.l.b16 %v4329
        %v4934 = vunpack.c.h.b16 %v4329
        %v4935 = vunpack.c.l.b16 %v4330
        %v4936 = vunpack.c.h.b16 %v4330
        %v4937 = vunpack.c.l.b16 %v4331
        %v4938 = vunpack.c.h.b16 %v4331
        %v4939 = vunpack.c.l.b16 %v4332
        %v4940 = vunpack.c.h.b16 %v4332
        %v4941 = vunpack.c.l.b16 %v4333
        %v4942 = vunpack.c.h.b16 %v4333
        %v4943 = vunpack.c.l.b16 %v4334
        %v4944 = vunpack.c.h.b16 %v4334
        %v4945 = vunpack.c.l.b16 %v4335
        %v4946 = vunpack.c.h.b16 %v4335
        %v4947 = vunpack.c.l.b16 %v4336
        %v4948 = vunpack.c.h.b16 %v4336
        %v4949 = vunpack.c.l.b16 %v4337
        %v4950 = vunpack.c.h.b16 %v4337
        %v4951 = vunpack.c.l.b16 %v4338
        %v4952 = vunpack.c.h.b16 %v4338
        %v4953 = vunpack.c.l.b16 %v4339
        %v4954 = vunpack.c.h.b16 %v4339
        %v4955 = vunpack.c.l.b16 %v4340
        %v4956 = vunpack.c.h.b16 %v4340
        %v4957 = vunpack.c.l.b16 %v4341
        %v4958 = vunpack.c.h.b16 %v4341
        %v4959 = vunpack.c.l.b16 %v4342
        %v4960 = vunpack.c.h.b16 %v4342
        %v4961 = vunpack.c.l.b16 %v4343
        %v4962 = vunpack.c.h.b16 %v4343
        %v4963 = vunpack.c.l.b16 %v4344
        %v4964 = vunpack.c.h.b16 %v4344
        %v4965 = vunpack.c.l.b16 %v4345
        %v4966 = vunpack.c.h.b16 %v4345
        %v4967 = vunpack.c.l.b16 %v4346
        %v4968 = vunpack.c.h.b16 %v4346
        %v4969 = vunpack.c.l.b16 %v4347
        %v4970 = vunpack.c.h.b16 %v4347
        %v4971 = vunpack.c.l.b16 %v4348
        %v4972 = vunpack.c.h.b16 %v4348
        %v4973 = vunpack.c.l.b16 %v4349
        %v4974 = vunpack.c.h.b16 %v4349
        %v4975 = vunpack.c.l.b16 %v4350
        %v4976 = vunpack.c.h.b16 %v4350
        %v4977 = vunpack.c.l.b16 %v4351
        %v4978 = vunpack.c.h.b16 %v4351
        %v4979 = vunpack.c.l.b16 %v4352
        %v4980 = vunpack.c.h.b16 %v4352
        %v4981 = vunpack.c.l.b16 %v4353
        %v4982 = vunpack.c.h.b16 %v4353
        %v4983 = vunpack.c.l.b16 %v4354
        %v4984 = vunpack.c.h.b16 %v4354
        %v4985 = vunpack.c.l.b16 %v4355
        %v4986 = vunpack.c.h.b16 %v4355
        %v4987 = vunpack.c.l.b16 %v4356
        %v4988 = vunpack.c.h.b16 %v4356
        %v4989 = vunpack.c.l.b16 %v4357
        %v4990 = vunpack.c.h.b16 %v4357
        %v4991 = vunpack.c.l.b16 %v4358
        %v4992 = vunpack.c.h.b16 %v4358
        %v4993 = vunpack.c.l.b16 %v4359
        %v4994 = vunpack.c.h.b16 %v4359
        %v4995 = vunpack.c.l.b16 %v4360
        %v4996 = vunpack.c.h.b16 %v4360
        %v4997 = vunpack.c.l.b16 %v4361
        %v4998 = vunpack.c.h.b16 %v4361
        %v4999 = vunpack.c.l.b16 %v4362
        %v5000 = vunpack.c.h.b16 %v4362
        %v5001 = vunpack.c.l.b16 %v4363
        %v5002 = vunpack.c.h.b16 %v4363
        %v5003 = vunpack.c.l.b16 %v4364
        %v5004 = vunpack.c.h.b16 %v4364
        %v5005 = vunpack.c.l.b16 %v4365
        %v5006 = vunpack.c.h.b16 %v4365
        %v5007 = vunpack.c.l.b16 %v4366
        %v5008 = vunpack.c.h.b16 %v4366
        %v5009 = vunpack.c.l.b16 %v4367
        %v5010 = vunpack.c.h.b16 %v4367
        %v5011 = vunpack.c.l.b16 %v4368
        %v5012 = vunpack.c.h.b16 %v4368
        %v5013 = vunpack.c.l.b16 %v4369
        %v5014 = vunpack.c.h.b16 %v4369
        %v5015 = vunpack.c.l.b16 %v4370
        %v5016 = vunpack.c.h.b16 %v4370
        %v5017 = vunpack.c.l.b16 %v4371
        %v5018 = vunpack.c.h.b16 %v4371
        %v5019 = vunpack.c.l.b16 %v4372
        %v5020 = vunpack.c.h.b16 %v4372
        %v5021 = vunpack.c.l.b16 %v4373
        %v5022 = vunpack.c.h.b16 %v4373
        %v5023 = vunpack.c.l.b16 %v4374
        %v5024 = vunpack.c.h.b16 %v4374
        %v5025 = vunpack.c.l.b16 %v4375
        %v5026 = vunpack.c.h.b16 %v4375
        %v5027 = vunpack.c.l.b16 %v4376
        %v5028 = vunpack.c.h.b16 %v4376
        %v5029 = vunpack.c.l.b16 %v4377
        %v5030 = vunpack.c.h.b16 %v4377
        %v5031 = vunpack.c.l.b16 %v4378
        %v5032 = vunpack.c.h.b16 %v4378
        %v5033 = vunpack.c.l.b16 %v4379
        %v5034 = vunpack.c.h.b16 %v4379
        %v5035 = vunpack.c.l.b16 %v4380
        %v5036 = vunpack.c.h.b16 %v4380
        %v5037 = vunpack.c.l.b16 %v4381
        %v5038 = vunpack.c.h.b16 %v4381
        %v5039 = vunpack.c.l.b16 %v4382
        %v5040 = vunpack.c.h.b16 %v4382
        %v5041 = vunpack.c.l.b16 %v4383
        %v5042 = vunpack.c.h.b16 %v4383
        %v5043 = vunpack.c.l.b16 %v4384
        %v5044 = vunpack.c.h.b16 %v4384
        %v5045 = vunpack.c.l.b16 %v4385
        %v5046 = vunpack.c.h.b16 %v4385
        %v5047 = vunpack.c.l.b16 %v4386
        %v5048 = vunpack.c.h.b16 %v4386
        %v5049 = vunpack.c.l.b16 %v4387
        %v5050 = vunpack.c.h.b16 %v4387
        %v5051 = vunpack.c.l.b16 %v4388
        %v5052 = vunpack.c.h.b16 %v4388
        %v5053 = vunpack.c.l.b16 %v4389
        %v5054 = vunpack.c.h.b16 %v4389
        %v5055 = vunpack.c.l.b16 %v4390
        %v5056 = vunpack.c.h.b16 %v4390
        %v5057 = vunpack.c.l.b16 %v4391
        %v5058 = vunpack.c.h.b16 %v4391
        %v5059 = vunpack.c.l.b16 %v4392
        %v5060 = vunpack.c.h.b16 %v4392
        %v5061 = vunpack.c.l.b16 %v4393
        %v5062 = vunpack.c.h.b16 %v4393
        %v5063 = vunpack.c.l.b16 %v4394
        %v5064 = vunpack.c.h.b16 %v4394
        %v5065 = vunpack.c.l.b16 %v4395
        %v5066 = vunpack.c.h.b16 %v4395
        %v5067 = vunpack.c.l.b16 %v4396
        %v5068 = vunpack.c.h.b16 %v4396
        %v5069 = vunpack.c.l.b16 %v4397
        %v5070 = vunpack.c.h.b16 %v4397
        %v5071 = vunpack.c.l.b16 %v4398
        %v5072 = vunpack.c.h.b16 %v4398
        %v5073 = vunpack.c.l.b16 %v4399
        %v5074 = vunpack.c.h.b16 %v4399
        %v5075 = vunpack.c.l.b16 %v4400
        %v5076 = vunpack.c.h.b16 %v4400
        %v5077 = vunpack.c.l.b16 %v4401
        %v5078 = vunpack.c.h.b16 %v4401
        %v5079 = vunpack.c.l.b16 %v4402
        %v5080 = vunpack.c.h.b16 %v4402
        %v5081 = vunpack.c.l.b16 %v4403
        %v5082 = vunpack.c.h.b16 %v4403
        %v5083 = vunpack.c.l.b16 %v4404
        %v5084 = vunpack.c.h.b16 %v4404
        %v5085 = vunpack.c.l.b16 %v4405
        %v5086 = vunpack.c.h.b16 %v4405
        %v5087 = vunpack.c.l.b16 %v4406
        %v5088 = vunpack.c.h.b16 %v4406
        %v5089 = vunpack.c.l.b16 %v4407
        %v5090 = vunpack.c.h.b16 %v4407
        %v5091 = vunpack.c.l.b16 %v4408
        %v5092 = vunpack.c.h.b16 %v4408
        %v5093 = vunpack.c.l.b16 %v4409
        %v5094 = vunpack.c.h.b16 %v4409
        %v5095 = vunpack.c.l.b16 %v4410
        %v5096 = vunpack.c.h.b16 %v4410
        %v5097 = vunpack.c.l.b16 %v4411
        %v5098 = vunpack.c.h.b16 %v4411
        %v5099 = vunpack.c.l.b16 %v4412
        %v5100 = vunpack.c.h.b16 %v4412
        %v5101 = vunpack.c.l.b16 %v4413
        %v5102 = vunpack.c.h.b16 %v4413
        %v5103 = vunpack.c.l.b16 %v4414
        %v5104 = vunpack.c.h.b16 %v4414
        %v5105 = vunpack.c.l.b16 %v4415
        %v5106 = vunpack.c.h.b16 %v4415
        %v5107 = vunpack.c.l.b16 %v4416
        %v5108 = vunpack.c.h.b16 %v4416
        %v5109 = vunpack.c.l.b16 %v4417
        %v5110 = vunpack.c.h.b16 %v4417
        %v5111 = vunpack.c.l.b16 %v4418
        %v5112 = vunpack.c.h.b16 %v4418
        %v5113 = vunpack.c.l.b16 %v4419
        %v5114 = vunpack.c.h.b16 %v4419
        %v5115 = vunpack.c.l.b16 %v4420
        %v5116 = vunpack.c.h.b16 %v4420
        %v5117 = vunpack.c.l.b16 %v4421
        %v5118 = vunpack.c.h.b16 %v4421
        %v5119 = vunpack.c.l.b16 %v4422
        %v5120 = vunpack.c.h.b16 %v4422
        %v5121 = vunpack.c.l.b16 %v4423
        %v5122 = vunpack.c.h.b16 %v4423
        %v5123 = vunpack.c.l.b16 %v4424
        %v5124 = vunpack.c.h.b16 %v4424
        %v5125 = vunpack.c.l.b16 %v4425
        %v5126 = vunpack.c.h.b16 %v4425
        %v5127 = vunpack.c.l.b16 %v4426
        %v5128 = vunpack.c.h.b16 %v4426
        %v5129 = vunpack.c.l.b16 %v4427
        %v5130 = vunpack.c.h.b16 %v4427
        %v5131 = vunpack.c.l.b16 %v4428
        %v5132 = vunpack.c.h.b16 %v4428
        %v5133 = vunpack.c.l.b16 %v4429
        %v5134 = vunpack.c.h.b16 %v4429
        %v5135 = vunpack.c.l.b16 %v4430
        %v5136 = vunpack.c.h.b16 %v4430
        %v5137 = vunpack.c.l.b16 %v4431
        %v5138 = vunpack.c.h.b16 %v4431
        %v5139 = vunpack.c.l.b16 %v4432
        %v5140 = vunpack.c.h.b16 %v4432
        %v5141 = vunpack.c.l.b16 %v4433
        %v5142 = vunpack.c.h.b16 %v4433
        %v5143 = vunpack.c.l.b16 %v4434
        %v5144 = vunpack.c.h.b16 %v4434
        %v5145 = vunpack.c.l.b16 %v4435
        %v5146 = vunpack.c.h.b16 %v4435
        %v5147 = vunpack.c.l.b16 %v4436
        %v5148 = vunpack.c.h.b16 %v4436
        %v5149 = vunpack.c.l.b16 %v4437
        %v5150 = vunpack.c.h.b16 %v4437
        %v5151 = vunpack.c.l.b16 %v4438
        %v5152 = vunpack.c.h.b16 %v4438
        %v5153 = vunpack.c.l.b16 %v4439
        %v5154 = vunpack.c.h.b16 %v4439
        %v5155 = vunpack.c.l.b16 %v4440
        %v5156 = vunpack.c.h.b16 %v4440
        %v5157 = vunpack.c.l.b16 %v4441
        %v5158 = vunpack.c.h.b16 %v4441
        %v5159 = vunpack.c.l.b16 %v4442
        %v5160 = vunpack.c.h.b16 %v4442
        %v5161 = vunpack.c.l.b16 %v4443
        %v5162 = vunpack.c.h.b16 %v4443
        %v5163 = vunpack.c.l.b16 %v4444
        %v5164 = vunpack.c.h.b16 %v4444
        %v5165 = vunpack.c.l.b16 %v4445
        %v5166 = vunpack.c.h.b16 %v4445
        %v5167 = vunpack.c.l.b16 %v4446
        %v5168 = vunpack.c.h.b16 %v4446
        %v5169 = vunpack.c.l.b16 %v4447
        %v5170 = vunpack.c.h.b16 %v4447
        %v5171 = vunpack.c.l.b16 %v4448
        %v5172 = vunpack.c.h.b16 %v4448
        %v5173 = vunpack.c.l.b16 %v4449
        %v5174 = vunpack.c.h.b16 %v4449
        %v5175 = vunpack.c.l.b16 %v4450
        %v5176 = vunpack.c.h.b16 %v4450
        %v5177 = vunpack.c.l.b16 %v4451
        %v5178 = vunpack.c.h.b16 %v4451
        %v5179 = vunpack.c.l.b16 %v4452
        %v5180 = vunpack.c.h.b16 %v4452
        %v5181 = vunpack.c.l.b16 %v4453
        %v5182 = vunpack.c.h.b16 %v4453
        %v5183 = vunpack.c.l.b16 %v4454
        %v5184 = vunpack.c.h.b16 %v4454
        %v5185 = vunpack.c.l.b16 %v4455
        %v5186 = vunpack.c.h.b16 %v4455
        %v5187 = vunpack.c.l.b16 %v4456
        %v5188 = vunpack.c.h.b16 %v4456
        %v5189 = vunpack.c.l.b16 %v4457
        %v5190 = vunpack.c.h.b16 %v4457
        %v5191 = vunpack.c.l.b16 %v4458
        %v5192 = vunpack.c.h.b16 %v4458
        %v5193 = vunpack.c.l.b16 %v4459
        %v5194 = vunpack.c.h.b16 %v4459
        %v5195 = vunpack.c.l.b16 %v4460
        %v5196 = vunpack.c.h.b16 %v4460
        %v5197 = vunpack.c.l.b16 %v4461
        %v5198 = vunpack.c.h.b16 %v4461
        %v5199 = vunpack.c.l.b16 %v4462
        %v5200 = vunpack.c.h.b16 %v4462
        %v5201 = vunpack.c.l.b16 %v4463
        %v5202 = vunpack.c.h.b16 %v4463
        %v5203 = vunpack.c.l.b16 %v4464
        %v5204 = vunpack.c.h.b16 %v4464
        %v5205 = vunpack.c.l.b16 %v4465
        %v5206 = vunpack.c.h.b16 %v4465
        %v5207 = vunpack.c.l.b16 %v4466
        %v5208 = vunpack.c.h.b16 %v4466
        %v5209 = vunpack.c.l.b16 %v4467
        %v5210 = vunpack.c.h.b16 %v4467
        %v5211 = vunpack.c.l.b16 %v4468
        %v5212 = vunpack.c.h.b16 %v4468
        %v5213 = vunpack.c.l.b16 %v4469
        %v5214 = vunpack.c.h.b16 %v4469
        %v5215 = vunpack.c.l.b16 %v4470
        %v5216 = vunpack.c.h.b16 %v4470
        %v5217 = vunpack.c.l.b16 %v4471
        %v5218 = vunpack.c.h.b16 %v4471
        %v5219 = vunpack.c.l.b16 %v4472
        %v5220 = vunpack.c.h.b16 %v4472
        %v5221 = vunpack.c.l.b16 %v4473
        %v5222 = vunpack.c.h.b16 %v4473
        %v5223 = vunpack.c.l.b16 %v4474
        %v5224 = vunpack.c.h.b16 %v4474
        %v5225 = vunpack.c.l.b16 %v4475
        %v5226 = vunpack.c.h.b16 %v4475
        %v5227 = vunpack.c.l.b16 %v4476
        %v5228 = vunpack.c.h.b16 %v4476
        %v5229 = vunpack.c.l.b16 %v4477
        %v5230 = vunpack.c.h.b16 %v4477
        %v5231 = vunpack.c.l.b16 %v4478
        %v5232 = vunpack.c.h.b16 %v4478
        %v5233 = vunpack.c.l.b16 %v4479
        %v5234 = vunpack.c.h.b16 %v4479
        %v5235 = vunpack.c.l.b16 %v4480
        %v5236 = vunpack.c.h.b16 %v4480
        %v5237 = vunpack.c.l.b16 %v4481
        %v5238 = vunpack.c.h.b16 %v4481
        %v5239 = vunpack.c.l.b16 %v4482
        %v5240 = vunpack.c.h.b16 %v4482
        %v5241 = vunpack.c.l.b16 %v4483
        %v5242 = vunpack.c.h.b16 %v4483
        %v5243 = vunpack.c.l.b16 %v4484
        %v5244 = vunpack.c.h.b16 %v4484
        %v5245 = vunpack.c.l.b16 %v4485
        %v5246 = vunpack.c.h.b16 %v4485
        %v5247 = vunpack.c.l.b16 %v4486
        %v5248 = vunpack.c.h.b16 %v4486
        %v5249 = vunpack.c.l.b16 %v4487
        %v5250 = vunpack.c.h.b16 %v4487
        %v5251 = vunpack.c.l.b16 %v4488
        %v5252 = vunpack.c.h.b16 %v4488
        %v5253 = vunpack.c.l.b16 %v4489
        %v5254 = vunpack.c.h.b16 %v4489
        %v5255 = vunpack.c.l.b16 %v4490
        %v5256 = vunpack.c.h.b16 %v4490
        %v5257 = vunpack.c.l.b16 %v4491
        %v5258 = vunpack.c.h.b16 %v4491
        %v5259 = vunpack.c.l.b16 %v4492
        %v5260 = vunpack.c.h.b16 %v4492
        %v5261 = vpack.c.b16 %v4753, %v4749
        %v5262 = vpack.c.b16 %v4754, %v4750
        %v5263 = vpack.c.b16 %v4755, %v4751
        %v5264 = vpack.c.b16 %v4756, %v4752
        %v5265 = vpack.c.b16 %v4761, %v4757
        %v5266 = vpack.c.b16 %v4762, %v4758
        %v5267 = vpack.c.b16 %v4763, %v4759
        %v5268 = vpack.c.b16 %v4764, %v4760
        %v5269 = vpack.c.b16 %v4769, %v4765
        %v5270 = vpack.c.b16 %v4770, %v4766
        %v5271 = vpack.c.b16 %v4771, %v4767
        %v5272 = vpack.c.b16 %v4772, %v4768
        %v5273 = vpack.c.b16 %v4777, %v4773
        %v5274 = vpack.c.b16 %v4778, %v4774
        %v5275 = vpack.c.b16 %v4779, %v4775
        %v5276 = vpack.c.b16 %v4780, %v4776
        %v5277 = vpack.c.b16 %v4785, %v4781
        %v5278 = vpack.c.b16 %v4786, %v4782
        %v5279 = vpack.c.b16 %v4787, %v4783
        %v5280 = vpack.c.b16 %v4788, %v4784
        %v5281 = vpack.c.b16 %v4793, %v4789
        %v5282 = vpack.c.b16 %v4794, %v4790
        %v5283 = vpack.c.b16 %v4795, %v4791
        %v5284 = vpack.c.b16 %v4796, %v4792
        %v5285 = vpack.c.b16 %v4801, %v4797
        %v5286 = vpack.c.b16 %v4802, %v4798
        %v5287 = vpack.c.b16 %v4803, %v4799
        %v5288 = vpack.c.b16 %v4804, %v4800
        %v5289 = vpack.c.b16 %v4809, %v4805
        %v5290 = vpack.c.b16 %v4810, %v4806
        %v5291 = vpack.c.b16 %v4811, %v4807
        %v5292 = vpack.c.b16 %v4812, %v4808
        %v5293 = vpack.c.b16 %v4817, %v4813
        %v5294 = vpack.c.b16 %v4818, %v4814
        %v5295 = vpack.c.b16 %v4819, %v4815
        %v5296 = vpack.c.b16 %v4820, %v4816
        %v5297 = vpack.c.b16 %v4825, %v4821
        %v5298 = vpack.c.b16 %v4826, %v4822
        %v5299 = vpack.c.b16 %v4827, %v4823
        %v5300 = vpack.c.b16 %v4828, %v4824
        %v5301 = vpack.c.b16 %v4833, %v4829
        %v5302 = vpack.c.b16 %v4834, %v4830
        %v5303 = vpack.c.b16 %v4835, %v4831
        %v5304 = vpack.c.b16 %v4836, %v4832
        %v5305 = vpack.c.b16 %v4841, %v4837
        %v5306 = vpack.c.b16 %v4842, %v4838
        %v5307 = vpack.c.b16 %v4843, %v4839
        %v5308 = vpack.c.b16 %v4844, %v4840
        %v5309 = vpack.c.b16 %v4849, %v4845
        %v5310 = vpack.c.b16 %v4850, %v4846
        %v5311 = vpack.c.b16 %v4851, %v4847
        %v5312 = vpack.c.b16 %v4852, %v4848
        %v5313 = vpack.c.b16 %v4857, %v4853
        %v5314 = vpack.c.b16 %v4858, %v4854
        %v5315 = vpack.c.b16 %v4859, %v4855
        %v5316 = vpack.c.b16 %v4860, %v4856
        %v5317 = vpack.c.b16 %v4865, %v4861
        %v5318 = vpack.c.b16 %v4866, %v4862
        %v5319 = vpack.c.b16 %v4867, %v4863
        %v5320 = vpack.c.b16 %v4868, %v4864
        %v5321 = vpack.c.b16 %v4873, %v4869
        %v5322 = vpack.c.b16 %v4874, %v4870
        %v5323 = vpack.c.b16 %v4875, %v4871
        %v5324 = vpack.c.b16 %v4876, %v4872
        %v5325 = vpack.c.b16 %v4881, %v4877
        %v5326 = vpack.c.b16 %v4882, %v4878
        %v5327 = vpack.c.b16 %v4883, %v4879
        %v5328 = vpack.c.b16 %v4884, %v4880
        %v5329 = vpack.c.b16 %v4889, %v4885
        %v5330 = vpack.c.b16 %v4890, %v4886
        %v5331 = vpack.c.b16 %v4891, %v4887
        %v5332 = vpack.c.b16 %v4892, %v4888
        %v5333 = vpack.c.b16 %v4897, %v4893
        %v5334 = vpack.c.b16 %v4898, %v4894
        %v5335 = vpack.c.b16 %v4899, %v4895
        %v5336 = vpack.c.b16 %v4900, %v4896
        %v5337 = vpack.c.b16 %v4905, %v4901
        %v5338 = vpack.c.b16 %v4906, %v4902
        %v5339 = vpack.c.b16 %v4907, %v4903
        %v5340 = vpack.c.b16 %v4908, %v4904
        %v5341 = vpack.c.b16 %v4913, %v4909
        %v5342 = vpack.c.b16 %v4914, %v4910
        %v5343 = vpack.c.b16 %v4915, %v4911
        %v5344 = vpack.c.b16 %v4916, %v4912
        %v5345 = vpack.c.b16 %v4921, %v4917
        %v5346 = vpack.c.b16 %v4922, %v4918
        %v5347 = vpack.c.b16 %v4923, %v4919
        %v5348 = vpack.c.b16 %v4924, %v4920
        %v5349 = vpack.c.b16 %v4929, %v4925
        %v5350 = vpack.c.b16 %v4930, %v4926
        %v5351 = vpack.c.b16 %v4931, %v4927
        %v5352 = vpack.c.b16 %v4932, %v4928
        %v5353 = vpack.c.b16 %v4937, %v4933
        %v5354 = vpack.c.b16 %v4938, %v4934
        %v5355 = vpack.c.b16 %v4939, %v4935
        %v5356 = vpack.c.b16 %v4940, %v4936
        %v5357 = vpack.c.b16 %v4945, %v4941
        %v5358 = vpack.c.b16 %v4946, %v4942
        %v5359 = vpack.c.b16 %v4947, %v4943
        %v5360 = vpack.c.b16 %v4948, %v4944
        %v5361 = vpack.c.b16 %v4953, %v4949
        %v5362 = vpack.c.b16 %v4954, %v4950
        %v5363 = vpack.c.b16 %v4955, %v4951
        %v5364 = vpack.c.b16 %v4956, %v4952
        %v5365 = vpack.c.b16 %v4961, %v4957
        %v5366 = vpack.c.b16 %v4962, %v4958
        %v5367 = vpack.c.b16 %v4963, %v4959
        %v5368 = vpack.c.b16 %v4964, %v4960
        %v5369 = vpack.c.b16 %v4969, %v4965
        %v5370 = vpack.c.b16 %v4970, %v4966
        %v5371 = vpack.c.b16 %v4971, %v4967
        %v5372 = vpack.c.b16 %v4972, %v4968
        %v5373 = vpack.c.b16 %v4977, %v4973
        %v5374 = vpack.c.b16 %v4978, %v4974
        %v5375 = vpack.c.b16 %v4979, %v4975
        %v5376 = vpack.c.b16 %v4980, %v4976
        %v5377 = vpack.c.b16 %v4985, %v4981
        %v5378 = vpack.c.b16 %v4986, %v4982
        %v5379 = vpack.c.b16 %v4987, %v4983
        %v5380 = vpack.c.b16 %v4988, %v4984
        %v5381 = vpack.c.b16 %v4993, %v4989
        %v5382 = vpack.c.b16 %v4994, %v4990
        %v5383 = vpack.c.b16 %v4995, %v4991
        %v5384 = vpack.c.b16 %v4996, %v4992
        %v5385 = vpack.c.b16 %v5001, %v4997
        %v5386 = vpack.c.b16 %v5002, %v4998
        %v5387 = vpack.c.b16 %v5003, %v4999
        %v5388 = vpack.c.b16 %v5004, %v5000
        %v5389 = vpack.c.b16 %v5009, %v5005
        %v5390 = vpack.c.b16 %v5010, %v5006
        %v5391 = vpack.c.b16 %v5011, %v5007
        %v5392 = vpack.c.b16 %v5012, %v5008
        %v5393 = vpack.c.b16 %v5017, %v5013
        %v5394 = vpack.c.b16 %v5018, %v5014
        %v5395 = vpack.c.b16 %v5019, %v5015
        %v5396 = vpack.c.b16 %v5020, %v5016
        %v5397 = vpack.c.b16 %v5025, %v5021
        %v5398 = vpack.c.b16 %v5026, %v5022
        %v5399 = vpack.c.b16 %v5027, %v5023
        %v5400 = vpack.c.b16 %v5028, %v5024
        %v5401 = vpack.c.b16 %v5033, %v5029
        %v5402 = vpack.c.b16 %v5034, %v5030
        %v5403 = vpack.c.b16 %v5035, %v5031
        %v5404 = vpack.c.b16 %v5036, %v5032
        %v5405 = vpack.c.b16 %v5041, %v5037
        %v5406 = vpack.c.b16 %v5042, %v5038
        %v5407 = vpack.c.b16 %v5043, %v5039
        %v5408 = vpack.c.b16 %v5044, %v5040
        %v5409 = vpack.c.b16 %v5049, %v5045
        %v5410 = vpack.c.b16 %v5050, %v5046
        %v5411 = vpack.c.b16 %v5051, %v5047
        %v5412 = vpack.c.b16 %v5052, %v5048
        %v5413 = vpack.c.b16 %v5057, %v5053
        %v5414 = vpack.c.b16 %v5058, %v5054
        %v5415 = vpack.c.b16 %v5059, %v5055
        %v5416 = vpack.c.b16 %v5060, %v5056
        %v5417 = vpack.c.b16 %v5065, %v5061
        %v5418 = vpack.c.b16 %v5066, %v5062
        %v5419 = vpack.c.b16 %v5067, %v5063
        %v5420 = vpack.c.b16 %v5068, %v5064
        %v5421 = vpack.c.b16 %v5073, %v5069
        %v5422 = vpack.c.b16 %v5074, %v5070
        %v5423 = vpack.c.b16 %v5075, %v5071
        %v5424 = vpack.c.b16 %v5076, %v5072
        %v5425 = vpack.c.b16 %v5081, %v5077
        %v5426 = vpack.c.b16 %v5082, %v5078
        %v5427 = vpack.c.b16 %v5083, %v5079
        %v5428 = vpack.c.b16 %v5084, %v5080
        %v5429 = vpack.c.b16 %v5089, %v5085
        %v5430 = vpack.c.b16 %v5090, %v5086
        %v5431 = vpack.c.b16 %v5091, %v5087
        %v5432 = vpack.c.b16 %v5092, %v5088
        %v5433 = vpack.c.b16 %v5097, %v5093
        %v5434 = vpack.c.b16 %v5098, %v5094
        %v5435 = vpack.c.b16 %v5099, %v5095
        %v5436 = vpack.c.b16 %v5100, %v5096
        %v5437 = vpack.c.b16 %v5105, %v5101
        %v5438 = vpack.c.b16 %v5106, %v5102
        %v5439 = vpack.c.b16 %v5107, %v5103
        %v5440 = vpack.c.b16 %v5108, %v5104
        %v5441 = vpack.c.b16 %v5113, %v5109
        %v5442 = vpack.c.b16 %v5114, %v5110
        %v5443 = vpack.c.b16 %v5115, %v5111
        %v5444 = vpack.c.b16 %v5116, %v5112
        %v5445 = vpack.c.b16 %v5121, %v5117
        %v5446 = vpack.c.b16 %v5122, %v5118
        %v5447 = vpack.c.b16 %v5123, %v5119
        %v5448 = vpack.c.b16 %v5124, %v5120
        %v5449 = vpack.c.b16 %v5129, %v5125
        %v5450 = vpack.c.b16 %v5130, %v5126
        %v5451 = vpack.c.b16 %v5131, %v5127
        %v5452 = vpack.c.b16 %v5132, %v5128
        %v5453 = vpack.c.b16 %v5137, %v5133
        %v5454 = vpack.c.b16 %v5138, %v5134
        %v5455 = vpack.c.b16 %v5139, %v5135
        %v5456 = vpack.c.b16 %v5140, %v5136
        %v5457 = vpack.c.b16 %v5145, %v5141
        %v5458 = vpack.c.b16 %v5146, %v5142
        %v5459 = vpack.c.b16 %v5147, %v5143
        %v5460 = vpack.c.b16 %v5148, %v5144
        %v5461 = vpack.c.b16 %v5153, %v5149
        %v5462 = vpack.c.b16 %v5154, %v5150
        %v5463 = vpack.c.b16 %v5155, %v5151
        %v5464 = vpack.c.b16 %v5156, %v5152
        %v5465 = vpack.c.b16 %v5161, %v5157
        %v5466 = vpack.c.b16 %v5162, %v5158
        %v5467 = vpack.c.b16 %v5163, %v5159
        %v5468 = vpack.c.b16 %v5164, %v5160
        %v5469 = vpack.c.b16 %v5169, %v5165
        %v5470 = vpack.c.b16 %v5170, %v5166
        %v5471 = vpack.c.b16 %v5171, %v5167
        %v5472 = vpack.c.b16 %v5172, %v5168
        %v5473 = vpack.c.b16 %v5177, %v5173
        %v5474 = vpack.c.b16 %v5178, %v5174
        %v5475 = vpack.c.b16 %v5179, %v5175
        %v5476 = vpack.c.b16 %v5180, %v5176
        %v5477 = vpack.c.b16 %v5185, %v5181
        %v5478 = vpack.c.b16 %v5186, %v5182
        %v5479 = vpack.c.b16 %v5187, %v5183
        %v5480 = vpack.c.b16 %v5188, %v5184
        %v5481 = vpack.c.b16 %v5193, %v5189
        %v5482 = vpack.c.b16 %v5194, %v5190
        %v5483 = vpack.c.b16 %v5195, %v5191
        %v5484 = vpack.c.b16 %v5196, %v5192
        %v5485 = vpack.c.b16 %v5201, %v5197
        %v5486 = vpack.c.b16 %v5202, %v5198
        %v5487 = vpack.c.b16 %v5203, %v5199
        %v5488 = vpack.c.b16 %v5204, %v5200
        %v5489 = vpack.c.b16 %v5209, %v5205
        %v5490 = vpack.c.b16 %v5210, %v5206
        %v5491 = vpack.c.b16 %v5211, %v5207
        %v5492 = vpack.c.b16 %v5212, %v5208
        %v5493 = vpack.c.b16 %v5217, %v5213
        %v5494 = vpack.c.b16 %v5218, %v5214
        %v5495 = vpack.c.b16 %v5219, %v5215
        %v5496 = vpack.c.b16 %v5220, %v5216
        %v5497 = vpack.c.b16 %v5225, %v5221
        %v5498 = vpack.c.b16 %v5226, %v5222
        %v5499 = vpack.c.b16 %v5227, %v5223
        %v5500 = vpack.c.b16 %v5228, %v5224
        %v5501 = vpack.c.b16 %v5233, %v5229
        %v5502 = vpack.c.b16 %v5234, %v5230
        %v5503 = vpack.c.b16 %v5235, %v5231
        %v5504 = vpack.c.b16 %v5236, %v5232
        %v5505 = vpack.c.b16 %v5241, %v5237
        %v5506 = vpack.c.b16 %v5242, %v5238
        %v5507 = vpack.c.b16 %v5243, %v5239
        %v5508 = vpack.c.b16 %v5244, %v5240
        %v5509 = vpack.c.b16 %v5249, %v5245
        %v5510 = vpack.c.b16 %v5250, %v5246
        %v5511 = vpack.c.b16 %v5251, %v5247
        %v5512 = vpack.c.b16 %v5252, %v5248
        %v5513 = vpack.c.b16 %v5257, %v5253
        %v5514 = vpack.c.b16 %v5258, %v5254
        %v5515 = vpack.c.b16 %v5259, %v5255
        %v5516 = vpack.c.b16 %v5260, %v5256
        %5773 = vmatprep.subr.bf16.mxu0 %v5262
        %5774 = vmatpush1.bf16.msra.mxu0 %v5261
        %5775 = vmatprep.subr.bf16.mxu0 %v5266
        %5776 = vmatpush1.bf16.msra.mxu0 %v5265
        %5777 = vmatprep.subr.bf16.mxu0 %v5270
        %5778 = vmatpush1.bf16.msra.mxu0 %v5269
        %5779 = vmatprep.subr.bf16.mxu0 %v5274
        %5780 = vmatpush1.bf16.msra.mxu0 %v5273
        %5781 = vmatprep.subr.bf16.mxu0 %v5278
        %5782 = vmatpush1.bf16.msra.mxu0 %v5277
        %5783 = vmatprep.subr.bf16.mxu0 %v5282
        %5784 = vmatpush1.bf16.msra.mxu0 %v5281
        %5785 = vmatprep.subr.bf16.mxu0 %v5286
        %5786 = vmatpush1.bf16.msra.mxu0 %v5285
        %5787 = vmatprep.subr.bf16.mxu0 %v5290
        %5788 = vmatpush1.bf16.msra.mxu0 %v5289
        %5789 = vmatprep.subr.bf16.mxu0 %v5294
        %5790 = vmatpush1.bf16.msra.mxu0 %v5293
        %5791 = vmatprep.subr.bf16.mxu0 %v5298
        %5792 = vmatpush1.bf16.msra.mxu0 %v5297
        %5793 = vmatprep.subr.bf16.mxu0 %v5302
        %5794 = vmatpush1.bf16.msra.mxu0 %v5301
        %5795 = vmatprep.subr.bf16.mxu0 %v5306
        %5796 = vmatpush1.bf16.msra.mxu0 %v5305
        %5797 = vmatprep.subr.bf16.mxu0 %v5310
        %5798 = vmatpush1.bf16.msra.mxu0 %v5309
        %5799 = vmatprep.subr.bf16.mxu0 %v5314
        %5800 = vmatpush1.bf16.msra.mxu0 %v5313
        %5801 = vmatprep.subr.bf16.mxu0 %v5318
        %5802 = vmatpush1.bf16.msra.mxu0 %v5317
        %5803 = vmatprep.subr.bf16.mxu0 %v5322
        %5804 = vmatpush1.bf16.msra.mxu0 %v5321
        %5805 = vmatprep.mubr.bf16.mxu0 %v4230
        %5806 = vmatmul.mubr.bf16.gmra.mrb[0].mxu0 %v4229
        %v5807 = vpop.f32.mrb[0].mxu0
        %v5808 = vadd.f32 0.0, %v5807
        %v5809 = vpop.f32.mrb[0].mxu0
        %v5810 = vadd.f32 0.0, %v5809
        %v5811 = vpop.f32.mrb[0].mxu0
        %v5812 = vpop.f32.mrb[0].mxu0
        %5813 = vdwg.mxu0
        %5814 = vmatprep.subr.bf16.mxu0 %v5326
        %5815 = vmatpush1.bf16.msra.mxu0 %v5325
        %5816 = vmatprep.subr.bf16.mxu0 %v5330
        %5817 = vmatpush1.bf16.msra.mxu0 %v5329
        %5818 = vmatprep.subr.bf16.mxu0 %v5334
        %5819 = vmatpush1.bf16.msra.mxu0 %v5333
        %5820 = vmatprep.subr.bf16.mxu0 %v5338
        %5821 = vmatpush1.bf16.msra.mxu0 %v5337
        %5822 = vmatprep.subr.bf16.mxu0 %v5342
        %5823 = vmatpush1.bf16.msra.mxu0 %v5341
        %5824 = vmatprep.subr.bf16.mxu0 %v5346
        %5825 = vmatpush1.bf16.msra.mxu0 %v5345
        %5826 = vmatprep.subr.bf16.mxu0 %v5350
        %5827 = vmatpush1.bf16.msra.mxu0 %v5349
        %5828 = vmatprep.subr.bf16.mxu0 %v5354
        %5829 = vmatpush1.bf16.msra.mxu0 %v5353
        %5830 = vmatprep.subr.bf16.mxu0 %v5358
        %5831 = vmatpush1.bf16.msra.mxu0 %v5357
        %5832 = vmatprep.subr.bf16.mxu0 %v5362
        %5833 = vmatpush1.bf16.msra.mxu0 %v5361
        %5834 = vmatprep.subr.bf16.mxu0 %v5366
        %5835 = vmatpush1.bf16.msra.mxu0 %v5365
        %5836 = vmatprep.subr.bf16.mxu0 %v5370
        %5837 = vmatpush1.bf16.msra.mxu0 %v5369
        %5838 = vmatprep.subr.bf16.mxu0 %v5374
        %5839 = vmatpush1.bf16.msra.mxu0 %v5373
        %5840 = vmatprep.subr.bf16.mxu0 %v5378
        %5841 = vmatpush1.bf16.msra.mxu0 %v5377
        %5842 = vmatprep.subr.bf16.mxu0 %v5382
        %5843 = vmatpush1.bf16.msra.mxu0 %v5381
        %5844 = vmatprep.subr.bf16.mxu0 %v5386
        %5845 = vmatpush1.bf16.msra.mxu0 %v5385
        %5846 = vmatprep.mubr.bf16.mxu0 %v4232
        %5847 = vmatmul.mubr.bf16.gmra.mrb[0].mxu0 %v4231
        %v5848 = vpop.f32.mrb[0].mxu0
        %v5849 = vadd.f32 %v5808, %v5848
        %v5850 = vpop.f32.mrb[0].mxu0
        %v5851 = vadd.f32 %v5810, %v5850
        %v5852 = vpop.f32.mrb[0].mxu0
        %v5853 = vpop.f32.mrb[0].mxu0
        %5854 = vdwg.mxu0
        %5855 = vmatprep.subr.bf16.mxu0 %v5390
        %5856 = vmatpush1.bf16.msra.mxu0 %v5389
        %5857 = vmatprep.subr.bf16.mxu0 %v5394
        %5858 = vmatpush1.bf16.msra.mxu0 %v5393
        %5859 = vmatprep.subr.bf16.mxu0 %v5398
        %5860 = vmatpush1.bf16.msra.mxu0 %v5397
        %5861 = vmatprep.subr.bf16.mxu0 %v5402
        %5862 = vmatpush1.bf16.msra.mxu0 %v5401
        %5863 = vmatprep.subr.bf16.mxu0 %v5406
        %5864 = vmatpush1.bf16.msra.mxu0 %v5405
        %5865 = vmatprep.subr.bf16.mxu0 %v5410
        %5866 = vmatpush1.bf16.msra.mxu0 %v5409
        %5867 = vmatprep.subr.bf16.mxu0 %v5414
        %5868 = vmatpush1.bf16.msra.mxu0 %v5413
        %5869 = vmatprep.subr.bf16.mxu0 %v5418
        %5870 = vmatpush1.bf16.msra.mxu0 %v5417
        %5871 = vmatprep.subr.bf16.mxu0 %v5422
        %5872 = vmatpush1.bf16.msra.mxu0 %v5421
        %5873 = vmatprep.subr.bf16.mxu0 %v5426
        %5874 = vmatpush1.bf16.msra.mxu0 %v5425
        %5875 = vmatprep.subr.bf16.mxu0 %v5430
        %5876 = vmatpush1.bf16.msra.mxu0 %v5429
        %5877 = vmatprep.subr.bf16.mxu0 %v5434
        %5878 = vmatpush1.bf16.msra.mxu0 %v5433
        %5879 = vmatprep.subr.bf16.mxu0 %v5438
        %5880 = vmatpush1.bf16.msra.mxu0 %v5437
        %5881 = vmatprep.subr.bf16.mxu0 %v5442
        %5882 = vmatpush1.bf16.msra.mxu0 %v5441
        %5883 = vmatprep.subr.bf16.mxu0 %v5446
        %5884 = vmatpush1.bf16.msra.mxu0 %v5445
        %5885 = vmatprep.subr.bf16.mxu0 %v5450
        %5886 = vmatpush1.bf16.msra.mxu0 %v5449
        %5887 = vmatprep.mubr.bf16.mxu0 %v4234
        %5888 = vmatmul.mubr.bf16.gmra.mrb[0].mxu0 %v4233
        %v5889 = vpop.f32.mrb[0].mxu0
        %v5890 = vadd.f32 %v5849, %v5889
        %v5891 = vpop.f32.mrb[0].mxu0
        %v5892 = vadd.f32 %v5851, %v5891
        %v5893 = vpop.f32.mrb[0].mxu0
        %v5894 = vpop.f32.mrb[0].mxu0
        %5895 = vdwg.mxu0
        %5896 = vmatprep.subr.bf16.mxu0 %v5454
        %5897 = vmatpush1.bf16.msra.mxu0 %v5453
        %5898 = vmatprep.subr.bf16.mxu0 %v5458
        %5899 = vmatpush1.bf16.msra.mxu0 %v5457
        %5900 = vmatprep.subr.bf16.mxu0 %v5462
        %5901 = vmatpush1.bf16.msra.mxu0 %v5461
        %5902 = vmatprep.subr.bf16.mxu0 %v5466
        %5903 = vmatpush1.bf16.msra.mxu0 %v5465
        %5904 = vmatprep.subr.bf16.mxu0 %v5470
        %5905 = vmatpush1.bf16.msra.mxu0 %v5469
        %5906 = vmatprep.subr.bf16.mxu0 %v5474
        %5907 = vmatpush1.bf16.msra.mxu0 %v5473
        %5908 = vmatprep.subr.bf16.mxu0 %v5478
        %5909 = vmatpush1.bf16.msra.mxu0 %v5477
        %5910 = vmatprep.subr.bf16.mxu0 %v5482
        %5911 = vmatpush1.bf16.msra.mxu0 %v5481
        %5912 = vmatprep.subr.bf16.mxu0 %v5486
        %5913 = vmatpush1.bf16.msra.mxu0 %v5485
        %5914 = vmatprep.subr.bf16.mxu0 %v5490
        %5915 = vmatpush1.bf16.msra.mxu0 %v5489
        %5916 = vmatprep.subr.bf16.mxu0 %v5494
        %5917 = vmatpush1.bf16.msra.mxu0 %v5493
        %5918 = vmatprep.subr.bf16.mxu0 %v5498
        %5919 = vmatpush1.bf16.msra.mxu0 %v5497
        %5920 = vmatprep.subr.bf16.mxu0 %v5502
        %5921 = vmatpush1.bf16.msra.mxu0 %v5501
        %5922 = vmatprep.subr.bf16.mxu0 %v5506
        %5923 = vmatpush1.bf16.msra.mxu0 %v5505
        %5924 = vmatprep.subr.bf16.mxu0 %v5510
        %5925 = vmatpush1.bf16.msra.mxu0 %v5509
        %5926 = vmatprep.subr.bf16.mxu0 %v5514
        %5927 = vmatpush1.bf16.msra.mxu0 %v5513
        %5928 = vmatprep.mubr.bf16.mxu0 %v4236
        %5929 = vmatmul.mubr.bf16.gmra.mrb[0].mxu0 %v4235
        %v5930 = vpop.f32.mrb[0].mxu0
        %v5931 = vadd.f32 %v5890, %v5930
        %v5932 = vpop.f32.mrb[0].mxu0
        %v5933 = vadd.f32 %v5892, %v5932
        %v5934 = vpop.f32.mrb[0].mxu0
        %v5935 = vpop.f32.mrb[0].mxu0
        %5936 = vdwg.mxu0
        %5937 = vmatprep.subr.bf16.mxu0 %v5264
        %5938 = vmatpush1.bf16.msra.mxu0 %v5263
        %5939 = vmatprep.subr.bf16.mxu0 %v5268
        %5940 = vmatpush1.bf16.msra.mxu0 %v5267
        %5941 = vmatprep.subr.bf16.mxu0 %v5272
        %5942 = vmatpush1.bf16.msra.mxu0 %v5271
        %5943 = vmatprep.subr.bf16.mxu0 %v5276
        %5944 = vmatpush1.bf16.msra.mxu0 %v5275
        %5945 = vmatprep.subr.bf16.mxu0 %v5280
        %5946 = vmatpush1.bf16.msra.mxu0 %v5279
        %5947 = vmatprep.subr.bf16.mxu0 %v5284
        %5948 = vmatpush1.bf16.msra.mxu0 %v5283
        %5949 = vmatprep.subr.bf16.mxu0 %v5288
        %5950 = vmatpush1.bf16.msra.mxu0 %v5287
        %5951 = vmatprep.subr.bf16.mxu0 %v5292
        %5952 = vmatpush1.bf16.msra.mxu0 %v5291
        %5953 = vmatprep.subr.bf16.mxu0 %v5296
        %5954 = vmatpush1.bf16.msra.mxu0 %v5295
        %5955 = vmatprep.subr.bf16.mxu0 %v5300
        %5956 = vmatpush1.bf16.msra.mxu0 %v5299
        %5957 = vmatprep.subr.bf16.mxu0 %v5304
        %5958 = vmatpush1.bf16.msra.mxu0 %v5303
        %5959 = vmatprep.subr.bf16.mxu0 %v5308
        %5960 = vmatpush1.bf16.msra.mxu0 %v5307
        %5961 = vmatprep.subr.bf16.mxu0 %v5312
        %5962 = vmatpush1.bf16.msra.mxu0 %v5311
        %5963 = vmatprep.subr.bf16.mxu0 %v5316
        %5964 = vmatpush1.bf16.msra.mxu0 %v5315
        %5965 = vmatprep.subr.bf16.mxu0 %v5320
        %5966 = vmatpush1.bf16.msra.mxu0 %v5319
        %5967 = vmatprep.subr.bf16.mxu0 %v5324
        %5968 = vmatpush1.bf16.msra.mxu0 %v5323
        %5969 = vmatprep.mubr.bf16.mxu0 %v4230
        %5970 = vmatmul.mubr.bf16.gmra.mrb[0].mxu0 %v4229
        %v5971 = vpop.f32.mrb[0].mxu0
        %v5972 = vadd.f32 0.0, %v5971
        %v5973 = vpop.f32.mrb[0].mxu0
        %v5974 = vadd.f32 0.0, %v5973
        %v5975 = vpop.f32.mrb[0].mxu0
        %v5976 = vpop.f32.mrb[0].mxu0
        %5977 = vdwg.mxu0
        %5978 = vmatprep.subr.bf16.mxu0 %v5328
        %5979 = vmatpush1.bf16.msra.mxu0 %v5327
        %5980 = vmatprep.subr.bf16.mxu0 %v5332
        %5981 = vmatpush1.bf16.msra.mxu0 %v5331
        %5982 = vmatprep.subr.bf16.mxu0 %v5336
        %5983 = vmatpush1.bf16.msra.mxu0 %v5335
        %5984 = vmatprep.subr.bf16.mxu0 %v5340
        %5985 = vmatpush1.bf16.msra.mxu0 %v5339
        %5986 = vmatprep.subr.bf16.mxu0 %v5344
        %5987 = vmatpush1.bf16.msra.mxu0 %v5343
        %5988 = vmatprep.subr.bf16.mxu0 %v5348
        %5989 = vmatpush1.bf16.msra.mxu0 %v5347
        %5990 = vmatprep.subr.bf16.mxu0 %v5352
        %5991 = vmatpush1.bf16.msra.mxu0 %v5351
        %5992 = vmatprep.subr.bf16.mxu0 %v5356
        %5993 = vmatpush1.bf16.msra.mxu0 %v5355
        %5994 = vmatprep.subr.bf16.mxu0 %v5360
        %5995 = vmatpush1.bf16.msra.mxu0 %v5359
        %5996 = vmatprep.subr.bf16.mxu0 %v5364
        %5997 = vmatpush1.bf16.msra.mxu0 %v5363
        %5998 = vmatprep.subr.bf16.mxu0 %v5368
        %5999 = vmatpush1.bf16.msra.mxu0 %v5367
        %6000 = vmatprep.subr.bf16.mxu0 %v5372
        %6001 = vmatpush1.bf16.msra.mxu0 %v5371
        %6002 = vmatprep.subr.bf16.mxu0 %v5376
        %6003 = vmatpush1.bf16.msra.mxu0 %v5375
        %6004 = vmatprep.subr.bf16.mxu0 %v5380
        %6005 = vmatpush1.bf16.msra.mxu0 %v5379
        %6006 = vmatprep.subr.bf16.mxu0 %v5384
        %6007 = vmatpush1.bf16.msra.mxu0 %v5383
        %6008 = vmatprep.subr.bf16.mxu0 %v5388
        %6009 = vmatpush1.bf16.msra.mxu0 %v5387
        %6010 = vmatprep.mubr.bf16.mxu0 %v4232
        %6011 = vmatmul.mubr.bf16.gmra.mrb[0].mxu0 %v4231
        %v6012 = vpop.f32.mrb[0].mxu0
        %v6013 = vadd.f32 %v5972, %v6012
        %v6014 = vpop.f32.mrb[0].mxu0
        %v6015 = vadd.f32 %v5974, %v6014
        %v6016 = vpop.f32.mrb[0].mxu0
        %v6017 = vpop.f32.mrb[0].mxu0
        %6018 = vdwg.mxu0
        %6019 = vmatprep.subr.bf16.mxu0 %v5392
        %6020 = vmatpush1.bf16.msra.mxu0 %v5391
        %6021 = vmatprep.subr.bf16.mxu0 %v5396
        %6022 = vmatpush1.bf16.msra.mxu0 %v5395
        %6023 = vmatprep.subr.bf16.mxu0 %v5400
        %6024 = vmatpush1.bf16.msra.mxu0 %v5399
        %6025 = vmatprep.subr.bf16.mxu0 %v5404
        %6026 = vmatpush1.bf16.msra.mxu0 %v5403
        %6027 = vmatprep.subr.bf16.mxu0 %v5408
        %6028 = vmatpush1.bf16.msra.mxu0 %v5407
        %6029 = vmatprep.subr.bf16.mxu0 %v5412
        %6030 = vmatpush1.bf16.msra.mxu0 %v5411
        %6031 = vmatprep.subr.bf16.mxu0 %v5416
        %6032 = vmatpush1.bf16.msra.mxu0 %v5415
        %6033 = vmatprep.subr.bf16.mxu0 %v5420
        %6034 = vmatpush1.bf16.msra.mxu0 %v5419
        %6035 = vmatprep.subr.bf16.mxu0 %v5424
        %6036 = vmatpush1.bf16.msra.mxu0 %v5423
        %6037 = vmatprep.subr.bf16.mxu0 %v5428
        %6038 = vmatpush1.bf16.msra.mxu0 %v5427
        %6039 = vmatprep.subr.bf16.mxu0 %v5432
        %6040 = vmatpush1.bf16.msra.mxu0 %v5431
        %6041 = vmatprep.subr.bf16.mxu0 %v5436
        %6042 = vmatpush1.bf16.msra.mxu0 %v5435
        %6043 = vmatprep.subr.bf16.mxu0 %v5440
        %6044 = vmatpush1.bf16.msra.mxu0 %v5439
        %6045 = vmatprep.subr.bf16.mxu0 %v5444
        %6046 = vmatpush1.bf16.msra.mxu0 %v5443
        %6047 = vmatprep.subr.bf16.mxu0 %v5448
        %6048 = vmatpush1.bf16.msra.mxu0 %v5447
        %6049 = vmatprep.subr.bf16.mxu0 %v5452
        %6050 = vmatpush1.bf16.msra.mxu0 %v5451
        %6051 = vmatprep.mubr.bf16.mxu0 %v4234
        %6052 = vmatmul.mubr.bf16.gmra.mrb[0].mxu0 %v4233
        %v6053 = vpop.f32.mrb[0].mxu0
        %v6054 = vadd.f32 %v6013, %v6053
        %v6055 = vpop.f32.mrb[0].mxu0
        %v6056 = vadd.f32 %v6015, %v6055
        %v6057 = vpop.f32.mrb[0].mxu0
        %v6058 = vpop.f32.mrb[0].mxu0
        %6059 = vdwg.mxu0
        %6060 = vmatprep.subr.bf16.mxu0 %v5456
        %6061 = vmatpush1.bf16.msra.mxu0 %v5455
        %6062 = vmatprep.subr.bf16.mxu0 %v5460
        %6063 = vmatpush1.bf16.msra.mxu0 %v5459
        %6064 = vmatprep.subr.bf16.mxu0 %v5464
        %6065 = vmatpush1.bf16.msra.mxu0 %v5463
        %6066 = vmatprep.subr.bf16.mxu0 %v5468
        %6067 = vmatpush1.bf16.msra.mxu0 %v5467
        %6068 = vmatprep.subr.bf16.mxu0 %v5472
        %6069 = vmatpush1.bf16.msra.mxu0 %v5471
        %6070 = vmatprep.subr.bf16.mxu0 %v5476
        %6071 = vmatpush1.bf16.msra.mxu0 %v5475
        %6072 = vmatprep.subr.bf16.mxu0 %v5480
        %6073 = vmatpush1.bf16.msra.mxu0 %v5479
        %6074 = vmatprep.subr.bf16.mxu0 %v5484
        %6075 = vmatpush1.bf16.msra.mxu0 %v5483
        %6076 = vmatprep.subr.bf16.mxu0 %v5488
        %6077 = vmatpush1.bf16.msra.mxu0 %v5487
        %6078 = vmatprep.subr.bf16.mxu0 %v5492
        %6079 = vmatpush1.bf16.msra.mxu0 %v5491
        %6080 = vmatprep.subr.bf16.mxu0 %v5496
        %6081 = vmatpush1.bf16.msra.mxu0 %v5495
        %6082 = vmatprep.subr.bf16.mxu0 %v5500
        %6083 = vmatpush1.bf16.msra.mxu0 %v5499
        %6084 = vmatprep.subr.bf16.mxu0 %v5504
        %6085 = vmatpush1.bf16.msra.mxu0 %v5503
        %6086 = vmatprep.subr.bf16.mxu0 %v5508
        %6087 = vmatpush1.bf16.msra.mxu0 %v5507
        %6088 = vmatprep.subr.bf16.mxu0 %v5512
        %6089 = vmatpush1.bf16.msra.mxu0 %v5511
        %6090 = vmatprep.subr.bf16.mxu0 %v5516
        %6091 = vmatpush1.bf16.msra.mxu0 %v5515
        %6092 = vmatprep.mubr.bf16.mxu0 %v4236
        %6093 = vmatmul.mubr.bf16.gmra.mrb[0].mxu0 %v4235
        %v6094 = vpop.f32.mrb[0].mxu0
        %v6095 = vadd.f32 %v6054, %v6094
        %v6096 = vpop.f32.mrb[0].mxu0
        %v6097 = vadd.f32 %v6056, %v6096
        %v6098 = vpop.f32.mrb[0].mxu0
        %v6099 = vpop.f32.mrb[0].mxu0
        %6100 = vdwg.mxu0
        %v6105 = vcombine.low %v5931, %v5933
        %v6106 = vcombine.low %v6095, %v6097
        %v6108 = vunpack.c.l.s4 1983009808
        %v6109 = vunpack.c.0.s8 %v6108
        %v6110 = vlaneseq
        %v6111 = vshrl.u32 %v6110, 7
        %v6112 = vsub.s32 %v6109, %v6111
        %v6113 = vrot.slane %v6105, %v6112
        %v6115 = vunpack.c.l.s4 1983009808
        %v6116 = vunpack.c.0.s8 %v6115
        %v6117 = vlaneseq
        %v6118 = vshrl.u32 %v6117, 7
        %v6119 = vsub.s32 %v6116, %v6118
        %v6120 = vrot.slane %v6106, %v6119
        %v6121 = vcombine.low %v6113, %v6120
        %v6123 = vadd.f32 %v4228, %v6121
        %6124 = vst [vmem:[#allocation2] sm:$0xff] %v6123
        %p6125 = scmp.eq.s32.totalorder %s24, 3
        // Predicated region
        $region77: #{baseline_mlp_forward.1} parent=47 // pred_check
          %p6126 = pneg %p6125
        $region78: #{baseline_mlp_forward.1} parent=47 // pred_check_branch
          %6128 = sbr.rel (%p6126) target = $region80
        $region79: #{baseline_mlp_forward.1} parent=47 // pred_region
          %v6129 = vld [vmem:[#allocation2] sm:$0xff]
          %v6130 = vld [vmem:[#allocation9] sm:$0xf]
          %v6132 = vlaneseq
          %v6133 = vshrl.u32 %v6132, 7
          %v6134 = vsub.s32 0, %v6133
          %v6135 = vrot.slane %v6130, %v6134
          %v6136 = vlaneseq
          %v6137 = vshrl.u32 %v6136, 7
          %v6138 = vsub.s32 1, %v6137
          %v6139 = vrot.slane %v6130, %v6138
          %v6140 = vlaneseq
          %v6141 = vshrl.u32 %v6140, 7
          %v6142 = vsub.s32 2, %v6141
          %v6143 = vrot.slane %v6130, %v6142
          %v6144 = vlaneseq
          %v6145 = vshrl.u32 %v6144, 7
          %v6146 = vsub.s32 3, %v6145
          %v6147 = vrot.slane %v6130, %v6146
          %v6148 = vcombine.low %v6135, %v6139
          %v6149 = vcombine.low %v6143, %v6147
          %v6151 = vunpack.c.l.s4 1983009808
          %v6152 = vunpack.c.0.s8 %v6151
          %v6153 = vlaneseq
          %v6154 = vshrl.u32 %v6153, 7
          %v6155 = vsub.s32 %v6152, %v6154
          %v6156 = vrot.slane %v6148, %v6155
          %v6158 = vunpack.c.l.s4 1983009808
          %v6159 = vunpack.c.0.s8 %v6158
          %v6160 = vlaneseq
          %v6161 = vshrl.u32 %v6160, 7
          %v6162 = vsub.s32 %v6159, %v6161
          %v6163 = vrot.slane %v6149, %v6162
          %v6164 = vcombine.low %v6156, %v6163
          %v6166 = vadd.f32 %v6129, %v6164
          %v6167 = vmax.f32 %v6166, 0.0
          %v6169 = vcombine.high %v6167, %v6167
          %v6171 = vunpack.c.l.s4 1983009808
          %v6172 = vunpack.c.0.s8 %v6171
          %v6173 = vlaneseq
          %v6174 = vshrl.u32 %v6173, 7
          %v6175 = vsub.s32 %v6172, %v6174
          %v6176 = vrot.slane %v6167, %v6175
          %v6178 = vunpack.c.l.s4 1983009808
          %v6179 = vunpack.c.0.s8 %v6178
          %v6180 = vlaneseq
          %v6181 = vshrl.u32 %v6180, 7
          %v6182 = vsub.s32 %v6179, %v6181
          %v6183 = vrot.slane %v6169, %v6182
          %v6184 = vcombine.high %v6176, %v6176
          %v6185 = vcombine.high %v6183, %v6183
          %v6190 = vpack.c.bf16 %v6176, %v6176
          %v6191 = vpack.c.bf16 %v6184, %v6184
          %v6192 = vpack.c.bf16 %v6183, %v6183
          %v6193 = vpack.c.bf16 %v6185, %v6185
          %v6194 = vld [vmem:[#allocation10] sm:$0xf]
          %v6195 = vld [vmem:[#allocation10 + $0x4] sm:$0xf]
          %v6196 = vld [vmem:[#allocation10 + $0x8] sm:$0xf]
          %v6197 = vld [vmem:[#allocation10 + $0xc] sm:$0xf]
          %v6198 = vld [vmem:[#allocation10 + $0x10] sm:$0xf]
          %v6199 = vld [vmem:[#allocation10 + $0x14] sm:$0xf]
          %v6200 = vld [vmem:[#allocation10 + $0x18] sm:$0xf]
          %v6201 = vld [vmem:[#allocation10 + $0x1c] sm:$0xf]
          %v6202 = vld [vmem:[#allocation10 + $0x20] sm:$0xf]
          %v6203 = vld [vmem:[#allocation10 + $0x24] sm:$0xf]
          %v6204 = vld [vmem:[#allocation10 + $0x28] sm:$0xf]
          %v6205 = vld [vmem:[#allocation10 + $0x2c] sm:$0xf]
          %v6206 = vld [vmem:[#allocation10 + $0x30] sm:$0xf]
          %v6207 = vld [vmem:[#allocation10 + $0x34] sm:$0xf]
          %v6208 = vld [vmem:[#allocation10 + $0x38] sm:$0xf]
          %v6209 = vld [vmem:[#allocation10 + $0x3c] sm:$0xf]
          %v6210 = vld [vmem:[#allocation10 + $0x40] sm:$0xf]
          %v6211 = vld [vmem:[#allocation10 + $0x44] sm:$0xf]
          %v6212 = vld [vmem:[#allocation10 + $0x48] sm:$0xf]
          %v6213 = vld [vmem:[#allocation10 + $0x4c] sm:$0xf]
          %v6214 = vld [vmem:[#allocation10 + $0x50] sm:$0xf]
          %v6215 = vld [vmem:[#allocation10 + $0x54] sm:$0xf]
          %v6216 = vld [vmem:[#allocation10 + $0x58] sm:$0xf]
          %v6217 = vld [vmem:[#allocation10 + $0x5c] sm:$0xf]
          %v6218 = vld [vmem:[#allocation10 + $0x60] sm:$0xf]
          %v6219 = vld [vmem:[#allocation10 + $0x64] sm:$0xf]
          %v6220 = vld [vmem:[#allocation10 + $0x68] sm:$0xf]
          %v6221 = vld [vmem:[#allocation10 + $0x6c] sm:$0xf]
          %v6222 = vld [vmem:[#allocation10 + $0x70] sm:$0xf]
          %v6223 = vld [vmem:[#allocation10 + $0x74] sm:$0xf]
          %v6224 = vld [vmem:[#allocation10 + $0x78] sm:$0xf]
          %v6225 = vld [vmem:[#allocation10 + $0x7c] sm:$0xf]
          %v6226 = vld [vmem:[#allocation10 + $0x80] sm:$0xf]
          %v6227 = vld [vmem:[#allocation10 + $0x84] sm:$0xf]
          %v6228 = vld [vmem:[#allocation10 + $0x88] sm:$0xf]
          %v6229 = vld [vmem:[#allocation10 + $0x8c] sm:$0xf]
          %v6230 = vld [vmem:[#allocation10 + $0x90] sm:$0xf]
          %v6231 = vld [vmem:[#allocation10 + $0x94] sm:$0xf]
          %v6232 = vld [vmem:[#allocation10 + $0x98] sm:$0xf]
          %v6233 = vld [vmem:[#allocation10 + $0x9c] sm:$0xf]
          %v6234 = vld [vmem:[#allocation10 + $0xa0] sm:$0xf]
          %v6235 = vld [vmem:[#allocation10 + $0xa4] sm:$0xf]
          %v6236 = vld [vmem:[#allocation10 + $0xa8] sm:$0xf]
          %v6237 = vld [vmem:[#allocation10 + $0xac] sm:$0xf]
          %v6238 = vld [vmem:[#allocation10 + $0xb0] sm:$0xf]
          %v6239 = vld [vmem:[#allocation10 + $0xb4] sm:$0xf]
          %v6240 = vld [vmem:[#allocation10 + $0xb8] sm:$0xf]
          %v6241 = vld [vmem:[#allocation10 + $0xbc] sm:$0xf]
          %v6242 = vld [vmem:[#allocation10 + $0xc0] sm:$0xf]
          %v6243 = vld [vmem:[#allocation10 + $0xc4] sm:$0xf]
          %v6244 = vld [vmem:[#allocation10 + $0xc8] sm:$0xf]
          %v6245 = vld [vmem:[#allocation10 + $0xcc] sm:$0xf]
          %v6246 = vld [vmem:[#allocation10 + $0xd0] sm:$0xf]
          %v6247 = vld [vmem:[#allocation10 + $0xd4] sm:$0xf]
          %v6248 = vld [vmem:[#allocation10 + $0xd8] sm:$0xf]
          %v6249 = vld [vmem:[#allocation10 + $0xdc] sm:$0xf]
          %v6250 = vld [vmem:[#allocation10 + $0xe0] sm:$0xf]
          %v6251 = vld [vmem:[#allocation10 + $0xe4] sm:$0xf]
          %v6252 = vld [vmem:[#allocation10 + $0xe8] sm:$0xf]
          %v6253 = vld [vmem:[#allocation10 + $0xec] sm:$0xf]
          %v6254 = vld [vmem:[#allocation10 + $0xf0] sm:$0xf]
          %v6255 = vld [vmem:[#allocation10 + $0xf4] sm:$0xf]
          %v6256 = vld [vmem:[#allocation10 + $0xf8] sm:$0xf]
          %v6257 = vld [vmem:[#allocation10 + $0xfc] sm:$0xf]
          %v6258 = vld [vmem:[#allocation12] sm:$0x1]
          %v6260 = vlaneseq
          %v6261 = vshrl.u32 %v6260, 7
          %v6262 = vsub.s32 0, %v6261
          %v6263 = vrot.slane %v6258, %v6262
          %v6329 = vunpack.c.l.b16 %v6194
          %v6330 = vunpack.c.l.b16 %v6195
          %v6331 = vunpack.c.l.b16 %v6196
          %v6332 = vunpack.c.l.b16 %v6197
          %v6333 = vunpack.c.l.b16 %v6198
          %v6334 = vunpack.c.l.b16 %v6199
          %v6335 = vunpack.c.l.b16 %v6200
          %v6336 = vunpack.c.l.b16 %v6201
          %v6337 = vunpack.c.l.b16 %v6202
          %v6338 = vunpack.c.l.b16 %v6203
          %v6339 = vunpack.c.l.b16 %v6204
          %v6340 = vunpack.c.l.b16 %v6205
          %v6341 = vunpack.c.l.b16 %v6206
          %v6342 = vunpack.c.l.b16 %v6207
          %v6343 = vunpack.c.l.b16 %v6208
          %v6344 = vunpack.c.l.b16 %v6209
          %v6345 = vunpack.c.l.b16 %v6210
          %v6346 = vunpack.c.l.b16 %v6211
          %v6347 = vunpack.c.l.b16 %v6212
          %v6348 = vunpack.c.l.b16 %v6213
          %v6349 = vunpack.c.l.b16 %v6214
          %v6350 = vunpack.c.l.b16 %v6215
          %v6351 = vunpack.c.l.b16 %v6216
          %v6352 = vunpack.c.l.b16 %v6217
          %v6353 = vunpack.c.l.b16 %v6218
          %v6354 = vunpack.c.l.b16 %v6219
          %v6355 = vunpack.c.l.b16 %v6220
          %v6356 = vunpack.c.l.b16 %v6221
          %v6357 = vunpack.c.l.b16 %v6222
          %v6358 = vunpack.c.l.b16 %v6223
          %v6359 = vunpack.c.l.b16 %v6224
          %v6360 = vunpack.c.l.b16 %v6225
          %v6361 = vunpack.c.l.b16 %v6226
          %v6362 = vunpack.c.l.b16 %v6227
          %v6363 = vunpack.c.l.b16 %v6228
          %v6364 = vunpack.c.l.b16 %v6229
          %v6365 = vunpack.c.l.b16 %v6230
          %v6366 = vunpack.c.l.b16 %v6231
          %v6367 = vunpack.c.l.b16 %v6232
          %v6368 = vunpack.c.l.b16 %v6233
          %v6369 = vunpack.c.l.b16 %v6234
          %v6370 = vunpack.c.l.b16 %v6235
          %v6371 = vunpack.c.l.b16 %v6236
          %v6372 = vunpack.c.l.b16 %v6237
          %v6373 = vunpack.c.l.b16 %v6238
          %v6374 = vunpack.c.l.b16 %v6239
          %v6375 = vunpack.c.l.b16 %v6240
          %v6376 = vunpack.c.l.b16 %v6241
          %v6377 = vunpack.c.l.b16 %v6242
          %v6378 = vunpack.c.l.b16 %v6243
          %v6379 = vunpack.c.l.b16 %v6244
          %v6380 = vunpack.c.l.b16 %v6245
          %v6381 = vunpack.c.l.b16 %v6246
          %v6382 = vunpack.c.l.b16 %v6247
          %v6383 = vunpack.c.l.b16 %v6248
          %v6384 = vunpack.c.l.b16 %v6249
          %v6385 = vunpack.c.l.b16 %v6250
          %v6386 = vunpack.c.l.b16 %v6251
          %v6387 = vunpack.c.l.b16 %v6252
          %v6388 = vunpack.c.l.b16 %v6253
          %v6389 = vunpack.c.l.b16 %v6254
          %v6390 = vunpack.c.l.b16 %v6255
          %v6391 = vunpack.c.l.b16 %v6256
          %v6392 = vunpack.c.l.b16 %v6257
          %v6393 = vpack.c.b16 %v6330, %v6329
          %v6394 = vpack.c.b16 %v6332, %v6331
          %v6395 = vpack.c.b16 %v6334, %v6333
          %v6396 = vpack.c.b16 %v6336, %v6335
          %v6397 = vpack.c.b16 %v6338, %v6337
          %v6398 = vpack.c.b16 %v6340, %v6339
          %v6399 = vpack.c.b16 %v6342, %v6341
          %v6400 = vpack.c.b16 %v6344, %v6343
          %v6401 = vpack.c.b16 %v6346, %v6345
          %v6402 = vpack.c.b16 %v6348, %v6347
          %v6403 = vpack.c.b16 %v6350, %v6349
          %v6404 = vpack.c.b16 %v6352, %v6351
          %v6405 = vpack.c.b16 %v6354, %v6353
          %v6406 = vpack.c.b16 %v6356, %v6355
          %v6407 = vpack.c.b16 %v6358, %v6357
          %v6408 = vpack.c.b16 %v6360, %v6359
          %v6409 = vpack.c.b16 %v6362, %v6361
          %v6410 = vpack.c.b16 %v6364, %v6363
          %v6411 = vpack.c.b16 %v6366, %v6365
          %v6412 = vpack.c.b16 %v6368, %v6367
          %v6413 = vpack.c.b16 %v6370, %v6369
          %v6414 = vpack.c.b16 %v6372, %v6371
          %v6415 = vpack.c.b16 %v6374, %v6373
          %v6416 = vpack.c.b16 %v6376, %v6375
          %v6417 = vpack.c.b16 %v6378, %v6377
          %v6418 = vpack.c.b16 %v6380, %v6379
          %v6419 = vpack.c.b16 %v6382, %v6381
          %v6420 = vpack.c.b16 %v6384, %v6383
          %v6421 = vpack.c.b16 %v6386, %v6385
          %v6422 = vpack.c.b16 %v6388, %v6387
          %v6423 = vpack.c.b16 %v6390, %v6389
          %v6424 = vpack.c.b16 %v6392, %v6391
          %6457 = vmatprep.subr.bf16.mxu0 0
          %6458 = vmatpush1.bf16.msra.mxu0 %v6393
          %6459 = vmatprep.subr.bf16.mxu0 0
          %6460 = vmatpush1.bf16.msra.mxu0 %v6394
          %6461 = vmatprep.subr.bf16.mxu0 0
          %6462 = vmatpush1.bf16.msra.mxu0 %v6395
          %6463 = vmatprep.subr.bf16.mxu0 0
          %6464 = vmatpush1.bf16.msra.mxu0 %v6396
          %6465 = vmatprep.subr.bf16.mxu0 0
          %6466 = vmatpush1.bf16.msra.mxu0 %v6397
          %6467 = vmatprep.subr.bf16.mxu0 0
          %6468 = vmatpush1.bf16.msra.mxu0 %v6398
          %6469 = vmatprep.subr.bf16.mxu0 0
          %6470 = vmatpush1.bf16.msra.mxu0 %v6399
          %6471 = vmatprep.subr.bf16.mxu0 0
          %6472 = vmatpush1.bf16.msra.mxu0 %v6400
          %6473 = vmatprep.subr.bf16.mxu0 0
          %6474 = vmatpush1.bf16.msra.mxu0 %v6401
          %6475 = vmatprep.subr.bf16.mxu0 0
          %6476 = vmatpush1.bf16.msra.mxu0 %v6402
          %6477 = vmatprep.subr.bf16.mxu0 0
          %6478 = vmatpush1.bf16.msra.mxu0 %v6403
          %6479 = vmatprep.subr.bf16.mxu0 0
          %6480 = vmatpush1.bf16.msra.mxu0 %v6404
          %6481 = vmatprep.subr.bf16.mxu0 0
          %6482 = vmatpush1.bf16.msra.mxu0 %v6405
          %6483 = vmatprep.subr.bf16.mxu0 0
          %6484 = vmatpush1.bf16.msra.mxu0 %v6406
          %6485 = vmatprep.subr.bf16.mxu0 0
          %6486 = vmatpush1.bf16.msra.mxu0 %v6407
          %6487 = vmatprep.subr.bf16.mxu0 0
          %6488 = vmatpush1.bf16.msra.mxu0 %v6408
          %6489 = vmatprep.mubr.bf16.mxu0 %v6191
          %6490 = vmatmul.mubr.bf16.gmra.mrb[0].mxu0 %v6190
          %v6491 = vpop.f32.mrb[0].mxu0
          %v6492 = vadd.f32 %v6263, %v6491
          %v6493 = vpop.f32.mrb[0].mxu0
          %v6494 = vpop.f32.mrb[0].mxu0
          %v6495 = vpop.f32.mrb[0].mxu0
          %6496 = vdwg.mxu0
          %6497 = vmatprep.subr.bf16.mxu0 0
          %6498 = vmatpush1.bf16.msra.mxu0 %v6409
          %6499 = vmatprep.subr.bf16.mxu0 0
          %6500 = vmatpush1.bf16.msra.mxu0 %v6410
          %6501 = vmatprep.subr.bf16.mxu0 0
          %6502 = vmatpush1.bf16.msra.mxu0 %v6411
          %6503 = vmatprep.subr.bf16.mxu0 0
          %6504 = vmatpush1.bf16.msra.mxu0 %v6412
          %6505 = vmatprep.subr.bf16.mxu0 0
          %6506 = vmatpush1.bf16.msra.mxu0 %v6413
          %6507 = vmatprep.subr.bf16.mxu0 0
          %6508 = vmatpush1.bf16.msra.mxu0 %v6414
          %6509 = vmatprep.subr.bf16.mxu0 0
          %6510 = vmatpush1.bf16.msra.mxu0 %v6415
          %6511 = vmatprep.subr.bf16.mxu0 0
          %6512 = vmatpush1.bf16.msra.mxu0 %v6416
          %6513 = vmatprep.subr.bf16.mxu0 0
          %6514 = vmatpush1.bf16.msra.mxu0 %v6417
          %6515 = vmatprep.subr.bf16.mxu0 0
          %6516 = vmatpush1.bf16.msra.mxu0 %v6418
          %6517 = vmatprep.subr.bf16.mxu0 0
          %6518 = vmatpush1.bf16.msra.mxu0 %v6419
          %6519 = vmatprep.subr.bf16.mxu0 0
          %6520 = vmatpush1.bf16.msra.mxu0 %v6420
          %6521 = vmatprep.subr.bf16.mxu0 0
          %6522 = vmatpush1.bf16.msra.mxu0 %v6421
          %6523 = vmatprep.subr.bf16.mxu0 0
          %6524 = vmatpush1.bf16.msra.mxu0 %v6422
          %6525 = vmatprep.subr.bf16.mxu0 0
          %6526 = vmatpush1.bf16.msra.mxu0 %v6423
          %6527 = vmatprep.subr.bf16.mxu0 0
          %6528 = vmatpush1.bf16.msra.mxu0 %v6424
          %6529 = vmatprep.mubr.bf16.mxu0 %v6193
          %6530 = vmatmul.mubr.bf16.gmra.mrb[0].mxu0 %v6192
          %v6531 = vpop.f32.mrb[0].mxu0
          %v6532 = vadd.f32 %v6492, %v6531
          %v6533 = vpop.f32.mrb[0].mxu0
          %v6534 = vpop.f32.mrb[0].mxu0
          %v6535 = vpop.f32.mrb[0].mxu0
          %6536 = vdwg.mxu0
          %6537 = vst [vmem:[#allocation13] sm:$0x3] %v6532
        $region80: #{baseline_mlp_forward.1} parent=47 // pred_fallthru
          _
        // Predicated region
        $region81: #{baseline_mlp_forward.1} parent=47 // pred_check
          %p6538 = pneg %p194
        $region82: #{baseline_mlp_forward.1} parent=47 // pred_check_branch
          %6540 = sbr.rel (%p6538) target = $region84
        $region83: #{baseline_mlp_forward.1} parent=47 // pred_region
          %s6542 = ssub.s32 32, 32
          %6543 = vsyncadd [#allocation5], %s6542
          %s6545 = sshll.u32 [#allocation13], 4
          %s6546 = int_to_ptr.vmem [resolvable:$true] %s6545
          %6548 = dma.vmem_to_hbm [thread:$0]  %s6546, 32, %s7, [#allocation5]
        $region84: #{baseline_mlp_forward.1} parent=47 // pred_fallthru
          _
        // Predicated region
        $region85: #{baseline_mlp_forward.1} parent=47 // pred_check
          %p6549 = pneg %p194
        $region86: #{baseline_mlp_forward.1} parent=47 // pred_check_branch
          %6551 = sbr.rel (%p6549) target = $region88
        $region87: #{baseline_mlp_forward.1} parent=47 // pred_region
          %6552 = dma.done [#allocation5], 32
        $region88: #{baseline_mlp_forward.1} parent=47 // pred_fallthru
          _
      $region48: #{baseline_mlp_forward.1} parent=5 // pred_fallthru
        _
      %p6553 = scmp.le.s32.totalorder 2, %s19
      // Predicated region
      $region89: #{baseline_mlp_forward.1} parent=5 // pred_check
        %p6554 = pneg %p6553
      $region90: #{baseline_mlp_forward.1} parent=5 // pred_check_branch
        %6556 = sbr.rel (%p6554) target = $region92
      $region91: #{baseline_mlp_forward.1} parent=5 // pred_region
        %s6557 = ssub.s32 %s19, 2
      $region92: #{baseline_mlp_forward.1} parent=5 // pred_fallthru
        _
    $region6: #{baseline_mlp_forward.1} parent=1 // loop_footer
      %s23 = sadd.s32 1, %s19
    $region7: #{baseline_mlp_forward.1} parent=1 // loop_footer_branch
      %18 = sbr.rel target = $region3
    $region8: #{baseline_mlp_forward.1} parent=1 // loop_exit
      _
    %6558 = vsyncpa [#allocation4], 1
    %s6559 = scalar_lea.sflag [#allocation4], 1
    %6560 = vsyncpa %s6559, 1
    %6561 = vsyncpa [#allocation7], 1
    %6562 = vsyncpa [#allocation11], 1
    %6563 = vsyncpa [#allocation5], 1
    %s6564 = scalar_lea.sflag [#allocation5], 1
    %6565 = vsyncpa %s6564, 1

</llo_original>
